<compile_context>
chip_gen: v6e
topology: v6e:2x2x1
jax: 0.10.0
libtpu: 0.0.40
codegen_flags: <defaults>
</compile_context>

<pallas_src>
import jax
import jax.numpy as jnp
import numpy as np
from jax.experimental import pallas as pl
from jax.experimental.pallas import tpu as pltpu


# ----------------------------------------------------------------------------
# Fused Pallas kernel (both GRU layers + output head)
# ----------------------------------------------------------------------------
def _make_fused_decoder_kernel(num_layers, seq_len):
    """Builds a kernel closed over static (num_layers, seq_len).

    Ref order (all full-array blocks, grid=(1,)):
      x_ref   : (S, B, In0)              concatenated embeddings, seq-major
      h0_ref  : (L, B, H)                initial hidden
      per layer l:   wi_l (3, In, H),  wh_l (3, H, H),  b_l (4, H)
                     (gates r, z, n;  b rows = [b_r, b_z, bi_n, bh_n])
      wout_ref: (H, V)                   out.weight^T
      bout_ref: (1, V)
      logp_ref: (B, V)                   log-softmax(out(x[0]))
      hT_ref  : (L, B, H)                new hidden
    """

    def kernel(*refs):
        x_ref, h0_ref = refs[0], refs[1]
        layer_refs = refs[2:2 + 3 * num_layers]
        wout_ref = refs[2 + 3 * num_layers]
        bout_ref = refs[3 + 3 * num_layers]
        logp_ref = refs[4 + 3 * num_layers]
        hT_ref = refs[5 + 3 * num_layers]

        # Per-timestep inputs of the current layer (layer 0: embedded tokens).
        xs = [x_ref[t] for t in range(seq_len)]          # S x (B, In)

        for l in range(num_layers):
            wi_ref = layer_refs[3 * l + 0]               # (3, In, H)
            wh_ref = layer_refs[3 * l + 1]               # (3, H, H)
            b = layer_refs[3 * l + 2][...]               # (4, H)
            b_r, b_z = b[0:1, :], b[1:2, :]
            bi_n, bh_n = b[2:3, :], b[3:4, :]

            # Input-to-hidden matmuls hoisted off the serial recurrence chain.
            gi = [
                (jnp.dot(xs[t], wi_ref[0], preferred_element_type=jnp.float32),
                 jnp.dot(xs[t], wi_ref[1], preferred_element_type=jnp.float32),
                 jnp.dot(xs[t], wi_ref[2], preferred_element_type=jnp.float32))
                for t in range(seq_len)
            ]

            h = h0_ref[l]                                # (B, H), lives in vregs
            ys = []
            for t in range(seq_len):                     # unrolled recurrence
                g_r, g_z, g_n = gi[t]
                h_r = jnp.dot(h, wh_ref[0], preferred_element_type=jnp.float32)
                h_z = jnp.dot(h, wh_ref[1], preferred_element_type=jnp.float32)
                h_n = jnp.dot(h, wh_ref[2], preferred_element_type=jnp.float32)
                r = jax.nn.sigmoid(g_r + h_r + b_r)
                z = jax.nn.sigmoid(g_z + h_z + b_z)
                n = jnp.tanh(g_n + bi_n + r * (h_n + bh_n))
                h = (1.0 - z) * n + z * h
                ys.append(h)

            hT_ref[l] = h                                # single write per layer
            xs = ys                                      # feed next layer

        # Output head on the FIRST timestep of the last layer (PyTorch: output[0]).
        logits = jnp.dot(xs[0], wout_ref[...],
                         preferred_element_type=jnp.float32) + bout_ref[...]
        m = jnp.max(logits, axis=1, keepdims=True)
        s = logits - m
        lse = jnp.log(jnp.sum(jnp.exp(s), axis=1, keepdims=True))
        logp_ref[...] = s - lse

    return kernel


# ----------------------------------------------------------------------------
# One-time parameter preparation (outside the jitted forward)
# ----------------------------------------------------------------------------
def prepare_params(params):
    """Transpose / split-per-gate / fuse biases once, outside the jitted path."""
    prepped = {
        "embedding": jnp.asarray(params["embedding"], jnp.float32),
        "tag_embedding": jnp.asarray(params["tag_embedding"], jnp.float32),
        "dep_embedding": jnp.asarray(params["dep_embedding"], jnp.float32),
        "out_w_t": jnp.asarray(params["out_w"], jnp.float32).T,          # (H, V)
        "out_b": jnp.asarray(params["out_b"], jnp.float32).reshape(1, -1),
        "gru": [],
    }
    for (w_ih, w_hh, b_ih, b_hh) in params["gru"]:
        w_ih = jnp.asarray(w_ih, jnp.float32)        # (3H, In)  gate order r,z,n
        w_hh = jnp.asarray(w_hh, jnp.float32)        # (3H, H)
        b_ih = jnp.asarray(b_ih, jnp.float32)        # (3H,)
        b_hh = jnp.asarray(b_hh, jnp.float32)        # (3H,)
        H = w_hh.shape[1]
        wi = jnp.stack([w_ih[0:H].T, w_ih[H:2 * H].T, w_ih[2 * H:3 * H].T], 0)  # (3, In, H)
        wh = jnp.stack([w_hh[0:H].T, w_hh[H:2 * H].T, w_hh[2 * H:3 * H].T], 0)  # (3, H, H)
        b = jnp.stack([b_ih[0:H] + b_hh[0:H],          # fused r bias
                       b_ih[H:2 * H] + b_hh[H:2 * H],  # fused z bias
                       b_ih[2 * H:3 * H],              # bi_n (kept separate)
                       b_hh[2 * H:3 * H]], 0)          # bh_n (inside r * (...))
        prepped["gru"].append((wi, wh, b))
    return prepped


# ----------------------------------------------------------------------------
# Forward (mirrors DecoderGRU.forward with elmo=False, awd=False, eval mode)
# ----------------------------------------------------------------------------
@jax.jit
def decoder_gru_forward(prepped, input_ids, tag_ids, dep_ids, hidden):
    """input/tag/dep ids: (B, S) int32; hidden: (L, B, H) -> ((1,B,V), (L,B,H))."""
    # Embedding lookups + permute(1,0,2) + concat  (fused by XLA under jit).
    emb = jnp.take(prepped["embedding"], input_ids, axis=0).transpose(1, 0, 2)
    tag = jnp.take(prepped["tag_embedding"], tag_ids, axis=0).transpose(1, 0, 2)
    dep = jnp.take(prepped["dep_embedding"], dep_ids, axis=0).transpose(1, 0, 2)
    x_seq = jnp.concatenate([emb, tag, dep], axis=2)     # (S, B, E+T+D)
    # self.dropout(embedded) / self.dropout(output): identity in eval mode.

    S, B, In0 = x_seq.shape
    L, _, H = hidden.shape
    V = prepped["out_w_t"].shape[1]

    layer_args, layer_specs = [], []
    for (wi, wh, b) in prepped["gru"]:
        layer_args += [wi, wh, b]
        layer_specs += [
            pl.BlockSpec(wi.shape, lambda i: (0, 0, 0)),
            pl.BlockSpec(wh.shape, lambda i: (0, 0, 0)),
            pl.BlockSpec(b.shape, lambda i: (0, 0)),
        ]

    logp, new_hidden = pl.pallas_call(
        _make_fused_decoder_kernel(L, S),
        out_shape=(jax.ShapeDtypeStruct((B, V), jnp.float32),
                   jax.ShapeDtypeStruct((L, B, H), jnp.float32)),
        grid=(1,),
        in_specs=[pl.BlockSpec((S, B, In0), lambda i: (0, 0, 0)),
                  pl.BlockSpec((L, B, H), lambda i: (0, 0, 0))]
                 + layer_specs
                 + [pl.BlockSpec((H, V), lambda i: (0, 0)),
                    pl.BlockSpec((1, V), lambda i: (0, 0))],
        out_specs=(pl.BlockSpec((B, V), lambda i: (0, 0)),
                   pl.BlockSpec((L, B, H), lambda i: (0, 0, 0))),
        compiler_params=pltpu.CompilerParams(
            dimension_semantics=("arbitrary",)),
    )(x_seq, hidden, *layer_args, prepped["out_w_t"], prepped["out_b"])

    # output.unsqueeze(0)
    return logp[None, :, :], new_hidden


# ----------------------------------------------------------------------------
# Pure-JAX reference (for verification)
# ----------------------------------------------------------------------------
def _gru_cell_ref(x, h, w_ih, w_hh, b_ih, b_hh):
    H = h.shape[1]
    gi = x @ w_ih.T + b_ih
    gh = h @ w_hh.T + b_hh
    r = jax.nn.sigmoid(gi[:, :H] + gh[:, :H])
    z = jax.nn.sigmoid(gi[:, H:2 * H] + gh[:, H:2 * H])
    n = jnp.tanh(gi[:, 2 * H:] + r * gh[:, 2 * H:])
    return (1.0 - z) * n + z * h


def decoder_gru_forward_ref(params, input_ids, tag_ids, dep_ids, hidden):
    emb = jnp.take(params["embedding"], input_ids, axis=0).transpose(1, 0, 2)
    tag = jnp.take(params["tag_embedding"], tag_ids, axis=0).transpose(1, 0, 2)
    dep = jnp.take(params["dep_embedding"], dep_ids, axis=0).transpose(1, 0, 2)
    x = jnp.concatenate([emb, tag, dep], axis=2)
    S = x.shape[0]
    new_hidden = []
    for l in range(len(params["gru"])):
        w_ih, w_hh, b_ih, b_hh = params["gru"][l]
        h = hidden[l]
        ys = []
        for t in range(S):
            h = _gru_cell_ref(x[t], h, w_ih, w_hh, b_ih, b_hh)
            ys.append(h)
        x = jnp.stack(ys, axis=0)
        new_hidden.append(h)
    new_hidden = jnp.stack(new_hidden, axis=0)
    logits = x[0] @ params["out_w"].T + params["out_b"]
    logprobs = jax.nn.log_softmax(logits, axis=1)
    return logprobs[None, :, :], new_hidden


# ----------------------------------------------------------------------------
# Main
# ----------------------------------------------------------------------------
if __name__ == "__main__":
    # Small, module-consistent shapes.
    B, S = 2, 4
    V = 64          # output_size (vocab)
    TAG_SZ, DEP_SZ = 12, 12
    E, T, D = 16, 8, 8
    H = 32          # hidden_size
    L = 2           # num_layers
    IN0 = E + T + D

    key = jax.random.PRNGKey(0)
    ks = jax.random.split(key, 16)

    params = {
        "embedding": 0.1 * jax.random.normal(ks[0], (V, E), jnp.float32),
        "tag_embedding": 0.1 * jax.random.normal(ks[1], (TAG_SZ, T), jnp.float32),
        "dep_embedding": 0.1 * jax.random.normal(ks[2], (DEP_SZ, D), jnp.float32),
        "gru": [],
        "out_w": 0.1 * jax.random.normal(ks[3], (V, H), jnp.float32),
        "out_b": 0.1 * jax.random.normal(ks[4], (V,), jnp.float32),
    }
    for l in range(L):
        in_dim = IN0 if l == 0 else H
        kk = jax.random.split(ks[5 + l], 4)
        params["gru"].append((
            0.1 * jax.random.normal(kk[0], (3 * H, in_dim), jnp.float32),  # w_ih
            0.1 * jax.random.normal(kk[1], (3 * H, H), jnp.float32),       # w_hh
            0.1 * jax.random.normal(kk[2], (3 * H,), jnp.float32),         # b_ih
            0.1 * jax.random.normal(kk[3], (3 * H,), jnp.float32),         # b_hh
        ))

    input_ids = jax.random.randint(ks[10], (B, S), 0, V, dtype=jnp.int32)
    tag_ids = jax.random.randint(ks[11], (B, S), 0, TAG_SZ, dtype=jnp.int32)
    dep_ids = jax.random.randint(ks[12], (B, S), 0, DEP_SZ, dtype=jnp.int32)
    hidden0 = jnp.zeros((L, B, H), jnp.float32)   # initHidden(batch_size)

    # One-time weight layout prep (outside the jitted forward).
    prepped = prepare_params(params)

    out, new_hidden = decoder_gru_forward(prepped, input_ids, tag_ids,
                                          dep_ids, hidden0)
    out = jax.block_until_ready(out)
    new_hidden = jax.block_until_ready(new_hidden)

    ref_out, ref_hidden = decoder_gru_forward_ref(params, input_ids, tag_ids,
                                                  dep_ids, hidden0)
    np.testing.assert_allclose(np.asarray(out), np.asarray(ref_out),
                               rtol=1e-3, atol=1e-3)
    np.testing.assert_allclose(np.asarray(new_hidden), np.asarray(ref_hidden),
                               rtol=1e-3, atol=1e-3)

    assert out.shape == (1, B, V) and new_hidden.shape == (L, B, H)
    print("KERNEL_OK")
</pallas_src>

<mosaic_0001>
module attributes {stable_mosaic.version = 11 : i64} {
  func.func @kernel(%arg0: i32, %arg1: memref<4x2x32xf32, #tpu.memory_space<vmem>>, %arg2: memref<2x2x32xf32, #tpu.memory_space<vmem>>, %arg3: memref<3x32x32xf32, #tpu.memory_space<vmem>>, %arg4: memref<3x32x32xf32, #tpu.memory_space<vmem>>, %arg5: memref<4x32xf32, #tpu.memory_space<vmem>>, %arg6: memref<3x32x32xf32, #tpu.memory_space<vmem>>, %arg7: memref<3x32x32xf32, #tpu.memory_space<vmem>>, %arg8: memref<4x32xf32, #tpu.memory_space<vmem>>, %arg9: memref<32x64xf32, #tpu.memory_space<vmem>>, %arg10: memref<1x64xf32, #tpu.memory_space<vmem>>, %arg11: memref<2x64xf32, #tpu.memory_space<vmem>>, %arg12: memref<2x2x32xf32, #tpu.memory_space<vmem>>) attributes {dimension_semantics = [#tpu.dimension_semantics<arbitrary>], iteration_bounds = array<i64: 1>, scalar_prefetch = 0 : i64, scratch_operands = 0 : i64, tpu.core_type = #tpu.core_type<tc>, window_params = [{pipeline_mode = #tpu.pipeline_mode<synchronous>, transform_indices = @transform_0, window_bounds = array<i64: 4, 2, 32>}, {pipeline_mode = #tpu.pipeline_mode<synchronous>, transform_indices = @transform_1, window_bounds = array<i64: 2, 2, 32>}, {pipeline_mode = #tpu.pipeline_mode<synchronous>, transform_indices = @transform_2, window_bounds = array<i64: 3, 32, 32>}, {pipeline_mode = #tpu.pipeline_mode<synchronous>, transform_indices = @transform_3, window_bounds = array<i64: 3, 32, 32>}, {pipeline_mode = #tpu.pipeline_mode<synchronous>, transform_indices = @transform_4, window_bounds = array<i64: 4, 32>}, {pipeline_mode = #tpu.pipeline_mode<synchronous>, transform_indices = @transform_5, window_bounds = array<i64: 3, 32, 32>}, {pipeline_mode = #tpu.pipeline_mode<synchronous>, transform_indices = @transform_6, window_bounds = array<i64: 3, 32, 32>}, {pipeline_mode = #tpu.pipeline_mode<synchronous>, transform_indices = @transform_7, window_bounds = array<i64: 4, 32>}, {pipeline_mode = #tpu.pipeline_mode<synchronous>, transform_indices = @transform_8, window_bounds = array<i64: 32, 64>}, {pipeline_mode = #tpu.pipeline_mode<synchronous>, transform_indices = @transform_9, window_bounds = array<i64: 1, 64>}, {pipeline_mode = #tpu.pipeline_mode<synchronous>, transform_indices = @transform_10, window_bounds = array<i64: 2, 64>}, {pipeline_mode = #tpu.pipeline_mode<synchronous>, transform_indices = @transform_11, window_bounds = array<i64: 2, 2, 32>}]} {
    %c0 = arith.constant 0 : index
    %c0_0 = arith.constant 0 : index
    %c0_1 = arith.constant 0 : index
    %0 = vector.load %arg1[%c0, %c0_0, %c0_1] : memref<4x2x32xf32, #tpu.memory_space<vmem>>, vector<1x2x32xf32>
    %1 = vector.shape_cast %0 : vector<1x2x32xf32> to vector<2x32xf32>
    %c1 = arith.constant 1 : index
    %c0_2 = arith.constant 0 : index
    %c0_3 = arith.constant 0 : index
    %2 = vector.load %arg1[%c1, %c0_2, %c0_3] : memref<4x2x32xf32, #tpu.memory_space<vmem>>, vector<1x2x32xf32>
    %3 = vector.shape_cast %2 : vector<1x2x32xf32> to vector<2x32xf32>
    %c2 = arith.constant 2 : index
    %c0_4 = arith.constant 0 : index
    %c0_5 = arith.constant 0 : index
    %4 = vector.load %arg1[%c2, %c0_4, %c0_5] : memref<4x2x32xf32, #tpu.memory_space<vmem>>, vector<1x2x32xf32>
    %5 = vector.shape_cast %4 : vector<1x2x32xf32> to vector<2x32xf32>
    %c3 = arith.constant 3 : index
    %c0_6 = arith.constant 0 : index
    %c0_7 = arith.constant 0 : index
    %6 = vector.load %arg1[%c3, %c0_6, %c0_7] : memref<4x2x32xf32, #tpu.memory_space<vmem>>, vector<1x2x32xf32>
    %7 = vector.shape_cast %6 : vector<1x2x32xf32> to vector<2x32xf32>
    %c0_8 = arith.constant 0 : index
    %c0_9 = arith.constant 0 : index
    %8 = vector.load %arg5[%c0_8, %c0_9] : memref<4x32xf32, #tpu.memory_space<vmem>>, vector<4x32xf32>
    %9 = vector.extract_strided_slice %8 {offsets = [0, 0], sizes = [1, 32], strides = [1, 1]} : vector<4x32xf32> to vector<1x32xf32>
    %10 = vector.extract_strided_slice %8 {offsets = [1, 0], sizes = [1, 32], strides = [1, 1]} : vector<4x32xf32> to vector<1x32xf32>
    %11 = vector.extract_strided_slice %8 {offsets = [2, 0], sizes = [1, 32], strides = [1, 1]} : vector<4x32xf32> to vector<1x32xf32>
    %12 = vector.extract_strided_slice %8 {offsets = [3, 0], sizes = [1, 32], strides = [1, 1]} : vector<4x32xf32> to vector<1x32xf32>
    %c0_10 = arith.constant 0 : index
    %c0_11 = arith.constant 0 : index
    %c0_12 = arith.constant 0 : index
    %13 = vector.load %arg3[%c0_10, %c0_11, %c0_12] : memref<3x32x32xf32, #tpu.memory_space<vmem>>, vector<1x32x32xf32>
    %14 = vector.shape_cast %13 : vector<1x32x32xf32> to vector<32x32xf32>
    %cst = arith.constant dense<0.000000e+00> : vector<2x32xf32>
    %15 = tpu.matmul %1, %14, %cst {dimension_numbers = #tpu.dot_dimension_numbers<[1], [0], [0], [1], [0, 0, 1, 1], [], []>} : vector<2x32xf32>, vector<32x32xf32>, vector<2x32xf32> -> vector<2x32xf32>
    %c1_13 = arith.constant 1 : index
    %c0_14 = arith.constant 0 : index
    %c0_15 = arith.constant 0 : index
    %16 = vector.load %arg3[%c1_13, %c0_14, %c0_15] : memref<3x32x32xf32, #tpu.memory_space<vmem>>, vector<1x32x32xf32>
    %17 = vector.shape_cast %16 : vector<1x32x32xf32> to vector<32x32xf32>
    %cst_16 = arith.constant dense<0.000000e+00> : vector<2x32xf32>
    %18 = tpu.matmul %1, %17, %cst_16 {dimension_numbers = #tpu.dot_dimension_numbers<[1], [0], [0], [1], [0, 0, 1, 1], [], []>} : vector<2x32xf32>, vector<32x32xf32>, vector<2x32xf32> -> vector<2x32xf32>
    %c2_17 = arith.constant 2 : index
    %c0_18 = arith.constant 0 : index
    %c0_19 = arith.constant 0 : index
    %19 = vector.load %arg3[%c2_17, %c0_18, %c0_19] : memref<3x32x32xf32, #tpu.memory_space<vmem>>, vector<1x32x32xf32>
    %20 = vector.shape_cast %19 : vector<1x32x32xf32> to vector<32x32xf32>
    %cst_20 = arith.constant dense<0.000000e+00> : vector<2x32xf32>
    %21 = tpu.matmul %1, %20, %cst_20 {dimension_numbers = #tpu.dot_dimension_numbers<[1], [0], [0], [1], [0, 0, 1, 1], [], []>} : vector<2x32xf32>, vector<32x32xf32>, vector<2x32xf32> -> vector<2x32xf32>
    %c0_21 = arith.constant 0 : index
    %c0_22 = arith.constant 0 : index
    %c0_23 = arith.constant 0 : index
    %22 = vector.load %arg3[%c0_21, %c0_22, %c0_23] : memref<3x32x32xf32, #tpu.memory_space<vmem>>, vector<1x32x32xf32>
    %23 = vector.shape_cast %22 : vector<1x32x32xf32> to vector<32x32xf32>
    %cst_24 = arith.constant dense<0.000000e+00> : vector<2x32xf32>
    %24 = tpu.matmul %3, %23, %cst_24 {dimension_numbers = #tpu.dot_dimension_numbers<[1], [0], [0], [1], [0, 0, 1, 1], [], []>} : vector<2x32xf32>, vector<32x32xf32>, vector<2x32xf32> -> vector<2x32xf32>
    %c1_25 = arith.constant 1 : index
    %c0_26 = arith.constant 0 : index
    %c0_27 = arith.constant 0 : index
    %25 = vector.load %arg3[%c1_25, %c0_26, %c0_27] : memref<3x32x32xf32, #tpu.memory_space<vmem>>, vector<1x32x32xf32>
    %26 = vector.shape_cast %25 : vector<1x32x32xf32> to vector<32x32xf32>
    %cst_28 = arith.constant dense<0.000000e+00> : vector<2x32xf32>
    %27 = tpu.matmul %3, %26, %cst_28 {dimension_numbers = #tpu.dot_dimension_numbers<[1], [0], [0], [1], [0, 0, 1, 1], [], []>} : vector<2x32xf32>, vector<32x32xf32>, vector<2x32xf32> -> vector<2x32xf32>
    %c2_29 = arith.constant 2 : index
    %c0_30 = arith.constant 0 : index
    %c0_31 = arith.constant 0 : index
    %28 = vector.load %arg3[%c2_29, %c0_30, %c0_31] : memref<3x32x32xf32, #tpu.memory_space<vmem>>, vector<1x32x32xf32>
    %29 = vector.shape_cast %28 : vector<1x32x32xf32> to vector<32x32xf32>
    %cst_32 = arith.constant dense<0.000000e+00> : vector<2x32xf32>
    %30 = tpu.matmul %3, %29, %cst_32 {dimension_numbers = #tpu.dot_dimension_numbers<[1], [0], [0], [1], [0, 0, 1, 1], [], []>} : vector<2x32xf32>, vector<32x32xf32>, vector<2x32xf32> -> vector<2x32xf32>
    %c0_33 = arith.constant 0 : index
    %c0_34 = arith.constant 0 : index
    %c0_35 = arith.constant 0 : index
    %31 = vector.load %arg3[%c0_33, %c0_34, %c0_35] : memref<3x32x32xf32, #tpu.memory_space<vmem>>, vector<1x32x32xf32>
    %32 = vector.shape_cast %31 : vector<1x32x32xf32> to vector<32x32xf32>
    %cst_36 = arith.constant dense<0.000000e+00> : vector<2x32xf32>
    %33 = tpu.matmul %5, %32, %cst_36 {dimension_numbers = #tpu.dot_dimension_numbers<[1], [0], [0], [1], [0, 0, 1, 1], [], []>} : vector<2x32xf32>, vector<32x32xf32>, vector<2x32xf32> -> vector<2x32xf32>
    %c1_37 = arith.constant 1 : index
    %c0_38 = arith.constant 0 : index
    %c0_39 = arith.constant 0 : index
    %34 = vector.load %arg3[%c1_37, %c0_38, %c0_39] : memref<3x32x32xf32, #tpu.memory_space<vmem>>, vector<1x32x32xf32>
    %35 = vector.shape_cast %34 : vector<1x32x32xf32> to vector<32x32xf32>
    %cst_40 = arith.constant dense<0.000000e+00> : vector<2x32xf32>
    %36 = tpu.matmul %5, %35, %cst_40 {dimension_numbers = #tpu.dot_dimension_numbers<[1], [0], [0], [1], [0, 0, 1, 1], [], []>} : vector<2x32xf32>, vector<32x32xf32>, vector<2x32xf32> -> vector<2x32xf32>
    %c2_41 = arith.constant 2 : index
    %c0_42 = arith.constant 0 : index
    %c0_43 = arith.constant 0 : index
    %37 = vector.load %arg3[%c2_41, %c0_42, %c0_43] : memref<3x32x32xf32, #tpu.memory_space<vmem>>, vector<1x32x32xf32>
    %38 = vector.shape_cast %37 : vector<1x32x32xf32> to vector<32x32xf32>
    %cst_44 = arith.constant dense<0.000000e+00> : vector<2x32xf32>
    %39 = tpu.matmul %5, %38, %cst_44 {dimension_numbers = #tpu.dot_dimension_numbers<[1], [0], [0], [1], [0, 0, 1, 1], [], []>} : vector<2x32xf32>, vector<32x32xf32>, vector<2x32xf32> -> vector<2x32xf32>
    %c0_45 = arith.constant 0 : index
    %c0_46 = arith.constant 0 : index
    %c0_47 = arith.constant 0 : index
    %40 = vector.load %arg3[%c0_45, %c0_46, %c0_47] : memref<3x32x32xf32, #tpu.memory_space<vmem>>, vector<1x32x32xf32>
    %41 = vector.shape_cast %40 : vector<1x32x32xf32> to vector<32x32xf32>
    %cst_48 = arith.constant dense<0.000000e+00> : vector<2x32xf32>
    %42 = tpu.matmul %7, %41, %cst_48 {dimension_numbers = #tpu.dot_dimension_numbers<[1], [0], [0], [1], [0, 0, 1, 1], [], []>} : vector<2x32xf32>, vector<32x32xf32>, vector<2x32xf32> -> vector<2x32xf32>
    %c1_49 = arith.constant 1 : index
    %c0_50 = arith.constant 0 : index
    %c0_51 = arith.constant 0 : index
    %43 = vector.load %arg3[%c1_49, %c0_50, %c0_51] : memref<3x32x32xf32, #tpu.memory_space<vmem>>, vector<1x32x32xf32>
    %44 = vector.shape_cast %43 : vector<1x32x32xf32> to vector<32x32xf32>
    %cst_52 = arith.constant dense<0.000000e+00> : vector<2x32xf32>
    %45 = tpu.matmul %7, %44, %cst_52 {dimension_numbers = #tpu.dot_dimension_numbers<[1], [0], [0], [1], [0, 0, 1, 1], [], []>} : vector<2x32xf32>, vector<32x32xf32>, vector<2x32xf32> -> vector<2x32xf32>
    %c2_53 = arith.constant 2 : index
    %c0_54 = arith.constant 0 : index
    %c0_55 = arith.constant 0 : index
    %46 = vector.load %arg3[%c2_53, %c0_54, %c0_55] : memref<3x32x32xf32, #tpu.memory_space<vmem>>, vector<1x32x32xf32>
    %47 = vector.shape_cast %46 : vector<1x32x32xf32> to vector<32x32xf32>
    %cst_56 = arith.constant dense<0.000000e+00> : vector<2x32xf32>
    %48 = tpu.matmul %7, %47, %cst_56 {dimension_numbers = #tpu.dot_dimension_numbers<[1], [0], [0], [1], [0, 0, 1, 1], [], []>} : vector<2x32xf32>, vector<32x32xf32>, vector<2x32xf32> -> vector<2x32xf32>
    %c0_57 = arith.constant 0 : index
    %c0_58 = arith.constant 0 : index
    %c0_59 = arith.constant 0 : index
    %49 = vector.load %arg2[%c0_57, %c0_58, %c0_59] : memref<2x2x32xf32, #tpu.memory_space<vmem>>, vector<1x2x32xf32>
    %50 = vector.shape_cast %49 : vector<1x2x32xf32> to vector<2x32xf32>
    %c0_60 = arith.constant 0 : index
    %c0_61 = arith.constant 0 : index
    %c0_62 = arith.constant 0 : index
    %51 = vector.load %arg4[%c0_60, %c0_61, %c0_62] : memref<3x32x32xf32, #tpu.memory_space<vmem>>, vector<1x32x32xf32>
    %52 = vector.shape_cast %51 : vector<1x32x32xf32> to vector<32x32xf32>
    %cst_63 = arith.constant dense<0.000000e+00> : vector<2x32xf32>
    %53 = tpu.matmul %50, %52, %cst_63 {dimension_numbers = #tpu.dot_dimension_numbers<[1], [0], [0], [1], [0, 0, 1, 1], [], []>} : vector<2x32xf32>, vector<32x32xf32>, vector<2x32xf32> -> vector<2x32xf32>
    %c1_64 = arith.constant 1 : index
    %c0_65 = arith.constant 0 : index
    %c0_66 = arith.constant 0 : index
    %54 = vector.load %arg4[%c1_64, %c0_65, %c0_66] : memref<3x32x32xf32, #tpu.memory_space<vmem>>, vector<1x32x32xf32>
    %55 = vector.shape_cast %54 : vector<1x32x32xf32> to vector<32x32xf32>
    %cst_67 = arith.constant dense<0.000000e+00> : vector<2x32xf32>
    %56 = tpu.matmul %50, %55, %cst_67 {dimension_numbers = #tpu.dot_dimension_numbers<[1], [0], [0], [1], [0, 0, 1, 1], [], []>} : vector<2x32xf32>, vector<32x32xf32>, vector<2x32xf32> -> vector<2x32xf32>
    %c2_68 = arith.constant 2 : index
    %c0_69 = arith.constant 0 : index
    %c0_70 = arith.constant 0 : index
    %57 = vector.load %arg4[%c2_68, %c0_69, %c0_70] : memref<3x32x32xf32, #tpu.memory_space<vmem>>, vector<1x32x32xf32>
    %58 = vector.shape_cast %57 : vector<1x32x32xf32> to vector<32x32xf32>
    %cst_71 = arith.constant dense<0.000000e+00> : vector<2x32xf32>
    %59 = tpu.matmul %50, %58, %cst_71 {dimension_numbers = #tpu.dot_dimension_numbers<[1], [0], [0], [1], [0, 0, 1, 1], [], []>} : vector<2x32xf32>, vector<32x32xf32>, vector<2x32xf32> -> vector<2x32xf32>
    %60 = arith.addf %15, %53 : vector<2x32xf32>
    %61 = vector.broadcast %9 : vector<1x32xf32> to vector<2x32xf32>
    %62 = arith.addf %60, %61 : vector<2x32xf32>
    %63 = arith.negf %62 : vector<2x32xf32>
    %64 = math.exp %63 : vector<2x32xf32>
    %cst_72 = arith.constant 1.000000e+00 : f32
    %65 = vector.broadcast %cst_72 : f32 to vector<2x32xf32>
    %66 = arith.addf %65, %64 : vector<2x32xf32>
    %67 = arith.divf %65, %66 : vector<2x32xf32>
    %68 = arith.addf %18, %56 : vector<2x32xf32>
    %69 = vector.broadcast %10 : vector<1x32xf32> to vector<2x32xf32>
    %70 = arith.addf %68, %69 : vector<2x32xf32>
    %71 = arith.negf %70 : vector<2x32xf32>
    %72 = math.exp %71 : vector<2x32xf32>
    %cst_73 = arith.constant 1.000000e+00 : f32
    %73 = vector.broadcast %cst_73 : f32 to vector<2x32xf32>
    %74 = arith.addf %73, %72 : vector<2x32xf32>
    %75 = arith.divf %73, %74 : vector<2x32xf32>
    %76 = vector.broadcast %11 : vector<1x32xf32> to vector<2x32xf32>
    %77 = arith.addf %21, %76 : vector<2x32xf32>
    %78 = vector.broadcast %12 : vector<1x32xf32> to vector<2x32xf32>
    %79 = arith.addf %59, %78 : vector<2x32xf32>
    %80 = arith.mulf %67, %79 : vector<2x32xf32>
    %81 = arith.addf %77, %80 : vector<2x32xf32>
    %82 = math.tanh %81 : vector<2x32xf32>
    %cst_74 = arith.constant 1.000000e+00 : f32
    %83 = vector.broadcast %cst_74 : f32 to vector<2x32xf32>
    %84 = arith.subf %83, %75 : vector<2x32xf32>
    %85 = arith.mulf %84, %82 : vector<2x32xf32>
    %86 = arith.mulf %75, %50 : vector<2x32xf32>
    %87 = arith.addf %85, %86 : vector<2x32xf32>
    %c0_75 = arith.constant 0 : index
    %c0_76 = arith.constant 0 : index
    %c0_77 = arith.constant 0 : index
    %88 = vector.load %arg4[%c0_75, %c0_76, %c0_77] : memref<3x32x32xf32, #tpu.memory_space<vmem>>, vector<1x32x32xf32>
    %89 = vector.shape_cast %88 : vector<1x32x32xf32> to vector<32x32xf32>
    %cst_78 = arith.constant dense<0.000000e+00> : vector<2x32xf32>
    %90 = tpu.matmul %87, %89, %cst_78 {dimension_numbers = #tpu.dot_dimension_numbers<[1], [0], [0], [1], [0, 0, 1, 1], [], []>} : vector<2x32xf32>, vector<32x32xf32>, vector<2x32xf32> -> vector<2x32xf32>
    %c1_79 = arith.constant 1 : index
    %c0_80 = arith.constant 0 : index
    %c0_81 = arith.constant 0 : index
    %91 = vector.load %arg4[%c1_79, %c0_80, %c0_81] : memref<3x32x32xf32, #tpu.memory_space<vmem>>, vector<1x32x32xf32>
    %92 = vector.shape_cast %91 : vector<1x32x32xf32> to vector<32x32xf32>
    %cst_82 = arith.constant dense<0.000000e+00> : vector<2x32xf32>
    %93 = tpu.matmul %87, %92, %cst_82 {dimension_numbers = #tpu.dot_dimension_numbers<[1], [0], [0], [1], [0, 0, 1, 1], [], []>} : vector<2x32xf32>, vector<32x32xf32>, vector<2x32xf32> -> vector<2x32xf32>
    %c2_83 = arith.constant 2 : index
    %c0_84 = arith.constant 0 : index
    %c0_85 = arith.constant 0 : index
    %94 = vector.load %arg4[%c2_83, %c0_84, %c0_85] : memref<3x32x32xf32, #tpu.memory_space<vmem>>, vector<1x32x32xf32>
    %95 = vector.shape_cast %94 : vector<1x32x32xf32> to vector<32x32xf32>
    %cst_86 = arith.constant dense<0.000000e+00> : vector<2x32xf32>
    %96 = tpu.matmul %87, %95, %cst_86 {dimension_numbers = #tpu.dot_dimension_numbers<[1], [0], [0], [1], [0, 0, 1, 1], [], []>} : vector<2x32xf32>, vector<32x32xf32>, vector<2x32xf32> -> vector<2x32xf32>
    %97 = arith.addf %24, %90 : vector<2x32xf32>
    %98 = vector.broadcast %9 : vector<1x32xf32> to vector<2x32xf32>
    %99 = arith.addf %97, %98 : vector<2x32xf32>
    %100 = arith.negf %99 : vector<2x32xf32>
    %101 = math.exp %100 : vector<2x32xf32>
    %cst_87 = arith.constant 1.000000e+00 : f32
    %102 = vector.broadcast %cst_87 : f32 to vector<2x32xf32>
    %103 = arith.addf %102, %101 : vector<2x32xf32>
    %104 = arith.divf %102, %103 : vector<2x32xf32>
    %105 = arith.addf %27, %93 : vector<2x32xf32>
    %106 = vector.broadcast %10 : vector<1x32xf32> to vector<2x32xf32>
    %107 = arith.addf %105, %106 : vector<2x32xf32>
    %108 = arith.negf %107 : vector<2x32xf32>
    %109 = math.exp %108 : vector<2x32xf32>
    %cst_88 = arith.constant 1.000000e+00 : f32
    %110 = vector.broadcast %cst_88 : f32 to vector<2x32xf32>
    %111 = arith.addf %110, %109 : vector<2x32xf32>
    %112 = arith.divf %110, %111 : vector<2x32xf32>
    %113 = vector.broadcast %11 : vector<1x32xf32> to vector<2x32xf32>
    %114 = arith.addf %30, %113 : vector<2x32xf32>
    %115 = vector.broadcast %12 : vector<1x32xf32> to vector<2x32xf32>
    %116 = arith.addf %96, %115 : vector<2x32xf32>
    %117 = arith.mulf %104, %116 : vector<2x32xf32>
    %118 = arith.addf %114, %117 : vector<2x32xf32>
    %119 = math.tanh %118 : vector<2x32xf32>
    %cst_89 = arith.constant 1.000000e+00 : f32
    %120 = vector.broadcast %cst_89 : f32 to vector<2x32xf32>
    %121 = arith.subf %120, %112 : vector<2x32xf32>
    %122 = arith.mulf %121, %119 : vector<2x32xf32>
    %123 = arith.mulf %112, %87 : vector<2x32xf32>
    %124 = arith.addf %122, %123 : vector<2x32xf32>
    %c0_90 = arith.constant 0 : index
    %c0_91 = arith.constant 0 : index
    %c0_92 = arith.constant 0 : index
    %125 = vector.load %arg4[%c0_90, %c0_91, %c0_92] : memref<3x32x32xf32, #tpu.memory_space<vmem>>, vector<1x32x32xf32>
    %126 = vector.shape_cast %125 : vector<1x32x32xf32> to vector<32x32xf32>
    %cst_93 = arith.constant dense<0.000000e+00> : vector<2x32xf32>
    %127 = tpu.matmul %124, %126, %cst_93 {dimension_numbers = #tpu.dot_dimension_numbers<[1], [0], [0], [1], [0, 0, 1, 1], [], []>} : vector<2x32xf32>, vector<32x32xf32>, vector<2x32xf32> -> vector<2x32xf32>
    %c1_94 = arith.constant 1 : index
    %c0_95 = arith.constant 0 : index
    %c0_96 = arith.constant 0 : index
    %128 = vector.load %arg4[%c1_94, %c0_95, %c0_96] : memref<3x32x32xf32, #tpu.memory_space<vmem>>, vector<1x32x32xf32>
    %129 = vector.shape_cast %128 : vector<1x32x32xf32> to vector<32x32xf32>
    %cst_97 = arith.constant dense<0.000000e+00> : vector<2x32xf32>
    %130 = tpu.matmul %124, %129, %cst_97 {dimension_numbers = #tpu.dot_dimension_numbers<[1], [0], [0], [1], [0, 0, 1, 1], [], []>} : vector<2x32xf32>, vector<32x32xf32>, vector<2x32xf32> -> vector<2x32xf32>
    %c2_98 = arith.constant 2 : index
    %c0_99 = arith.constant 0 : index
    %c0_100 = arith.constant 0 : index
    %131 = vector.load %arg4[%c2_98, %c0_99, %c0_100] : memref<3x32x32xf32, #tpu.memory_space<vmem>>, vector<1x32x32xf32>
    %132 = vector.shape_cast %131 : vector<1x32x32xf32> to vector<32x32xf32>
    %cst_101 = arith.constant dense<0.000000e+00> : vector<2x32xf32>
    %133 = tpu.matmul %124, %132, %cst_101 {dimension_numbers = #tpu.dot_dimension_numbers<[1], [0], [0], [1], [0, 0, 1, 1], [], []>} : vector<2x32xf32>, vector<32x32xf32>, vector<2x32xf32> -> vector<2x32xf32>
    %134 = arith.addf %33, %127 : vector<2x32xf32>
    %135 = vector.broadcast %9 : vector<1x32xf32> to vector<2x32xf32>
    %136 = arith.addf %134, %135 : vector<2x32xf32>
    %137 = arith.negf %136 : vector<2x32xf32>
    %138 = math.exp %137 : vector<2x32xf32>
    %cst_102 = arith.constant 1.000000e+00 : f32
    %139 = vector.broadcast %cst_102 : f32 to vector<2x32xf32>
    %140 = arith.addf %139, %138 : vector<2x32xf32>
    %141 = arith.divf %139, %140 : vector<2x32xf32>
    %142 = arith.addf %36, %130 : vector<2x32xf32>
    %143 = vector.broadcast %10 : vector<1x32xf32> to vector<2x32xf32>
    %144 = arith.addf %142, %143 : vector<2x32xf32>
    %145 = arith.negf %144 : vector<2x32xf32>
    %146 = math.exp %145 : vector<2x32xf32>
    %cst_103 = arith.constant 1.000000e+00 : f32
    %147 = vector.broadcast %cst_103 : f32 to vector<2x32xf32>
    %148 = arith.addf %147, %146 : vector<2x32xf32>
    %149 = arith.divf %147, %148 : vector<2x32xf32>
    %150 = vector.broadcast %11 : vector<1x32xf32> to vector<2x32xf32>
    %151 = arith.addf %39, %150 : vector<2x32xf32>
    %152 = vector.broadcast %12 : vector<1x32xf32> to vector<2x32xf32>
    %153 = arith.addf %133, %152 : vector<2x32xf32>
    %154 = arith.mulf %141, %153 : vector<2x32xf32>
    %155 = arith.addf %151, %154 : vector<2x32xf32>
    %156 = math.tanh %155 : vector<2x32xf32>
    %cst_104 = arith.constant 1.000000e+00 : f32
    %157 = vector.broadcast %cst_104 : f32 to vector<2x32xf32>
    %158 = arith.subf %157, %149 : vector<2x32xf32>
    %159 = arith.mulf %158, %156 : vector<2x32xf32>
    %160 = arith.mulf %149, %124 : vector<2x32xf32>
    %161 = arith.addf %159, %160 : vector<2x32xf32>
    %c0_105 = arith.constant 0 : index
    %c0_106 = arith.constant 0 : index
    %c0_107 = arith.constant 0 : index
    %162 = vector.load %arg4[%c0_105, %c0_106, %c0_107] : memref<3x32x32xf32, #tpu.memory_space<vmem>>, vector<1x32x32xf32>
    %163 = vector.shape_cast %162 : vector<1x32x32xf32> to vector<32x32xf32>
    %cst_108 = arith.constant dense<0.000000e+00> : vector<2x32xf32>
    %164 = tpu.matmul %161, %163, %cst_108 {dimension_numbers = #tpu.dot_dimension_numbers<[1], [0], [0], [1], [0, 0, 1, 1], [], []>} : vector<2x32xf32>, vector<32x32xf32>, vector<2x32xf32> -> vector<2x32xf32>
    %c1_109 = arith.constant 1 : index
    %c0_110 = arith.constant 0 : index
    %c0_111 = arith.constant 0 : index
    %165 = vector.load %arg4[%c1_109, %c0_110, %c0_111] : memref<3x32x32xf32, #tpu.memory_space<vmem>>, vector<1x32x32xf32>
    %166 = vector.shape_cast %165 : vector<1x32x32xf32> to vector<32x32xf32>
    %cst_112 = arith.constant dense<0.000000e+00> : vector<2x32xf32>
    %167 = tpu.matmul %161, %166, %cst_112 {dimension_numbers = #tpu.dot_dimension_numbers<[1], [0], [0], [1], [0, 0, 1, 1], [], []>} : vector<2x32xf32>, vector<32x32xf32>, vector<2x32xf32> -> vector<2x32xf32>
    %c2_113 = arith.constant 2 : index
    %c0_114 = arith.constant 0 : index
    %c0_115 = arith.constant 0 : index
    %168 = vector.load %arg4[%c2_113, %c0_114, %c0_115] : memref<3x32x32xf32, #tpu.memory_space<vmem>>, vector<1x32x32xf32>
    %169 = vector.shape_cast %168 : vector<1x32x32xf32> to vector<32x32xf32>
    %cst_116 = arith.constant dense<0.000000e+00> : vector<2x32xf32>
    %170 = tpu.matmul %161, %169, %cst_116 {dimension_numbers = #tpu.dot_dimension_numbers<[1], [0], [0], [1], [0, 0, 1, 1], [], []>} : vector<2x32xf32>, vector<32x32xf32>, vector<2x32xf32> -> vector<2x32xf32>
    %171 = arith.addf %42, %164 : vector<2x32xf32>
    %172 = vector.broadcast %9 : vector<1x32xf32> to vector<2x32xf32>
    %173 = arith.addf %171, %172 : vector<2x32xf32>
    %174 = arith.negf %173 : vector<2x32xf32>
    %175 = math.exp %174 : vector<2x32xf32>
    %cst_117 = arith.constant 1.000000e+00 : f32
    %176 = vector.broadcast %cst_117 : f32 to vector<2x32xf32>
    %177 = arith.addf %176, %175 : vector<2x32xf32>
    %178 = arith.divf %176, %177 : vector<2x32xf32>
    %179 = arith.addf %45, %167 : vector<2x32xf32>
    %180 = vector.broadcast %10 : vector<1x32xf32> to vector<2x32xf32>
    %181 = arith.addf %179, %180 : vector<2x32xf32>
    %182 = arith.negf %181 : vector<2x32xf32>
    %183 = math.exp %182 : vector<2x32xf32>
    %cst_118 = arith.constant 1.000000e+00 : f32
    %184 = vector.broadcast %cst_118 : f32 to vector<2x32xf32>
    %185 = arith.addf %184, %183 : vector<2x32xf32>
    %186 = arith.divf %184, %185 : vector<2x32xf32>
    %187 = vector.broadcast %11 : vector<1x32xf32> to vector<2x32xf32>
    %188 = arith.addf %48, %187 : vector<2x32xf32>
    %189 = vector.broadcast %12 : vector<1x32xf32> to vector<2x32xf32>
    %190 = arith.addf %170, %189 : vector<2x32xf32>
    %191 = arith.mulf %178, %190 : vector<2x32xf32>
    %192 = arith.addf %188, %191 : vector<2x32xf32>
    %193 = math.tanh %192 : vector<2x32xf32>
    %cst_119 = arith.constant 1.000000e+00 : f32
    %194 = vector.broadcast %cst_119 : f32 to vector<2x32xf32>
    %195 = arith.subf %194, %186 : vector<2x32xf32>
    %196 = arith.mulf %195, %193 : vector<2x32xf32>
    %197 = arith.mulf %186, %161 : vector<2x32xf32>
    %198 = arith.addf %196, %197 : vector<2x32xf32>
    %c0_120 = arith.constant 0 : index
    %c0_121 = arith.constant 0 : index
    %c0_122 = arith.constant 0 : index
    %199 = vector.load %arg12[%c0_120, %c0_121, %c0_122] : memref<2x2x32xf32, #tpu.memory_space<vmem>>, vector<1x2x32xf32>
    %200 = vector.shape_cast %199 : vector<1x2x32xf32> to vector<2x32xf32>
    %201 = vector.shape_cast %198 : vector<2x32xf32> to vector<1x2x32xf32>
    tpu.vector_store %arg12[%c0_120, %c0_121, %c0_122], %201 {strides = array<i32>} : memref<2x2x32xf32, #tpu.memory_space<vmem>>, vector<1x2x32xf32>,
    %c0_123 = arith.constant 0 : index
    %c0_124 = arith.constant 0 : index
    %202 = vector.load %arg8[%c0_123, %c0_124] : memref<4x32xf32, #tpu.memory_space<vmem>>, vector<4x32xf32>
    %203 = vector.extract_strided_slice %202 {offsets = [0, 0], sizes = [1, 32], strides = [1, 1]} : vector<4x32xf32> to vector<1x32xf32>
    %204 = vector.extract_strided_slice %202 {offsets = [1, 0], sizes = [1, 32], strides = [1, 1]} : vector<4x32xf32> to vector<1x32xf32>
    %205 = vector.extract_strided_slice %202 {offsets = [2, 0], sizes = [1, 32], strides = [1, 1]} : vector<4x32xf32> to vector<1x32xf32>
    %206 = vector.extract_strided_slice %202 {offsets = [3, 0], sizes = [1, 32], strides = [1, 1]} : vector<4x32xf32> to vector<1x32xf32>
    %c0_125 = arith.constant 0 : index
    %c0_126 = arith.constant 0 : index
    %c0_127 = arith.constant 0 : index
    %207 = vector.load %arg6[%c0_125, %c0_126, %c0_127] : memref<3x32x32xf32, #tpu.memory_space<vmem>>, vector<1x32x32xf32>
    %208 = vector.shape_cast %207 : vector<1x32x32xf32> to vector<32x32xf32>
    %cst_128 = arith.constant dense<0.000000e+00> : vector<2x32xf32>
    %209 = tpu.matmul %87, %208, %cst_128 {dimension_numbers = #tpu.dot_dimension_numbers<[1], [0], [0], [1], [0, 0, 1, 1], [], []>} : vector<2x32xf32>, vector<32x32xf32>, vector<2x32xf32> -> vector<2x32xf32>
    %c1_129 = arith.constant 1 : index
    %c0_130 = arith.constant 0 : index
    %c0_131 = arith.constant 0 : index
    %210 = vector.load %arg6[%c1_129, %c0_130, %c0_131] : memref<3x32x32xf32, #tpu.memory_space<vmem>>, vector<1x32x32xf32>
    %211 = vector.shape_cast %210 : vector<1x32x32xf32> to vector<32x32xf32>
    %cst_132 = arith.constant dense<0.000000e+00> : vector<2x32xf32>
    %212 = tpu.matmul %87, %211, %cst_132 {dimension_numbers = #tpu.dot_dimension_numbers<[1], [0], [0], [1], [0, 0, 1, 1], [], []>} : vector<2x32xf32>, vector<32x32xf32>, vector<2x32xf32> -> vector<2x32xf32>
    %c2_133 = arith.constant 2 : index
    %c0_134 = arith.constant 0 : index
    %c0_135 = arith.constant 0 : index
    %213 = vector.load %arg6[%c2_133, %c0_134, %c0_135] : memref<3x32x32xf32, #tpu.memory_space<vmem>>, vector<1x32x32xf32>
    %214 = vector.shape_cast %213 : vector<1x32x32xf32> to vector<32x32xf32>
    %cst_136 = arith.constant dense<0.000000e+00> : vector<2x32xf32>
    %215 = tpu.matmul %87, %214, %cst_136 {dimension_numbers = #tpu.dot_dimension_numbers<[1], [0], [0], [1], [0, 0, 1, 1], [], []>} : vector<2x32xf32>, vector<32x32xf32>, vector<2x32xf32> -> vector<2x32xf32>
    %c0_137 = arith.constant 0 : index
    %c0_138 = arith.constant 0 : index
    %c0_139 = arith.constant 0 : index
    %216 = vector.load %arg6[%c0_137, %c0_138, %c0_139] : memref<3x32x32xf32, #tpu.memory_space<vmem>>, vector<1x32x32xf32>
    %217 = vector.shape_cast %216 : vector<1x32x32xf32> to vector<32x32xf32>
    %cst_140 = arith.constant dense<0.000000e+00> : vector<2x32xf32>
    %218 = tpu.matmul %124, %217, %cst_140 {dimension_numbers = #tpu.dot_dimension_numbers<[1], [0], [0], [1], [0, 0, 1, 1], [], []>} : vector<2x32xf32>, vector<32x32xf32>, vector<2x32xf32> -> vector<2x32xf32>
    %c1_141 = arith.constant 1 : index
    %c0_142 = arith.constant 0 : index
    %c0_143 = arith.constant 0 : index
    %219 = vector.load %arg6[%c1_141, %c0_142, %c0_143] : memref<3x32x32xf32, #tpu.memory_space<vmem>>, vector<1x32x32xf32>
    %220 = vector.shape_cast %219 : vector<1x32x32xf32> to vector<32x32xf32>
    %cst_144 = arith.constant dense<0.000000e+00> : vector<2x32xf32>
    %221 = tpu.matmul %124, %220, %cst_144 {dimension_numbers = #tpu.dot_dimension_numbers<[1], [0], [0], [1], [0, 0, 1, 1], [], []>} : vector<2x32xf32>, vector<32x32xf32>, vector<2x32xf32> -> vector<2x32xf32>
    %c2_145 = arith.constant 2 : index
    %c0_146 = arith.constant 0 : index
    %c0_147 = arith.constant 0 : index
    %222 = vector.load %arg6[%c2_145, %c0_146, %c0_147] : memref<3x32x32xf32, #tpu.memory_space<vmem>>, vector<1x32x32xf32>
    %223 = vector.shape_cast %222 : vector<1x32x32xf32> to vector<32x32xf32>
    %cst_148 = arith.constant dense<0.000000e+00> : vector<2x32xf32>
    %224 = tpu.matmul %124, %223, %cst_148 {dimension_numbers = #tpu.dot_dimension_numbers<[1], [0], [0], [1], [0, 0, 1, 1], [], []>} : vector<2x32xf32>, vector<32x32xf32>, vector<2x32xf32> -> vector<2x32xf32>
    %c0_149 = arith.constant 0 : index
    %c0_150 = arith.constant 0 : index
    %c0_151 = arith.constant 0 : index
    %225 = vector.load %arg6[%c0_149, %c0_150, %c0_151] : memref<3x32x32xf32, #tpu.memory_space<vmem>>, vector<1x32x32xf32>
    %226 = vector.shape_cast %225 : vector<1x32x32xf32> to vector<32x32xf32>
    %cst_152 = arith.constant dense<0.000000e+00> : vector<2x32xf32>
    %227 = tpu.matmul %161, %226, %cst_152 {dimension_numbers = #tpu.dot_dimension_numbers<[1], [0], [0], [1], [0, 0, 1, 1], [], []>} : vector<2x32xf32>, vector<32x32xf32>, vector<2x32xf32> -> vector<2x32xf32>
    %c1_153 = arith.constant 1 : index
    %c0_154 = arith.constant 0 : index
    %c0_155 = arith.constant 0 : index
    %228 = vector.load %arg6[%c1_153, %c0_154, %c0_155] : memref<3x32x32xf32, #tpu.memory_space<vmem>>, vector<1x32x32xf32>
    %229 = vector.shape_cast %228 : vector<1x32x32xf32> to vector<32x32xf32>
    %cst_156 = arith.constant dense<0.000000e+00> : vector<2x32xf32>
    %230 = tpu.matmul %161, %229, %cst_156 {dimension_numbers = #tpu.dot_dimension_numbers<[1], [0], [0], [1], [0, 0, 1, 1], [], []>} : vector<2x32xf32>, vector<32x32xf32>, vector<2x32xf32> -> vector<2x32xf32>
    %c2_157 = arith.constant 2 : index
    %c0_158 = arith.constant 0 : index
    %c0_159 = arith.constant 0 : index
    %231 = vector.load %arg6[%c2_157, %c0_158, %c0_159] : memref<3x32x32xf32, #tpu.memory_space<vmem>>, vector<1x32x32xf32>
    %232 = vector.shape_cast %231 : vector<1x32x32xf32> to vector<32x32xf32>
    %cst_160 = arith.constant dense<0.000000e+00> : vector<2x32xf32>
    %233 = tpu.matmul %161, %232, %cst_160 {dimension_numbers = #tpu.dot_dimension_numbers<[1], [0], [0], [1], [0, 0, 1, 1], [], []>} : vector<2x32xf32>, vector<32x32xf32>, vector<2x32xf32> -> vector<2x32xf32>
    %c0_161 = arith.constant 0 : index
    %c0_162 = arith.constant 0 : index
    %c0_163 = arith.constant 0 : index
    %234 = vector.load %arg6[%c0_161, %c0_162, %c0_163] : memref<3x32x32xf32, #tpu.memory_space<vmem>>, vector<1x32x32xf32>
    %235 = vector.shape_cast %234 : vector<1x32x32xf32> to vector<32x32xf32>
    %cst_164 = arith.constant dense<0.000000e+00> : vector<2x32xf32>
    %236 = tpu.matmul %198, %235, %cst_164 {dimension_numbers = #tpu.dot_dimension_numbers<[1], [0], [0], [1], [0, 0, 1, 1], [], []>} : vector<2x32xf32>, vector<32x32xf32>, vector<2x32xf32> -> vector<2x32xf32>
    %c1_165 = arith.constant 1 : index
    %c0_166 = arith.constant 0 : index
    %c0_167 = arith.constant 0 : index
    %237 = vector.load %arg6[%c1_165, %c0_166, %c0_167] : memref<3x32x32xf32, #tpu.memory_space<vmem>>, vector<1x32x32xf32>
    %238 = vector.shape_cast %237 : vector<1x32x32xf32> to vector<32x32xf32>
    %cst_168 = arith.constant dense<0.000000e+00> : vector<2x32xf32>
    %239 = tpu.matmul %198, %238, %cst_168 {dimension_numbers = #tpu.dot_dimension_numbers<[1], [0], [0], [1], [0, 0, 1, 1], [], []>} : vector<2x32xf32>, vector<32x32xf32>, vector<2x32xf32> -> vector<2x32xf32>
    %c2_169 = arith.constant 2 : index
    %c0_170 = arith.constant 0 : index
    %c0_171 = arith.constant 0 : index
    %240 = vector.load %arg6[%c2_169, %c0_170, %c0_171] : memref<3x32x32xf32, #tpu.memory_space<vmem>>, vector<1x32x32xf32>
    %241 = vector.shape_cast %240 : vector<1x32x32xf32> to vector<32x32xf32>
    %cst_172 = arith.constant dense<0.000000e+00> : vector<2x32xf32>
    %242 = tpu.matmul %198, %241, %cst_172 {dimension_numbers = #tpu.dot_dimension_numbers<[1], [0], [0], [1], [0, 0, 1, 1], [], []>} : vector<2x32xf32>, vector<32x32xf32>, vector<2x32xf32> -> vector<2x32xf32>
    %c1_173 = arith.constant 1 : index
    %c0_174 = arith.constant 0 : index
    %c0_175 = arith.constant 0 : index
    %243 = vector.load %arg2[%c1_173, %c0_174, %c0_175] : memref<2x2x32xf32, #tpu.memory_space<vmem>>, vector<1x2x32xf32>
    %244 = vector.shape_cast %243 : vector<1x2x32xf32> to vector<2x32xf32>
    %c0_176 = arith.constant 0 : index
    %c0_177 = arith.constant 0 : index
    %c0_178 = arith.constant 0 : index
    %245 = vector.load %arg7[%c0_176, %c0_177, %c0_178] : memref<3x32x32xf32, #tpu.memory_space<vmem>>, vector<1x32x32xf32>
    %246 = vector.shape_cast %245 : vector<1x32x32xf32> to vector<32x32xf32>
    %cst_179 = arith.constant dense<0.000000e+00> : vector<2x32xf32>
    %247 = tpu.matmul %244, %246, %cst_179 {dimension_numbers = #tpu.dot_dimension_numbers<[1], [0], [0], [1], [0, 0, 1, 1], [], []>} : vector<2x32xf32>, vector<32x32xf32>, vector<2x32xf32> -> vector<2x32xf32>
    %c1_180 = arith.constant 1 : index
    %c0_181 = arith.constant 0 : index
    %c0_182 = arith.constant 0 : index
    %248 = vector.load %arg7[%c1_180, %c0_181, %c0_182] : memref<3x32x32xf32, #tpu.memory_space<vmem>>, vector<1x32x32xf32>
    %249 = vector.shape_cast %248 : vector<1x32x32xf32> to vector<32x32xf32>
    %cst_183 = arith.constant dense<0.000000e+00> : vector<2x32xf32>
    %250 = tpu.matmul %244, %249, %cst_183 {dimension_numbers = #tpu.dot_dimension_numbers<[1], [0], [0], [1], [0, 0, 1, 1], [], []>} : vector<2x32xf32>, vector<32x32xf32>, vector<2x32xf32> -> vector<2x32xf32>
    %c2_184 = arith.constant 2 : index
    %c0_185 = arith.constant 0 : index
    %c0_186 = arith.constant 0 : index
    %251 = vector.load %arg7[%c2_184, %c0_185, %c0_186] : memref<3x32x32xf32, #tpu.memory_space<vmem>>, vector<1x32x32xf32>
    %252 = vector.shape_cast %251 : vector<1x32x32xf32> to vector<32x32xf32>
    %cst_187 = arith.constant dense<0.000000e+00> : vector<2x32xf32>
    %253 = tpu.matmul %244, %252, %cst_187 {dimension_numbers = #tpu.dot_dimension_numbers<[1], [0], [0], [1], [0, 0, 1, 1], [], []>} : vector<2x32xf32>, vector<32x32xf32>, vector<2x32xf32> -> vector<2x32xf32>
    %254 = arith.addf %209, %247 : vector<2x32xf32>
    %255 = vector.broadcast %203 : vector<1x32xf32> to vector<2x32xf32>
    %256 = arith.addf %254, %255 : vector<2x32xf32>
    %257 = arith.negf %256 : vector<2x32xf32>
    %258 = math.exp %257 : vector<2x32xf32>
    %cst_188 = arith.constant 1.000000e+00 : f32
    %259 = vector.broadcast %cst_188 : f32 to vector<2x32xf32>
    %260 = arith.addf %259, %258 : vector<2x32xf32>
    %261 = arith.divf %259, %260 : vector<2x32xf32>
    %262 = arith.addf %212, %250 : vector<2x32xf32>
    %263 = vector.broadcast %204 : vector<1x32xf32> to vector<2x32xf32>
    %264 = arith.addf %262, %263 : vector<2x32xf32>
    %265 = arith.negf %264 : vector<2x32xf32>
    %266 = math.exp %265 : vector<2x32xf32>
    %cst_189 = arith.constant 1.000000e+00 : f32
    %267 = vector.broadcast %cst_189 : f32 to vector<2x32xf32>
    %268 = arith.addf %267, %266 : vector<2x32xf32>
    %269 = arith.divf %267, %268 : vector<2x32xf32>
    %270 = vector.broadcast %205 : vector<1x32xf32> to vector<2x32xf32>
    %271 = arith.addf %215, %270 : vector<2x32xf32>
    %272 = vector.broadcast %206 : vector<1x32xf32> to vector<2x32xf32>
    %273 = arith.addf %253, %272 : vector<2x32xf32>
    %274 = arith.mulf %261, %273 : vector<2x32xf32>
    %275 = arith.addf %271, %274 : vector<2x32xf32>
    %276 = math.tanh %275 : vector<2x32xf32>
    %cst_190 = arith.constant 1.000000e+00 : f32
    %277 = vector.broadcast %cst_190 : f32 to vector<2x32xf32>
    %278 = arith.subf %277, %269 : vector<2x32xf32>
    %279 = arith.mulf %278, %276 : vector<2x32xf32>
    %280 = arith.mulf %269, %244 : vector<2x32xf32>
    %281 = arith.addf %279, %280 : vector<2x32xf32>
    %c0_191 = arith.constant 0 : index
    %c0_192 = arith.constant 0 : index
    %c0_193 = arith.constant 0 : index
    %282 = vector.load %arg7[%c0_191, %c0_192, %c0_193] : memref<3x32x32xf32, #tpu.memory_space<vmem>>, vector<1x32x32xf32>
    %283 = vector.shape_cast %282 : vector<1x32x32xf32> to vector<32x32xf32>
    %cst_194 = arith.constant dense<0.000000e+00> : vector<2x32xf32>
    %284 = tpu.matmul %281, %283, %cst_194 {dimension_numbers = #tpu.dot_dimension_numbers<[1], [0], [0], [1], [0, 0, 1, 1], [], []>} : vector<2x32xf32>, vector<32x32xf32>, vector<2x32xf32> -> vector<2x32xf32>
    %c1_195 = arith.constant 1 : index
    %c0_196 = arith.constant 0 : index
    %c0_197 = arith.constant 0 : index
    %285 = vector.load %arg7[%c1_195, %c0_196, %c0_197] : memref<3x32x32xf32, #tpu.memory_space<vmem>>, vector<1x32x32xf32>
    %286 = vector.shape_cast %285 : vector<1x32x32xf32> to vector<32x32xf32>
    %cst_198 = arith.constant dense<0.000000e+00> : vector<2x32xf32>
    %287 = tpu.matmul %281, %286, %cst_198 {dimension_numbers = #tpu.dot_dimension_numbers<[1], [0], [0], [1], [0, 0, 1, 1], [], []>} : vector<2x32xf32>, vector<32x32xf32>, vector<2x32xf32> -> vector<2x32xf32>
    %c2_199 = arith.constant 2 : index
    %c0_200 = arith.constant 0 : index
    %c0_201 = arith.constant 0 : index
    %288 = vector.load %arg7[%c2_199, %c0_200, %c0_201] : memref<3x32x32xf32, #tpu.memory_space<vmem>>, vector<1x32x32xf32>
    %289 = vector.shape_cast %288 : vector<1x32x32xf32> to vector<32x32xf32>
    %cst_202 = arith.constant dense<0.000000e+00> : vector<2x32xf32>
    %290 = tpu.matmul %281, %289, %cst_202 {dimension_numbers = #tpu.dot_dimension_numbers<[1], [0], [0], [1], [0, 0, 1, 1], [], []>} : vector<2x32xf32>, vector<32x32xf32>, vector<2x32xf32> -> vector<2x32xf32>
    %291 = arith.addf %218, %284 : vector<2x32xf32>
    %292 = vector.broadcast %203 : vector<1x32xf32> to vector<2x32xf32>
    %293 = arith.addf %291, %292 : vector<2x32xf32>
    %294 = arith.negf %293 : vector<2x32xf32>
    %295 = math.exp %294 : vector<2x32xf32>
    %cst_203 = arith.constant 1.000000e+00 : f32
    %296 = vector.broadcast %cst_203 : f32 to vector<2x32xf32>
    %297 = arith.addf %296, %295 : vector<2x32xf32>
    %298 = arith.divf %296, %297 : vector<2x32xf32>
    %299 = arith.addf %221, %287 : vector<2x32xf32>
    %300 = vector.broadcast %204 : vector<1x32xf32> to vector<2x32xf32>
    %301 = arith.addf %299, %300 : vector<2x32xf32>
    %302 = arith.negf %301 : vector<2x32xf32>
    %303 = math.exp %302 : vector<2x32xf32>
    %cst_204 = arith.constant 1.000000e+00 : f32
    %304 = vector.broadcast %cst_204 : f32 to vector<2x32xf32>
    %305 = arith.addf %304, %303 : vector<2x32xf32>
    %306 = arith.divf %304, %305 : vector<2x32xf32>
    %307 = vector.broadcast %205 : vector<1x32xf32> to vector<2x32xf32>
    %308 = arith.addf %224, %307 : vector<2x32xf32>
    %309 = vector.broadcast %206 : vector<1x32xf32> to vector<2x32xf32>
    %310 = arith.addf %290, %309 : vector<2x32xf32>
    %311 = arith.mulf %298, %310 : vector<2x32xf32>
    %312 = arith.addf %308, %311 : vector<2x32xf32>
    %313 = math.tanh %312 : vector<2x32xf32>
    %cst_205 = arith.constant 1.000000e+00 : f32
    %314 = vector.broadcast %cst_205 : f32 to vector<2x32xf32>
    %315 = arith.subf %314, %306 : vector<2x32xf32>
    %316 = arith.mulf %315, %313 : vector<2x32xf32>
    %317 = arith.mulf %306, %281 : vector<2x32xf32>
    %318 = arith.addf %316, %317 : vector<2x32xf32>
    %c0_206 = arith.constant 0 : index
    %c0_207 = arith.constant 0 : index
    %c0_208 = arith.constant 0 : index
    %319 = vector.load %arg7[%c0_206, %c0_207, %c0_208] : memref<3x32x32xf32, #tpu.memory_space<vmem>>, vector<1x32x32xf32>
    %320 = vector.shape_cast %319 : vector<1x32x32xf32> to vector<32x32xf32>
    %cst_209 = arith.constant dense<0.000000e+00> : vector<2x32xf32>
    %321 = tpu.matmul %318, %320, %cst_209 {dimension_numbers = #tpu.dot_dimension_numbers<[1], [0], [0], [1], [0, 0, 1, 1], [], []>} : vector<2x32xf32>, vector<32x32xf32>, vector<2x32xf32> -> vector<2x32xf32>
    %c1_210 = arith.constant 1 : index
    %c0_211 = arith.constant 0 : index
    %c0_212 = arith.constant 0 : index
    %322 = vector.load %arg7[%c1_210, %c0_211, %c0_212] : memref<3x32x32xf32, #tpu.memory_space<vmem>>, vector<1x32x32xf32>
    %323 = vector.shape_cast %322 : vector<1x32x32xf32> to vector<32x32xf32>
    %cst_213 = arith.constant dense<0.000000e+00> : vector<2x32xf32>
    %324 = tpu.matmul %318, %323, %cst_213 {dimension_numbers = #tpu.dot_dimension_numbers<[1], [0], [0], [1], [0, 0, 1, 1], [], []>} : vector<2x32xf32>, vector<32x32xf32>, vector<2x32xf32> -> vector<2x32xf32>
    %c2_214 = arith.constant 2 : index
    %c0_215 = arith.constant 0 : index
    %c0_216 = arith.constant 0 : index
    %325 = vector.load %arg7[%c2_214, %c0_215, %c0_216] : memref<3x32x32xf32, #tpu.memory_space<vmem>>, vector<1x32x32xf32>
    %326 = vector.shape_cast %325 : vector<1x32x32xf32> to vector<32x32xf32>
    %cst_217 = arith.constant dense<0.000000e+00> : vector<2x32xf32>
    %327 = tpu.matmul %318, %326, %cst_217 {dimension_numbers = #tpu.dot_dimension_numbers<[1], [0], [0], [1], [0, 0, 1, 1], [], []>} : vector<2x32xf32>, vector<32x32xf32>, vector<2x32xf32> -> vector<2x32xf32>
    %328 = arith.addf %227, %321 : vector<2x32xf32>
    %329 = vector.broadcast %203 : vector<1x32xf32> to vector<2x32xf32>
    %330 = arith.addf %328, %329 : vector<2x32xf32>
    %331 = arith.negf %330 : vector<2x32xf32>
    %332 = math.exp %331 : vector<2x32xf32>
    %cst_218 = arith.constant 1.000000e+00 : f32
    %333 = vector.broadcast %cst_218 : f32 to vector<2x32xf32>
    %334 = arith.addf %333, %332 : vector<2x32xf32>
    %335 = arith.divf %333, %334 : vector<2x32xf32>
    %336 = arith.addf %230, %324 : vector<2x32xf32>
    %337 = vector.broadcast %204 : vector<1x32xf32> to vector<2x32xf32>
    %338 = arith.addf %336, %337 : vector<2x32xf32>
    %339 = arith.negf %338 : vector<2x32xf32>
    %340 = math.exp %339 : vector<2x32xf32>
    %cst_219 = arith.constant 1.000000e+00 : f32
    %341 = vector.broadcast %cst_219 : f32 to vector<2x32xf32>
    %342 = arith.addf %341, %340 : vector<2x32xf32>
    %343 = arith.divf %341, %342 : vector<2x32xf32>
    %344 = vector.broadcast %205 : vector<1x32xf32> to vector<2x32xf32>
    %345 = arith.addf %233, %344 : vector<2x32xf32>
    %346 = vector.broadcast %206 : vector<1x32xf32> to vector<2x32xf32>
    %347 = arith.addf %327, %346 : vector<2x32xf32>
    %348 = arith.mulf %335, %347 : vector<2x32xf32>
    %349 = arith.addf %345, %348 : vector<2x32xf32>
    %350 = math.tanh %349 : vector<2x32xf32>
    %cst_220 = arith.constant 1.000000e+00 : f32
    %351 = vector.broadcast %cst_220 : f32 to vector<2x32xf32>
    %352 = arith.subf %351, %343 : vector<2x32xf32>
    %353 = arith.mulf %352, %350 : vector<2x32xf32>
    %354 = arith.mulf %343, %318 : vector<2x32xf32>
    %355 = arith.addf %353, %354 : vector<2x32xf32>
    %c0_221 = arith.constant 0 : index
    %c0_222 = arith.constant 0 : index
    %c0_223 = arith.constant 0 : index
    %356 = vector.load %arg7[%c0_221, %c0_222, %c0_223] : memref<3x32x32xf32, #tpu.memory_space<vmem>>, vector<1x32x32xf32>
    %357 = vector.shape_cast %356 : vector<1x32x32xf32> to vector<32x32xf32>
    %cst_224 = arith.constant dense<0.000000e+00> : vector<2x32xf32>
    %358 = tpu.matmul %355, %357, %cst_224 {dimension_numbers = #tpu.dot_dimension_numbers<[1], [0], [0], [1], [0, 0, 1, 1], [], []>} : vector<2x32xf32>, vector<32x32xf32>, vector<2x32xf32> -> vector<2x32xf32>
    %c1_225 = arith.constant 1 : index
    %c0_226 = arith.constant 0 : index
    %c0_227 = arith.constant 0 : index
    %359 = vector.load %arg7[%c1_225, %c0_226, %c0_227] : memref<3x32x32xf32, #tpu.memory_space<vmem>>, vector<1x32x32xf32>
    %360 = vector.shape_cast %359 : vector<1x32x32xf32> to vector<32x32xf32>
    %cst_228 = arith.constant dense<0.000000e+00> : vector<2x32xf32>
    %361 = tpu.matmul %355, %360, %cst_228 {dimension_numbers = #tpu.dot_dimension_numbers<[1], [0], [0], [1], [0, 0, 1, 1], [], []>} : vector<2x32xf32>, vector<32x32xf32>, vector<2x32xf32> -> vector<2x32xf32>
    %c2_229 = arith.constant 2 : index
    %c0_230 = arith.constant 0 : index
    %c0_231 = arith.constant 0 : index
    %362 = vector.load %arg7[%c2_229, %c0_230, %c0_231] : memref<3x32x32xf32, #tpu.memory_space<vmem>>, vector<1x32x32xf32>
    %363 = vector.shape_cast %362 : vector<1x32x32xf32> to vector<32x32xf32>
    %cst_232 = arith.constant dense<0.000000e+00> : vector<2x32xf32>
    %364 = tpu.matmul %355, %363, %cst_232 {dimension_numbers = #tpu.dot_dimension_numbers<[1], [0], [0], [1], [0, 0, 1, 1], [], []>} : vector<2x32xf32>, vector<32x32xf32>, vector<2x32xf32> -> vector<2x32xf32>
    %365 = arith.addf %236, %358 : vector<2x32xf32>
    %366 = vector.broadcast %203 : vector<1x32xf32> to vector<2x32xf32>
    %367 = arith.addf %365, %366 : vector<2x32xf32>
    %368 = arith.negf %367 : vector<2x32xf32>
    %369 = math.exp %368 : vector<2x32xf32>
    %cst_233 = arith.constant 1.000000e+00 : f32
    %370 = vector.broadcast %cst_233 : f32 to vector<2x32xf32>
    %371 = arith.addf %370, %369 : vector<2x32xf32>
    %372 = arith.divf %370, %371 : vector<2x32xf32>
    %373 = arith.addf %239, %361 : vector<2x32xf32>
    %374 = vector.broadcast %204 : vector<1x32xf32> to vector<2x32xf32>
    %375 = arith.addf %373, %374 : vector<2x32xf32>
    %376 = arith.negf %375 : vector<2x32xf32>
    %377 = math.exp %376 : vector<2x32xf32>
    %cst_234 = arith.constant 1.000000e+00 : f32
    %378 = vector.broadcast %cst_234 : f32 to vector<2x32xf32>
    %379 = arith.addf %378, %377 : vector<2x32xf32>
    %380 = arith.divf %378, %379 : vector<2x32xf32>
    %381 = vector.broadcast %205 : vector<1x32xf32> to vector<2x32xf32>
    %382 = arith.addf %242, %381 : vector<2x32xf32>
    %383 = vector.broadcast %206 : vector<1x32xf32> to vector<2x32xf32>
    %384 = arith.addf %364, %383 : vector<2x32xf32>
    %385 = arith.mulf %372, %384 : vector<2x32xf32>
    %386 = arith.addf %382, %385 : vector<2x32xf32>
    %387 = math.tanh %386 : vector<2x32xf32>
    %cst_235 = arith.constant 1.000000e+00 : f32
    %388 = vector.broadcast %cst_235 : f32 to vector<2x32xf32>
    %389 = arith.subf %388, %380 : vector<2x32xf32>
    %390 = arith.mulf %389, %387 : vector<2x32xf32>
    %391 = arith.mulf %380, %355 : vector<2x32xf32>
    %392 = arith.addf %390, %391 : vector<2x32xf32>
    %c1_236 = arith.constant 1 : index
    %c0_237 = arith.constant 0 : index
    %c0_238 = arith.constant 0 : index
    %393 = vector.load %arg12[%c1_236, %c0_237, %c0_238] : memref<2x2x32xf32, #tpu.memory_space<vmem>>, vector<1x2x32xf32>
    %394 = vector.shape_cast %393 : vector<1x2x32xf32> to vector<2x32xf32>
    %395 = vector.shape_cast %392 : vector<2x32xf32> to vector<1x2x32xf32>
    tpu.vector_store %arg12[%c1_236, %c0_237, %c0_238], %395 {strides = array<i32>} : memref<2x2x32xf32, #tpu.memory_space<vmem>>, vector<1x2x32xf32>,
    %c0_239 = arith.constant 0 : index
    %c0_240 = arith.constant 0 : index
    %396 = vector.load %arg9[%c0_239, %c0_240] : memref<32x64xf32, #tpu.memory_space<vmem>>, vector<32x64xf32>
    %cst_241 = arith.constant dense<0.000000e+00> : vector<2x64xf32>
    %397 = tpu.matmul %281, %396, %cst_241 {dimension_numbers = #tpu.dot_dimension_numbers<[1], [0], [0], [1], [0, 0, 1, 1], [], []>} : vector<2x32xf32>, vector<32x64xf32>, vector<2x64xf32> -> vector<2x64xf32>
    %c0_242 = arith.constant 0 : index
    %c0_243 = arith.constant 0 : index
    %398 = vector.load %arg10[%c0_242, %c0_243] : memref<1x64xf32, #tpu.memory_space<vmem>>, vector<1x64xf32>
    %399 = vector.broadcast %398 : vector<1x64xf32> to vector<2x64xf32>
    %400 = arith.addf %397, %399 : vector<2x64xf32>
    %cst_244 = arith.constant dense<0xFF800000> : vector<2xf32>
    %401 = vector.multi_reduction <maximumf>, %400, %cst_244 [1] : vector<2x64xf32> to vector<2xf32>
    %402 = vector.shape_cast %401 : vector<2xf32> to vector<2x1xf32>
    %403 = vector.broadcast %402 : vector<2x1xf32> to vector<2x64xf32>
    %404 = arith.subf %400, %403 : vector<2x64xf32>
    %405 = math.exp %404 : vector<2x64xf32>
    %cst_245 = arith.constant dense<0.000000e+00> : vector<2xf32>
    %406 = vector.multi_reduction <add>, %405, %cst_245 [1] : vector<2x64xf32> to vector<2xf32>
    %407 = vector.shape_cast %406 : vector<2xf32> to vector<2x1xf32>
    %408 = math.log %407 : vector<2x1xf32>
    %409 = vector.broadcast %408 : vector<2x1xf32> to vector<2x64xf32>
    %410 = arith.subf %404, %409 : vector<2x64xf32>
    %c0_246 = arith.constant 0 : index
    %c0_247 = arith.constant 0 : index
    %411 = vector.load %arg11[%c0_246, %c0_247] : memref<2x64xf32, #tpu.memory_space<vmem>>, vector<2x64xf32>
    tpu.vector_store %arg11[%c0_246, %c0_247], %410 {strides = array<i32>} : memref<2x64xf32, #tpu.memory_space<vmem>>, vector<2x64xf32>,
    return
  }
  func.func @transform_0(%arg0: i32) -> (i32, i32, i32) {
    %c0_i32 = arith.constant 0 : i32
    %c0_i32_0 = arith.constant 0 : i32
    %c0_i32_1 = arith.constant 0 : i32
    %c0_i32_2 = arith.constant 0 : i32
    return %c0_i32, %c0_i32_0, %c0_i32_1 : i32, i32, i32
  }
  func.func @transform_1(%arg0: i32) -> (i32, i32, i32) {
    %c0_i32 = arith.constant 0 : i32
    %c0_i32_0 = arith.constant 0 : i32
    %c0_i32_1 = arith.constant 0 : i32
    %c0_i32_2 = arith.constant 0 : i32
    return %c0_i32, %c0_i32_0, %c0_i32_1 : i32, i32, i32
  }
  func.func @transform_2(%arg0: i32) -> (i32, i32, i32) {
    %c0_i32 = arith.constant 0 : i32
    %c0_i32_0 = arith.constant 0 : i32
    %c0_i32_1 = arith.constant 0 : i32
    %c0_i32_2 = arith.constant 0 : i32
    return %c0_i32, %c0_i32_0, %c0_i32_1 : i32, i32, i32
  }
  func.func @transform_3(%arg0: i32) -> (i32, i32, i32) {
    %c0_i32 = arith.constant 0 : i32
    %c0_i32_0 = arith.constant 0 : i32
    %c0_i32_1 = arith.constant 0 : i32
    %c0_i32_2 = arith.constant 0 : i32
    return %c0_i32, %c0_i32_0, %c0_i32_1 : i32, i32, i32
  }
  func.func @transform_4(%arg0: i32) -> (i32, i32) {
    %c0_i32 = arith.constant 0 : i32
    %c0_i32_0 = arith.constant 0 : i32
    %c0_i32_1 = arith.constant 0 : i32
    return %c0_i32, %c0_i32_0 : i32, i32
  }
  func.func @transform_5(%arg0: i32) -> (i32, i32, i32) {
    %c0_i32 = arith.constant 0 : i32
    %c0_i32_0 = arith.constant 0 : i32
    %c0_i32_1 = arith.constant 0 : i32
    %c0_i32_2 = arith.constant 0 : i32
    return %c0_i32, %c0_i32_0, %c0_i32_1 : i32, i32, i32
  }
  func.func @transform_6(%arg0: i32) -> (i32, i32, i32) {
    %c0_i32 = arith.constant 0 : i32
    %c0_i32_0 = arith.constant 0 : i32
    %c0_i32_1 = arith.constant 0 : i32
    %c0_i32_2 = arith.constant 0 : i32
    return %c0_i32, %c0_i32_0, %c0_i32_1 : i32, i32, i32
  }
  func.func @transform_7(%arg0: i32) -> (i32, i32) {
    %c0_i32 = arith.constant 0 : i32
    %c0_i32_0 = arith.constant 0 : i32
    %c0_i32_1 = arith.constant 0 : i32
    return %c0_i32, %c0_i32_0 : i32, i32
  }
  func.func @transform_8(%arg0: i32) -> (i32, i32) {
    %c0_i32 = arith.constant 0 : i32
    %c0_i32_0 = arith.constant 0 : i32
    %c0_i32_1 = arith.constant 0 : i32
    return %c0_i32, %c0_i32_0 : i32, i32
  }
  func.func @transform_9(%arg0: i32) -> (i32, i32) {
    %c0_i32 = arith.constant 0 : i32
    %c0_i32_0 = arith.constant 0 : i32
    %c0_i32_1 = arith.constant 0 : i32
    return %c0_i32, %c0_i32_0 : i32, i32
  }
  func.func @transform_10(%arg0: i32) -> (i32, i32) {
    %c0_i32 = arith.constant 0 : i32
    %c0_i32_0 = arith.constant 0 : i32
    %c0_i32_1 = arith.constant 0 : i32
    return %c0_i32, %c0_i32_0 : i32, i32
  }
  func.func @transform_11(%arg0: i32) -> (i32, i32, i32) {
    %c0_i32 = arith.constant 0 : i32
    %c0_i32_0 = arith.constant 0 : i32
    %c0_i32_1 = arith.constant 0 : i32
    %c0_i32_2 = arith.constant 0 : i32
    return %c0_i32, %c0_i32_0, %c0_i32_1 : i32, i32, i32
  }
}

</mosaic_0001>

<llo_original>
// kernel: decoder_gru_forward.1
$region0: #{decoder_gru_forward.1}
  #allocation0 [shape = 'u32[]', space=smem, size = 0x4, offset = 0x4, fixed_abs, tag = 'smem constant byte address 0x4 - core index']
  #allocation1 [shape = 'u32[144,128]{1,0:T(1,128)}', space=vmem, size = 0x12000, scoped, tag = 'internal scratch']
  %s0 = inlined_call_operand.vmem [shape: f32[4,2,32], index: 0, kind: input, shape index: {}]
  %s1 = inlined_call_operand.vmem [shape: f32[2,2,32], index: 1, kind: input, shape index: {}]
  %s2 = inlined_call_operand.vmem [shape: f32[3,32,32], index: 2, kind: input, shape index: {}]
  %s3 = inlined_call_operand.vmem [shape: f32[3,32,32], index: 3, kind: input, shape index: {}]
  %s4 = inlined_call_operand.vmem [shape: f32[4,32], index: 4, kind: input, shape index: {}]
  %s5 = inlined_call_operand.vmem [shape: f32[3,32,32], index: 5, kind: input, shape index: {}]
  %s6 = inlined_call_operand.vmem [shape: f32[3,32,32], index: 6, kind: input, shape index: {}]
  %s7 = inlined_call_operand.vmem [shape: f32[4,32], index: 7, kind: input, shape index: {}]
  %s8 = inlined_call_operand.vmem [shape: f32[32,64], index: 8, kind: input, shape index: {}]
  %s9 = inlined_call_operand.vmem [shape: f32[1,64], index: 9, kind: input, shape index: {}]
  %s10 = inlined_call_operand.hbm [shape: f32[2,64], index: 10, kind: output, shape index: {0}]
  %s11 = inlined_call_operand.hbm [shape: f32[2,2,32], index: 11, kind: output, shape index: {1}]
  %12 = xla_tuple %s10, %s11
  %s13 = sld [smem:[#allocation0]]
  $region58: #{decoder_gru_forward.1} parent=0
    _
  %s15 = ssub.s32 1, %s13
  %s16 = scalar_select 0, %s15, %s13
  $region1: #{decoder_gru_forward.1} parent=0
    #allocation2 [shape = 'u8[1024]{0}', space=vmem, size = 0x400, scoped, tag = 'output window, operand 0, single buffered']
    #allocation3 [shape = 's32[1]{0}', space=sflag, size = 0x4, scoped, tag = 'scoped memory for decoder_gru_forward.1']
    #allocation4 [shape = 'u8[2048]{0}', space=vmem, size = 0x800, scoped, tag = 'output window, operand 1, single buffered']
    #allocation5 [shape = 's32[1]{0}', space=sflag, size = 0x4, scoped, tag = 'scoped memory for decoder_gru_forward.1']
    %17 = vsyncpa [#allocation3], 0
    %18 = vsyncpa [#allocation5], 0
    // Predicated region
    $region2: #{decoder_gru_forward.1} parent=1 // pred_check
      _
    $region3: #{decoder_gru_forward.1} parent=1 // pred_check_branch
      %20 = sbr.rel (0) target = $region5
    $region4: #{decoder_gru_forward.1} parent=1 // pred_region
      _
    $region5: #{decoder_gru_forward.1} parent=1 // pred_fallthru
      _
    // Predicated region
    $region6: #{decoder_gru_forward.1} parent=1 // pred_check
      _
    $region7: #{decoder_gru_forward.1} parent=1 // pred_check_branch
      %22 = sbr.rel (0) target = $region9
    $region8: #{decoder_gru_forward.1} parent=1 // pred_region
      _
    $region9: #{decoder_gru_forward.1} parent=1 // pred_fallthru
      _
    // Predicated region
    $region10: #{decoder_gru_forward.1} parent=1 // pred_check
      _
    $region11: #{decoder_gru_forward.1} parent=1 // pred_check_branch
      %24 = sbr.rel (0) target = $region13
    $region12: #{decoder_gru_forward.1} parent=1 // pred_region
      _
    $region13: #{decoder_gru_forward.1} parent=1 // pred_fallthru
      _
    // Predicated region
    $region14: #{decoder_gru_forward.1} parent=1 // pred_check
      _
    $region15: #{decoder_gru_forward.1} parent=1 // pred_check_branch
      %26 = sbr.rel (0) target = $region17
    $region16: #{decoder_gru_forward.1} parent=1 // pred_region
      _
    $region17: #{decoder_gru_forward.1} parent=1 // pred_fallthru
      _
    // Predicated region
    $region18: #{decoder_gru_forward.1} parent=1 // pred_check
      _
    $region19: #{decoder_gru_forward.1} parent=1 // pred_check_branch
      %28 = sbr.rel (0) target = $region21
    $region20: #{decoder_gru_forward.1} parent=1 // pred_region
      _
    $region21: #{decoder_gru_forward.1} parent=1 // pred_fallthru
      _
    // Predicated region
    $region22: #{decoder_gru_forward.1} parent=1 // pred_check
      _
    $region23: #{decoder_gru_forward.1} parent=1 // pred_check_branch
      %30 = sbr.rel (0) target = $region25
    $region24: #{decoder_gru_forward.1} parent=1 // pred_region
      _
    $region25: #{decoder_gru_forward.1} parent=1 // pred_fallthru
      _
    // Predicated region
    $region26: #{decoder_gru_forward.1} parent=1 // pred_check
      _
    $region27: #{decoder_gru_forward.1} parent=1 // pred_check_branch
      %32 = sbr.rel (0) target = $region29
    $region28: #{decoder_gru_forward.1} parent=1 // pred_region
      _
    $region29: #{decoder_gru_forward.1} parent=1 // pred_fallthru
      _
    // Predicated region
    $region30: #{decoder_gru_forward.1} parent=1 // pred_check
      _
    $region31: #{decoder_gru_forward.1} parent=1 // pred_check_branch
      %34 = sbr.rel (0) target = $region33
    $region32: #{decoder_gru_forward.1} parent=1 // pred_region
      _
    $region33: #{decoder_gru_forward.1} parent=1 // pred_fallthru
      _
    // Predicated region
    $region34: #{decoder_gru_forward.1} parent=1 // pred_check
      _
    $region35: #{decoder_gru_forward.1} parent=1 // pred_check_branch
      %36 = sbr.rel (0) target = $region37
    $region36: #{decoder_gru_forward.1} parent=1 // pred_region
      _
    $region37: #{decoder_gru_forward.1} parent=1 // pred_fallthru
      _
    // Predicated region
    $region38: #{decoder_gru_forward.1} parent=1 // pred_check
      _
    $region39: #{decoder_gru_forward.1} parent=1 // pred_check_branch
      %38 = sbr.rel (0) target = $region41
    $region40: #{decoder_gru_forward.1} parent=1 // pred_region
      _
    $region41: #{decoder_gru_forward.1} parent=1 // pred_fallthru
      _
    %v39 = vld [vmem:[%s0] sm:$0x3]
    %s40 = scalar_lea.vmem %s0, 2
    %v41 = vld [vmem:[%s40] sm:$0x3]
    %s42 = scalar_lea.vmem %s0, 4
    %v43 = vld [vmem:[%s42] sm:$0x3]
    %s44 = scalar_lea.vmem %s0, 6
    %v45 = vld [vmem:[%s44] sm:$0x3]
    %v46 = vld [vmem:[%s4] sm:$0xf]
    %v47 = vld [vmem:[%s2] sm:$0xff]
    %v48 = vld [vmem:[%s2 + $0x8] sm:$0xff]
    %v49 = vld [vmem:[%s2 + $0x10] sm:$0xff]
    %v50 = vld [vmem:[%s2 + $0x18] sm:$0xff]
    %s51 = scalar_lea.vmem %s2, 32
    %v52 = vld [vmem:[%s51] sm:$0xff]
    %v53 = vld [vmem:[%s51 + $0x8] sm:$0xff]
    %v54 = vld [vmem:[%s51 + $0x10] sm:$0xff]
    %v55 = vld [vmem:[%s51 + $0x18] sm:$0xff]
    %s56 = scalar_lea.vmem %s2, 64
    %v57 = vld [vmem:[%s56] sm:$0xff]
    %v58 = vld [vmem:[%s56 + $0x8] sm:$0xff]
    %v59 = vld [vmem:[%s56 + $0x10] sm:$0xff]
    %v60 = vld [vmem:[%s56 + $0x18] sm:$0xff]
    %v61 = vld [vmem:[%s1] sm:$0x3]
    %v62 = vld [vmem:[%s3] sm:$0xff]
    %v63 = vld [vmem:[%s3 + $0x8] sm:$0xff]
    %v64 = vld [vmem:[%s3 + $0x10] sm:$0xff]
    %v65 = vld [vmem:[%s3 + $0x18] sm:$0xff]
    %vm66 = vcmask 261120
    %v68 = vsel %vm66, %v61, 0
    %70 = vmatprep.subr.mxu0 0.0
    %71 = vmatpush1.msra.mxu0 0.0
    %72 = vmatprep.subr.mxu0 0.0
    %73 = vmatpush1.msra.mxu0 0.0
    %74 = vmatprep.subr.mxu0 0.0
    %75 = vmatpush1.msra.mxu0 0.0
    %76 = vmatprep.subr.mxu0 0.0
    %77 = vmatpush1.msra.mxu0 0.0
    %78 = vmatprep.subr.mxu0 0.0
    %79 = vmatpush1.msra.mxu0 0.0
    %80 = vmatprep.subr.mxu0 0.0
    %81 = vmatpush1.msra.mxu0 0.0
    %82 = vmatprep.subr.mxu0 0.0
    %83 = vmatpush1.msra.mxu0 0.0
    %84 = vmatprep.subr.mxu0 0.0
    %85 = vmatpush1.msra.mxu0 0.0
    %86 = vmatprep.subr.mxu0 0.0
    %87 = vmatpush1.msra.mxu0 0.0
    %88 = vmatprep.subr.mxu0 0.0
    %89 = vmatpush1.msra.mxu0 0.0
    %90 = vmatprep.subr.mxu0 0.0
    %91 = vmatpush1.msra.mxu0 0.0
    %92 = vmatprep.subr.mxu0 0.0
    %93 = vmatpush1.msra.mxu0 0.0
    %94 = vmatprep.subr.mxu0 0.0
    %95 = vmatpush1.msra.mxu0 %v65
    %96 = vmatprep.subr.mxu0 0.0
    %97 = vmatpush1.msra.mxu0 %v64
    %98 = vmatprep.subr.mxu0 0.0
    %99 = vmatpush1.msra.mxu0 %v63
    %100 = vmatprep.subr.mxu0 0.0
    %101 = vmatpush1.msra.mxu0 %v62
    %102 = vmatprep.subr.mxu0 0.0
    %103 = vmatpush2.msra.mxu0 0.0
    %104 = vmatprep.subr.mxu0 0.0
    %105 = vmatpush2.msra.mxu0 0.0
    %106 = vmatprep.subr.mxu0 0.0
    %107 = vmatpush2.msra.mxu0 0.0
    %108 = vmatprep.subr.mxu0 0.0
    %109 = vmatpush2.msra.mxu0 0.0
    %110 = vmatprep.subr.mxu0 0.0
    %111 = vmatpush2.msra.mxu0 0.0
    %112 = vmatprep.subr.mxu0 0.0
    %113 = vmatpush2.msra.mxu0 0.0
    %114 = vmatprep.subr.mxu0 0.0
    %115 = vmatpush2.msra.mxu0 0.0
    %116 = vmatprep.subr.mxu0 0.0
    %117 = vmatpush2.msra.mxu0 0.0
    %118 = vmatprep.subr.mxu0 0.0
    %119 = vmatpush2.msra.mxu0 0.0
    %120 = vmatprep.subr.mxu0 0.0
    %121 = vmatpush2.msra.mxu0 0.0
    %122 = vmatprep.subr.mxu0 0.0
    %123 = vmatpush2.msra.mxu0 0.0
    %124 = vmatprep.subr.mxu0 0.0
    %125 = vmatpush2.msra.mxu0 0.0
    %126 = vmatprep.subr.mxu0 0.0
    %127 = vmatpush2.msra.mxu0 0.0
    %128 = vmatprep.subr.mxu0 0.0
    %129 = vmatpush2.msra.mxu0 0.0
    %130 = vmatprep.subr.mxu0 0.0
    %131 = vmatpush2.msra.mxu0 0.0
    %132 = vmatprep.subr.mxu0 0.0
    %133 = vmatpush2.msra.mxu0 0.0
    %134 = vmatprep.mubr.f32.mxu0 0.0
    %135 = vmatmul.mubr.f32.gmra.mxu0 %v68
    %v136 = vpop.f32.mrf.mxu0
    %v137 = vadd.f32 0.0, %v136
    %v138 = vpop.f32.mrf.mxu0
    %139 = vdwg.mxu0
    %s140 = scalar_lea.vmem %s3, 32
    %v141 = vld [vmem:[%s140] sm:$0xff]
    %v142 = vld [vmem:[%s140 + $0x8] sm:$0xff]
    %v143 = vld [vmem:[%s140 + $0x10] sm:$0xff]
    %v144 = vld [vmem:[%s140 + $0x18] sm:$0xff]
    %145 = vmatprep.subr.mxu0 0.0
    %146 = vmatpush1.msra.mxu0 0.0
    %147 = vmatprep.subr.mxu0 0.0
    %148 = vmatpush1.msra.mxu0 0.0
    %149 = vmatprep.subr.mxu0 0.0
    %150 = vmatpush1.msra.mxu0 0.0
    %151 = vmatprep.subr.mxu0 0.0
    %152 = vmatpush1.msra.mxu0 0.0
    %153 = vmatprep.subr.mxu0 0.0
    %154 = vmatpush1.msra.mxu0 0.0
    %155 = vmatprep.subr.mxu0 0.0
    %156 = vmatpush1.msra.mxu0 0.0
    %157 = vmatprep.subr.mxu0 0.0
    %158 = vmatpush1.msra.mxu0 0.0
    %159 = vmatprep.subr.mxu0 0.0
    %160 = vmatpush1.msra.mxu0 0.0
    %161 = vmatprep.subr.mxu0 0.0
    %162 = vmatpush1.msra.mxu0 0.0
    %163 = vmatprep.subr.mxu0 0.0
    %164 = vmatpush1.msra.mxu0 0.0
    %165 = vmatprep.subr.mxu0 0.0
    %166 = vmatpush1.msra.mxu0 0.0
    %167 = vmatprep.subr.mxu0 0.0
    %168 = vmatpush1.msra.mxu0 0.0
    %169 = vmatprep.subr.mxu0 0.0
    %170 = vmatpush1.msra.mxu0 %v144
    %171 = vmatprep.subr.mxu0 0.0
    %172 = vmatpush1.msra.mxu0 %v143
    %173 = vmatprep.subr.mxu0 0.0
    %174 = vmatpush1.msra.mxu0 %v142
    %175 = vmatprep.subr.mxu0 0.0
    %176 = vmatpush1.msra.mxu0 %v141
    %177 = vmatprep.subr.mxu0 0.0
    %178 = vmatpush2.msra.mxu0 0.0
    %179 = vmatprep.subr.mxu0 0.0
    %180 = vmatpush2.msra.mxu0 0.0
    %181 = vmatprep.subr.mxu0 0.0
    %182 = vmatpush2.msra.mxu0 0.0
    %183 = vmatprep.subr.mxu0 0.0
    %184 = vmatpush2.msra.mxu0 0.0
    %185 = vmatprep.subr.mxu0 0.0
    %186 = vmatpush2.msra.mxu0 0.0
    %187 = vmatprep.subr.mxu0 0.0
    %188 = vmatpush2.msra.mxu0 0.0
    %189 = vmatprep.subr.mxu0 0.0
    %190 = vmatpush2.msra.mxu0 0.0
    %191 = vmatprep.subr.mxu0 0.0
    %192 = vmatpush2.msra.mxu0 0.0
    %193 = vmatprep.subr.mxu0 0.0
    %194 = vmatpush2.msra.mxu0 0.0
    %195 = vmatprep.subr.mxu0 0.0
    %196 = vmatpush2.msra.mxu0 0.0
    %197 = vmatprep.subr.mxu0 0.0
    %198 = vmatpush2.msra.mxu0 0.0
    %199 = vmatprep.subr.mxu0 0.0
    %200 = vmatpush2.msra.mxu0 0.0
    %201 = vmatprep.subr.mxu0 0.0
    %202 = vmatpush2.msra.mxu0 0.0
    %203 = vmatprep.subr.mxu0 0.0
    %204 = vmatpush2.msra.mxu0 0.0
    %205 = vmatprep.subr.mxu0 0.0
    %206 = vmatpush2.msra.mxu0 0.0
    %207 = vmatprep.subr.mxu0 0.0
    %208 = vmatpush2.msra.mxu0 0.0
    %209 = vmatprep.mubr.f32.mxu0 0.0
    %210 = vmatmul.mubr.f32.gmra.mxu0 %v68
    %v211 = vpop.f32.mrf.mxu0
    %v212 = vadd.f32 0.0, %v211
    %v213 = vpop.f32.mrf.mxu0
    %214 = vdwg.mxu0
    %s215 = scalar_lea.vmem %s3, 64
    %v216 = vld [vmem:[%s215] sm:$0xff]
    %v217 = vld [vmem:[%s215 + $0x8] sm:$0xff]
    %v218 = vld [vmem:[%s215 + $0x10] sm:$0xff]
    %v219 = vld [vmem:[%s215 + $0x18] sm:$0xff]
    %v221 = vsel %vm66, %v39, 0
    %223 = vmatprep.subr.mxu0 0.0
    %224 = vmatpush1.msra.mxu0 0.0
    %225 = vmatprep.subr.mxu0 0.0
    %226 = vmatpush1.msra.mxu0 0.0
    %227 = vmatprep.subr.mxu0 0.0
    %228 = vmatpush1.msra.mxu0 0.0
    %229 = vmatprep.subr.mxu0 0.0
    %230 = vmatpush1.msra.mxu0 0.0
    %231 = vmatprep.subr.mxu0 0.0
    %232 = vmatpush1.msra.mxu0 0.0
    %233 = vmatprep.subr.mxu0 0.0
    %234 = vmatpush1.msra.mxu0 0.0
    %235 = vmatprep.subr.mxu0 0.0
    %236 = vmatpush1.msra.mxu0 0.0
    %237 = vmatprep.subr.mxu0 0.0
    %238 = vmatpush1.msra.mxu0 0.0
    %239 = vmatprep.subr.mxu0 0.0
    %240 = vmatpush1.msra.mxu0 0.0
    %241 = vmatprep.subr.mxu0 0.0
    %242 = vmatpush1.msra.mxu0 0.0
    %243 = vmatprep.subr.mxu0 0.0
    %244 = vmatpush1.msra.mxu0 0.0
    %245 = vmatprep.subr.mxu0 0.0
    %246 = vmatpush1.msra.mxu0 0.0
    %247 = vmatprep.subr.mxu0 0.0
    %248 = vmatpush1.msra.mxu0 %v50
    %249 = vmatprep.subr.mxu0 0.0
    %250 = vmatpush1.msra.mxu0 %v49
    %251 = vmatprep.subr.mxu0 0.0
    %252 = vmatpush1.msra.mxu0 %v48
    %253 = vmatprep.subr.mxu0 0.0
    %254 = vmatpush1.msra.mxu0 %v47
    %255 = vmatprep.subr.mxu0 0.0
    %256 = vmatpush2.msra.mxu0 0.0
    %257 = vmatprep.subr.mxu0 0.0
    %258 = vmatpush2.msra.mxu0 0.0
    %259 = vmatprep.subr.mxu0 0.0
    %260 = vmatpush2.msra.mxu0 0.0
    %261 = vmatprep.subr.mxu0 0.0
    %262 = vmatpush2.msra.mxu0 0.0
    %263 = vmatprep.subr.mxu0 0.0
    %264 = vmatpush2.msra.mxu0 0.0
    %265 = vmatprep.subr.mxu0 0.0
    %266 = vmatpush2.msra.mxu0 0.0
    %267 = vmatprep.subr.mxu0 0.0
    %268 = vmatpush2.msra.mxu0 0.0
    %269 = vmatprep.subr.mxu0 0.0
    %270 = vmatpush2.msra.mxu0 0.0
    %271 = vmatprep.subr.mxu0 0.0
    %272 = vmatpush2.msra.mxu0 0.0
    %273 = vmatprep.subr.mxu0 0.0
    %274 = vmatpush2.msra.mxu0 0.0
    %275 = vmatprep.subr.mxu0 0.0
    %276 = vmatpush2.msra.mxu0 0.0
    %277 = vmatprep.subr.mxu0 0.0
    %278 = vmatpush2.msra.mxu0 0.0
    %279 = vmatprep.subr.mxu0 0.0
    %280 = vmatpush2.msra.mxu0 0.0
    %281 = vmatprep.subr.mxu0 0.0
    %282 = vmatpush2.msra.mxu0 0.0
    %283 = vmatprep.subr.mxu0 0.0
    %284 = vmatpush2.msra.mxu0 0.0
    %285 = vmatprep.subr.mxu0 0.0
    %286 = vmatpush2.msra.mxu0 0.0
    %287 = vmatprep.mubr.f32.mxu0 0.0
    %288 = vmatmul.mubr.f32.gmra.mxu0 %v221
    %v289 = vpop.f32.mrf.mxu0
    %v290 = vadd.f32 %v137, %v289
    %v291 = vpop.f32.mrf.mxu0
    %292 = vdwg.mxu0
    %v293 = vlaneseq
    %v294 = vshrl.u32 %v293, 7
    %v295 = vsub.s32 0, %v294
    %v296 = vrot.slane %v46, %v295
    %v297 = vadd.f32 %v290, %v296
    %v298 = vxor.u32 %v297, 2147483648
    %v299 = vmul.f32 %v298, 1.442695
    %v300 = vpow.pop %v299
    %v301 = vadd.f32 %v300, 1.0
    %v302 = vrcp.pop %v301
    %v303 = vmul.f32 1.0, %v302
    %304 = vmatprep.subr.mxu0 0.0
    %305 = vmatpush1.msra.mxu0 0.0
    %306 = vmatprep.subr.mxu0 0.0
    %307 = vmatpush1.msra.mxu0 0.0
    %308 = vmatprep.subr.mxu0 0.0
    %309 = vmatpush1.msra.mxu0 0.0
    %310 = vmatprep.subr.mxu0 0.0
    %311 = vmatpush1.msra.mxu0 0.0
    %312 = vmatprep.subr.mxu0 0.0
    %313 = vmatpush1.msra.mxu0 0.0
    %314 = vmatprep.subr.mxu0 0.0
    %315 = vmatpush1.msra.mxu0 0.0
    %316 = vmatprep.subr.mxu0 0.0
    %317 = vmatpush1.msra.mxu0 0.0
    %318 = vmatprep.subr.mxu0 0.0
    %319 = vmatpush1.msra.mxu0 0.0
    %320 = vmatprep.subr.mxu0 0.0
    %321 = vmatpush1.msra.mxu0 0.0
    %322 = vmatprep.subr.mxu0 0.0
    %323 = vmatpush1.msra.mxu0 0.0
    %324 = vmatprep.subr.mxu0 0.0
    %325 = vmatpush1.msra.mxu0 0.0
    %326 = vmatprep.subr.mxu0 0.0
    %327 = vmatpush1.msra.mxu0 0.0
    %328 = vmatprep.subr.mxu0 0.0
    %329 = vmatpush1.msra.mxu0 %v55
    %330 = vmatprep.subr.mxu0 0.0
    %331 = vmatpush1.msra.mxu0 %v54
    %332 = vmatprep.subr.mxu0 0.0
    %333 = vmatpush1.msra.mxu0 %v53
    %334 = vmatprep.subr.mxu0 0.0
    %335 = vmatpush1.msra.mxu0 %v52
    %336 = vmatprep.subr.mxu0 0.0
    %337 = vmatpush2.msra.mxu0 0.0
    %338 = vmatprep.subr.mxu0 0.0
    %339 = vmatpush2.msra.mxu0 0.0
    %340 = vmatprep.subr.mxu0 0.0
    %341 = vmatpush2.msra.mxu0 0.0
    %342 = vmatprep.subr.mxu0 0.0
    %343 = vmatpush2.msra.mxu0 0.0
    %344 = vmatprep.subr.mxu0 0.0
    %345 = vmatpush2.msra.mxu0 0.0
    %346 = vmatprep.subr.mxu0 0.0
    %347 = vmatpush2.msra.mxu0 0.0
    %348 = vmatprep.subr.mxu0 0.0
    %349 = vmatpush2.msra.mxu0 0.0
    %350 = vmatprep.subr.mxu0 0.0
    %351 = vmatpush2.msra.mxu0 0.0
    %352 = vmatprep.subr.mxu0 0.0
    %353 = vmatpush2.msra.mxu0 0.0
    %354 = vmatprep.subr.mxu0 0.0
    %355 = vmatpush2.msra.mxu0 0.0
    %356 = vmatprep.subr.mxu0 0.0
    %357 = vmatpush2.msra.mxu0 0.0
    %358 = vmatprep.subr.mxu0 0.0
    %359 = vmatpush2.msra.mxu0 0.0
    %360 = vmatprep.subr.mxu0 0.0
    %361 = vmatpush2.msra.mxu0 0.0
    %362 = vmatprep.subr.mxu0 0.0
    %363 = vmatpush2.msra.mxu0 0.0
    %364 = vmatprep.subr.mxu0 0.0
    %365 = vmatpush2.msra.mxu0 0.0
    %366 = vmatprep.subr.mxu0 0.0
    %367 = vmatpush2.msra.mxu0 0.0
    %368 = vmatprep.mubr.f32.mxu0 0.0
    %369 = vmatmul.mubr.f32.gmra.mxu0 %v221
    %v370 = vpop.f32.mrf.mxu0
    %v371 = vadd.f32 %v212, %v370
    %v372 = vpop.f32.mrf.mxu0
    %373 = vdwg.mxu0
    %v374 = vlaneseq
    %v375 = vshrl.u32 %v374, 7
    %v376 = vsub.s32 1, %v375
    %v377 = vrot.slane %v46, %v376
    %v378 = vadd.f32 %v371, %v377
    %v379 = vxor.u32 %v378, 2147483648
    %v380 = vmul.f32 %v379, 1.442695
    %v381 = vpow.pop %v380
    %v382 = vadd.f32 %v381, 1.0
    %v383 = vrcp.pop %v382
    %v384 = vmul.f32 1.0, %v383
    %v385 = vlaneseq
    %v386 = vshrl.u32 %v385, 7
    %v387 = vsub.s32 2, %v386
    %v388 = vrot.slane %v46, %v387
    %389 = vmatprep.subr.mxu0 0.0
    %390 = vmatpush1.msra.mxu0 0.0
    %391 = vmatprep.subr.mxu0 0.0
    %392 = vmatpush1.msra.mxu0 0.0
    %393 = vmatprep.subr.mxu0 0.0
    %394 = vmatpush1.msra.mxu0 0.0
    %395 = vmatprep.subr.mxu0 0.0
    %396 = vmatpush1.msra.mxu0 0.0
    %397 = vmatprep.subr.mxu0 0.0
    %398 = vmatpush1.msra.mxu0 0.0
    %399 = vmatprep.subr.mxu0 0.0
    %400 = vmatpush1.msra.mxu0 0.0
    %401 = vmatprep.subr.mxu0 0.0
    %402 = vmatpush1.msra.mxu0 0.0
    %403 = vmatprep.subr.mxu0 0.0
    %404 = vmatpush1.msra.mxu0 0.0
    %405 = vmatprep.subr.mxu0 0.0
    %406 = vmatpush1.msra.mxu0 0.0
    %407 = vmatprep.subr.mxu0 0.0
    %408 = vmatpush1.msra.mxu0 0.0
    %409 = vmatprep.subr.mxu0 0.0
    %410 = vmatpush1.msra.mxu0 0.0
    %411 = vmatprep.subr.mxu0 0.0
    %412 = vmatpush1.msra.mxu0 0.0
    %413 = vmatprep.subr.mxu0 0.0
    %414 = vmatpush1.msra.mxu0 %v60
    %415 = vmatprep.subr.mxu0 0.0
    %416 = vmatpush1.msra.mxu0 %v59
    %417 = vmatprep.subr.mxu0 0.0
    %418 = vmatpush1.msra.mxu0 %v58
    %419 = vmatprep.subr.mxu0 0.0
    %420 = vmatpush1.msra.mxu0 %v57
    %421 = vmatprep.subr.mxu0 0.0
    %422 = vmatpush2.msra.mxu0 0.0
    %423 = vmatprep.subr.mxu0 0.0
    %424 = vmatpush2.msra.mxu0 0.0
    %425 = vmatprep.subr.mxu0 0.0
    %426 = vmatpush2.msra.mxu0 0.0
    %427 = vmatprep.subr.mxu0 0.0
    %428 = vmatpush2.msra.mxu0 0.0
    %429 = vmatprep.subr.mxu0 0.0
    %430 = vmatpush2.msra.mxu0 0.0
    %431 = vmatprep.subr.mxu0 0.0
    %432 = vmatpush2.msra.mxu0 0.0
    %433 = vmatprep.subr.mxu0 0.0
    %434 = vmatpush2.msra.mxu0 0.0
    %435 = vmatprep.subr.mxu0 0.0
    %436 = vmatpush2.msra.mxu0 0.0
    %437 = vmatprep.subr.mxu0 0.0
    %438 = vmatpush2.msra.mxu0 0.0
    %439 = vmatprep.subr.mxu0 0.0
    %440 = vmatpush2.msra.mxu0 0.0
    %441 = vmatprep.subr.mxu0 0.0
    %442 = vmatpush2.msra.mxu0 0.0
    %443 = vmatprep.subr.mxu0 0.0
    %444 = vmatpush2.msra.mxu0 0.0
    %445 = vmatprep.subr.mxu0 0.0
    %446 = vmatpush2.msra.mxu0 0.0
    %447 = vmatprep.subr.mxu0 0.0
    %448 = vmatpush2.msra.mxu0 0.0
    %449 = vmatprep.subr.mxu0 0.0
    %450 = vmatpush2.msra.mxu0 0.0
    %451 = vmatprep.subr.mxu0 0.0
    %452 = vmatpush2.msra.mxu0 0.0
    %453 = vmatprep.mubr.f32.mxu0 0.0
    %454 = vmatmul.mubr.f32.gmra.mxu0 %v221
    %v455 = vpop.f32.mrf.mxu0
    %v456 = vadd.f32 %v388, %v455
    %v457 = vpop.f32.mrf.mxu0
    %458 = vdwg.mxu0
    %v459 = vlaneseq
    %v460 = vshrl.u32 %v459, 7
    %v461 = vsub.s32 3, %v460
    %v462 = vrot.slane %v46, %v461
    %463 = vmatprep.subr.mxu0 0.0
    %464 = vmatpush1.msra.mxu0 0.0
    %465 = vmatprep.subr.mxu0 0.0
    %466 = vmatpush1.msra.mxu0 0.0
    %467 = vmatprep.subr.mxu0 0.0
    %468 = vmatpush1.msra.mxu0 0.0
    %469 = vmatprep.subr.mxu0 0.0
    %470 = vmatpush1.msra.mxu0 0.0
    %471 = vmatprep.subr.mxu0 0.0
    %472 = vmatpush1.msra.mxu0 0.0
    %473 = vmatprep.subr.mxu0 0.0
    %474 = vmatpush1.msra.mxu0 0.0
    %475 = vmatprep.subr.mxu0 0.0
    %476 = vmatpush1.msra.mxu0 0.0
    %477 = vmatprep.subr.mxu0 0.0
    %478 = vmatpush1.msra.mxu0 0.0
    %479 = vmatprep.subr.mxu0 0.0
    %480 = vmatpush1.msra.mxu0 0.0
    %481 = vmatprep.subr.mxu0 0.0
    %482 = vmatpush1.msra.mxu0 0.0
    %483 = vmatprep.subr.mxu0 0.0
    %484 = vmatpush1.msra.mxu0 0.0
    %485 = vmatprep.subr.mxu0 0.0
    %486 = vmatpush1.msra.mxu0 0.0
    %487 = vmatprep.subr.mxu0 0.0
    %488 = vmatpush1.msra.mxu0 %v219
    %489 = vmatprep.subr.mxu0 0.0
    %490 = vmatpush1.msra.mxu0 %v218
    %491 = vmatprep.subr.mxu0 0.0
    %492 = vmatpush1.msra.mxu0 %v217
    %493 = vmatprep.subr.mxu0 0.0
    %494 = vmatpush1.msra.mxu0 %v216
    %495 = vmatprep.subr.mxu0 0.0
    %496 = vmatpush2.msra.mxu0 0.0
    %497 = vmatprep.subr.mxu0 0.0
    %498 = vmatpush2.msra.mxu0 0.0
    %499 = vmatprep.subr.mxu0 0.0
    %500 = vmatpush2.msra.mxu0 0.0
    %501 = vmatprep.subr.mxu0 0.0
    %502 = vmatpush2.msra.mxu0 0.0
    %503 = vmatprep.subr.mxu0 0.0
    %504 = vmatpush2.msra.mxu0 0.0
    %505 = vmatprep.subr.mxu0 0.0
    %506 = vmatpush2.msra.mxu0 0.0
    %507 = vmatprep.subr.mxu0 0.0
    %508 = vmatpush2.msra.mxu0 0.0
    %509 = vmatprep.subr.mxu0 0.0
    %510 = vmatpush2.msra.mxu0 0.0
    %511 = vmatprep.subr.mxu0 0.0
    %512 = vmatpush2.msra.mxu0 0.0
    %513 = vmatprep.subr.mxu0 0.0
    %514 = vmatpush2.msra.mxu0 0.0
    %515 = vmatprep.subr.mxu0 0.0
    %516 = vmatpush2.msra.mxu0 0.0
    %517 = vmatprep.subr.mxu0 0.0
    %518 = vmatpush2.msra.mxu0 0.0
    %519 = vmatprep.subr.mxu0 0.0
    %520 = vmatpush2.msra.mxu0 0.0
    %521 = vmatprep.subr.mxu0 0.0
    %522 = vmatpush2.msra.mxu0 0.0
    %523 = vmatprep.subr.mxu0 0.0
    %524 = vmatpush2.msra.mxu0 0.0
    %525 = vmatprep.subr.mxu0 0.0
    %526 = vmatpush2.msra.mxu0 0.0
    %527 = vmatprep.mubr.f32.mxu0 0.0
    %528 = vmatmul.mubr.f32.gmra.mxu0 %v68
    %v529 = vpop.f32.mrf.mxu0
    %v530 = vadd.f32 %v462, %v529
    %v531 = vpop.f32.mrf.mxu0
    %532 = vdwg.mxu0
    %v533 = vmul.f32 %v303, %v530
    %v534 = vadd.f32 %v456, %v533
    %v535 = vtanh.pop %v534
    %v536 = vsub.f32 1.0, %v384
    %v537 = vmul.f32 %v536, %v535
    %v538 = vmul.f32 %v384, %v61
    %v539 = vadd.f32 %v537, %v538
    %v541 = vsel %vm66, %v539, 0
    %543 = vmatprep.subr.mxu0 0.0
    %544 = vmatpush1.msra.mxu0 0.0
    %545 = vmatprep.subr.mxu0 0.0
    %546 = vmatpush1.msra.mxu0 0.0
    %547 = vmatprep.subr.mxu0 0.0
    %548 = vmatpush1.msra.mxu0 0.0
    %549 = vmatprep.subr.mxu0 0.0
    %550 = vmatpush1.msra.mxu0 0.0
    %551 = vmatprep.subr.mxu0 0.0
    %552 = vmatpush1.msra.mxu0 0.0
    %553 = vmatprep.subr.mxu0 0.0
    %554 = vmatpush1.msra.mxu0 0.0
    %555 = vmatprep.subr.mxu0 0.0
    %556 = vmatpush1.msra.mxu0 0.0
    %557 = vmatprep.subr.mxu0 0.0
    %558 = vmatpush1.msra.mxu0 0.0
    %559 = vmatprep.subr.mxu0 0.0
    %560 = vmatpush1.msra.mxu0 0.0
    %561 = vmatprep.subr.mxu0 0.0
    %562 = vmatpush1.msra.mxu0 0.0
    %563 = vmatprep.subr.mxu0 0.0
    %564 = vmatpush1.msra.mxu0 0.0
    %565 = vmatprep.subr.mxu0 0.0
    %566 = vmatpush1.msra.mxu0 0.0
    %567 = vmatprep.subr.mxu0 0.0
    %568 = vmatpush1.msra.mxu0 %v65
    %569 = vmatprep.subr.mxu0 0.0
    %570 = vmatpush1.msra.mxu0 %v64
    %571 = vmatprep.subr.mxu0 0.0
    %572 = vmatpush1.msra.mxu0 %v63
    %573 = vmatprep.subr.mxu0 0.0
    %574 = vmatpush1.msra.mxu0 %v62
    %575 = vmatprep.subr.mxu0 0.0
    %576 = vmatpush2.msra.mxu0 0.0
    %577 = vmatprep.subr.mxu0 0.0
    %578 = vmatpush2.msra.mxu0 0.0
    %579 = vmatprep.subr.mxu0 0.0
    %580 = vmatpush2.msra.mxu0 0.0
    %581 = vmatprep.subr.mxu0 0.0
    %582 = vmatpush2.msra.mxu0 0.0
    %583 = vmatprep.subr.mxu0 0.0
    %584 = vmatpush2.msra.mxu0 0.0
    %585 = vmatprep.subr.mxu0 0.0
    %586 = vmatpush2.msra.mxu0 0.0
    %587 = vmatprep.subr.mxu0 0.0
    %588 = vmatpush2.msra.mxu0 0.0
    %589 = vmatprep.subr.mxu0 0.0
    %590 = vmatpush2.msra.mxu0 0.0
    %591 = vmatprep.subr.mxu0 0.0
    %592 = vmatpush2.msra.mxu0 0.0
    %593 = vmatprep.subr.mxu0 0.0
    %594 = vmatpush2.msra.mxu0 0.0
    %595 = vmatprep.subr.mxu0 0.0
    %596 = vmatpush2.msra.mxu0 0.0
    %597 = vmatprep.subr.mxu0 0.0
    %598 = vmatpush2.msra.mxu0 0.0
    %599 = vmatprep.subr.mxu0 0.0
    %600 = vmatpush2.msra.mxu0 0.0
    %601 = vmatprep.subr.mxu0 0.0
    %602 = vmatpush2.msra.mxu0 0.0
    %603 = vmatprep.subr.mxu0 0.0
    %604 = vmatpush2.msra.mxu0 0.0
    %605 = vmatprep.subr.mxu0 0.0
    %606 = vmatpush2.msra.mxu0 0.0
    %607 = vmatprep.mubr.f32.mxu0 0.0
    %608 = vmatmul.mubr.f32.gmra.mxu0 %v541
    %v609 = vpop.f32.mrf.mxu0
    %v610 = vadd.f32 0.0, %v609
    %v611 = vpop.f32.mrf.mxu0
    %612 = vdwg.mxu0
    %613 = vmatprep.subr.mxu0 0.0
    %614 = vmatpush1.msra.mxu0 0.0
    %615 = vmatprep.subr.mxu0 0.0
    %616 = vmatpush1.msra.mxu0 0.0
    %617 = vmatprep.subr.mxu0 0.0
    %618 = vmatpush1.msra.mxu0 0.0
    %619 = vmatprep.subr.mxu0 0.0
    %620 = vmatpush1.msra.mxu0 0.0
    %621 = vmatprep.subr.mxu0 0.0
    %622 = vmatpush1.msra.mxu0 0.0
    %623 = vmatprep.subr.mxu0 0.0
    %624 = vmatpush1.msra.mxu0 0.0
    %625 = vmatprep.subr.mxu0 0.0
    %626 = vmatpush1.msra.mxu0 0.0
    %627 = vmatprep.subr.mxu0 0.0
    %628 = vmatpush1.msra.mxu0 0.0
    %629 = vmatprep.subr.mxu0 0.0
    %630 = vmatpush1.msra.mxu0 0.0
    %631 = vmatprep.subr.mxu0 0.0
    %632 = vmatpush1.msra.mxu0 0.0
    %633 = vmatprep.subr.mxu0 0.0
    %634 = vmatpush1.msra.mxu0 0.0
    %635 = vmatprep.subr.mxu0 0.0
    %636 = vmatpush1.msra.mxu0 0.0
    %637 = vmatprep.subr.mxu0 0.0
    %638 = vmatpush1.msra.mxu0 %v144
    %639 = vmatprep.subr.mxu0 0.0
    %640 = vmatpush1.msra.mxu0 %v143
    %641 = vmatprep.subr.mxu0 0.0
    %642 = vmatpush1.msra.mxu0 %v142
    %643 = vmatprep.subr.mxu0 0.0
    %644 = vmatpush1.msra.mxu0 %v141
    %645 = vmatprep.subr.mxu0 0.0
    %646 = vmatpush2.msra.mxu0 0.0
    %647 = vmatprep.subr.mxu0 0.0
    %648 = vmatpush2.msra.mxu0 0.0
    %649 = vmatprep.subr.mxu0 0.0
    %650 = vmatpush2.msra.mxu0 0.0
    %651 = vmatprep.subr.mxu0 0.0
    %652 = vmatpush2.msra.mxu0 0.0
    %653 = vmatprep.subr.mxu0 0.0
    %654 = vmatpush2.msra.mxu0 0.0
    %655 = vmatprep.subr.mxu0 0.0
    %656 = vmatpush2.msra.mxu0 0.0
    %657 = vmatprep.subr.mxu0 0.0
    %658 = vmatpush2.msra.mxu0 0.0
    %659 = vmatprep.subr.mxu0 0.0
    %660 = vmatpush2.msra.mxu0 0.0
    %661 = vmatprep.subr.mxu0 0.0
    %662 = vmatpush2.msra.mxu0 0.0
    %663 = vmatprep.subr.mxu0 0.0
    %664 = vmatpush2.msra.mxu0 0.0
    %665 = vmatprep.subr.mxu0 0.0
    %666 = vmatpush2.msra.mxu0 0.0
    %667 = vmatprep.subr.mxu0 0.0
    %668 = vmatpush2.msra.mxu0 0.0
    %669 = vmatprep.subr.mxu0 0.0
    %670 = vmatpush2.msra.mxu0 0.0
    %671 = vmatprep.subr.mxu0 0.0
    %672 = vmatpush2.msra.mxu0 0.0
    %673 = vmatprep.subr.mxu0 0.0
    %674 = vmatpush2.msra.mxu0 0.0
    %675 = vmatprep.subr.mxu0 0.0
    %676 = vmatpush2.msra.mxu0 0.0
    %677 = vmatprep.mubr.f32.mxu0 0.0
    %678 = vmatmul.mubr.f32.gmra.mxu0 %v541
    %v679 = vpop.f32.mrf.mxu0
    %v680 = vadd.f32 0.0, %v679
    %v681 = vpop.f32.mrf.mxu0
    %682 = vdwg.mxu0
    %v684 = vsel %vm66, %v41, 0
    %686 = vmatprep.subr.mxu0 0.0
    %687 = vmatpush1.msra.mxu0 0.0
    %688 = vmatprep.subr.mxu0 0.0
    %689 = vmatpush1.msra.mxu0 0.0
    %690 = vmatprep.subr.mxu0 0.0
    %691 = vmatpush1.msra.mxu0 0.0
    %692 = vmatprep.subr.mxu0 0.0
    %693 = vmatpush1.msra.mxu0 0.0
    %694 = vmatprep.subr.mxu0 0.0
    %695 = vmatpush1.msra.mxu0 0.0
    %696 = vmatprep.subr.mxu0 0.0
    %697 = vmatpush1.msra.mxu0 0.0
    %698 = vmatprep.subr.mxu0 0.0
    %699 = vmatpush1.msra.mxu0 0.0
    %700 = vmatprep.subr.mxu0 0.0
    %701 = vmatpush1.msra.mxu0 0.0
    %702 = vmatprep.subr.mxu0 0.0
    %703 = vmatpush1.msra.mxu0 0.0
    %704 = vmatprep.subr.mxu0 0.0
    %705 = vmatpush1.msra.mxu0 0.0
    %706 = vmatprep.subr.mxu0 0.0
    %707 = vmatpush1.msra.mxu0 0.0
    %708 = vmatprep.subr.mxu0 0.0
    %709 = vmatpush1.msra.mxu0 0.0
    %710 = vmatprep.subr.mxu0 0.0
    %711 = vmatpush1.msra.mxu0 %v50
    %712 = vmatprep.subr.mxu0 0.0
    %713 = vmatpush1.msra.mxu0 %v49
    %714 = vmatprep.subr.mxu0 0.0
    %715 = vmatpush1.msra.mxu0 %v48
    %716 = vmatprep.subr.mxu0 0.0
    %717 = vmatpush1.msra.mxu0 %v47
    %718 = vmatprep.subr.mxu0 0.0
    %719 = vmatpush2.msra.mxu0 0.0
    %720 = vmatprep.subr.mxu0 0.0
    %721 = vmatpush2.msra.mxu0 0.0
    %722 = vmatprep.subr.mxu0 0.0
    %723 = vmatpush2.msra.mxu0 0.0
    %724 = vmatprep.subr.mxu0 0.0
    %725 = vmatpush2.msra.mxu0 0.0
    %726 = vmatprep.subr.mxu0 0.0
    %727 = vmatpush2.msra.mxu0 0.0
    %728 = vmatprep.subr.mxu0 0.0
    %729 = vmatpush2.msra.mxu0 0.0
    %730 = vmatprep.subr.mxu0 0.0
    %731 = vmatpush2.msra.mxu0 0.0
    %732 = vmatprep.subr.mxu0 0.0
    %733 = vmatpush2.msra.mxu0 0.0
    %734 = vmatprep.subr.mxu0 0.0
    %735 = vmatpush2.msra.mxu0 0.0
    %736 = vmatprep.subr.mxu0 0.0
    %737 = vmatpush2.msra.mxu0 0.0
    %738 = vmatprep.subr.mxu0 0.0
    %739 = vmatpush2.msra.mxu0 0.0
    %740 = vmatprep.subr.mxu0 0.0
    %741 = vmatpush2.msra.mxu0 0.0
    %742 = vmatprep.subr.mxu0 0.0
    %743 = vmatpush2.msra.mxu0 0.0
    %744 = vmatprep.subr.mxu0 0.0
    %745 = vmatpush2.msra.mxu0 0.0
    %746 = vmatprep.subr.mxu0 0.0
    %747 = vmatpush2.msra.mxu0 0.0
    %748 = vmatprep.subr.mxu0 0.0
    %749 = vmatpush2.msra.mxu0 0.0
    %750 = vmatprep.mubr.f32.mxu0 0.0
    %751 = vmatmul.mubr.f32.gmra.mxu0 %v684
    %v752 = vpop.f32.mrf.mxu0
    %v753 = vadd.f32 %v610, %v752
    %v754 = vpop.f32.mrf.mxu0
    %755 = vdwg.mxu0
    %v756 = vadd.f32 %v753, %v296
    %v757 = vxor.u32 %v756, 2147483648
    %v758 = vmul.f32 %v757, 1.442695
    %v759 = vpow.pop %v758
    %v760 = vadd.f32 %v759, 1.0
    %v761 = vrcp.pop %v760
    %v762 = vmul.f32 1.0, %v761
    %763 = vmatprep.subr.mxu0 0.0
    %764 = vmatpush1.msra.mxu0 0.0
    %765 = vmatprep.subr.mxu0 0.0
    %766 = vmatpush1.msra.mxu0 0.0
    %767 = vmatprep.subr.mxu0 0.0
    %768 = vmatpush1.msra.mxu0 0.0
    %769 = vmatprep.subr.mxu0 0.0
    %770 = vmatpush1.msra.mxu0 0.0
    %771 = vmatprep.subr.mxu0 0.0
    %772 = vmatpush1.msra.mxu0 0.0
    %773 = vmatprep.subr.mxu0 0.0
    %774 = vmatpush1.msra.mxu0 0.0
    %775 = vmatprep.subr.mxu0 0.0
    %776 = vmatpush1.msra.mxu0 0.0
    %777 = vmatprep.subr.mxu0 0.0
    %778 = vmatpush1.msra.mxu0 0.0
    %779 = vmatprep.subr.mxu0 0.0
    %780 = vmatpush1.msra.mxu0 0.0
    %781 = vmatprep.subr.mxu0 0.0
    %782 = vmatpush1.msra.mxu0 0.0
    %783 = vmatprep.subr.mxu0 0.0
    %784 = vmatpush1.msra.mxu0 0.0
    %785 = vmatprep.subr.mxu0 0.0
    %786 = vmatpush1.msra.mxu0 0.0
    %787 = vmatprep.subr.mxu0 0.0
    %788 = vmatpush1.msra.mxu0 %v55
    %789 = vmatprep.subr.mxu0 0.0
    %790 = vmatpush1.msra.mxu0 %v54
    %791 = vmatprep.subr.mxu0 0.0
    %792 = vmatpush1.msra.mxu0 %v53
    %793 = vmatprep.subr.mxu0 0.0
    %794 = vmatpush1.msra.mxu0 %v52
    %795 = vmatprep.subr.mxu0 0.0
    %796 = vmatpush2.msra.mxu0 0.0
    %797 = vmatprep.subr.mxu0 0.0
    %798 = vmatpush2.msra.mxu0 0.0
    %799 = vmatprep.subr.mxu0 0.0
    %800 = vmatpush2.msra.mxu0 0.0
    %801 = vmatprep.subr.mxu0 0.0
    %802 = vmatpush2.msra.mxu0 0.0
    %803 = vmatprep.subr.mxu0 0.0
    %804 = vmatpush2.msra.mxu0 0.0
    %805 = vmatprep.subr.mxu0 0.0
    %806 = vmatpush2.msra.mxu0 0.0
    %807 = vmatprep.subr.mxu0 0.0
    %808 = vmatpush2.msra.mxu0 0.0
    %809 = vmatprep.subr.mxu0 0.0
    %810 = vmatpush2.msra.mxu0 0.0
    %811 = vmatprep.subr.mxu0 0.0
    %812 = vmatpush2.msra.mxu0 0.0
    %813 = vmatprep.subr.mxu0 0.0
    %814 = vmatpush2.msra.mxu0 0.0
    %815 = vmatprep.subr.mxu0 0.0
    %816 = vmatpush2.msra.mxu0 0.0
    %817 = vmatprep.subr.mxu0 0.0
    %818 = vmatpush2.msra.mxu0 0.0
    %819 = vmatprep.subr.mxu0 0.0
    %820 = vmatpush2.msra.mxu0 0.0
    %821 = vmatprep.subr.mxu0 0.0
    %822 = vmatpush2.msra.mxu0 0.0
    %823 = vmatprep.subr.mxu0 0.0
    %824 = vmatpush2.msra.mxu0 0.0
    %825 = vmatprep.subr.mxu0 0.0
    %826 = vmatpush2.msra.mxu0 0.0
    %827 = vmatprep.mubr.f32.mxu0 0.0
    %828 = vmatmul.mubr.f32.gmra.mxu0 %v684
    %v829 = vpop.f32.mrf.mxu0
    %v830 = vadd.f32 %v680, %v829
    %v831 = vpop.f32.mrf.mxu0
    %832 = vdwg.mxu0
    %v833 = vadd.f32 %v830, %v377
    %v834 = vxor.u32 %v833, 2147483648
    %v835 = vmul.f32 %v834, 1.442695
    %v836 = vpow.pop %v835
    %v837 = vadd.f32 %v836, 1.0
    %v838 = vrcp.pop %v837
    %v839 = vmul.f32 1.0, %v838
    %840 = vmatprep.subr.mxu0 0.0
    %841 = vmatpush1.msra.mxu0 0.0
    %842 = vmatprep.subr.mxu0 0.0
    %843 = vmatpush1.msra.mxu0 0.0
    %844 = vmatprep.subr.mxu0 0.0
    %845 = vmatpush1.msra.mxu0 0.0
    %846 = vmatprep.subr.mxu0 0.0
    %847 = vmatpush1.msra.mxu0 0.0
    %848 = vmatprep.subr.mxu0 0.0
    %849 = vmatpush1.msra.mxu0 0.0
    %850 = vmatprep.subr.mxu0 0.0
    %851 = vmatpush1.msra.mxu0 0.0
    %852 = vmatprep.subr.mxu0 0.0
    %853 = vmatpush1.msra.mxu0 0.0
    %854 = vmatprep.subr.mxu0 0.0
    %855 = vmatpush1.msra.mxu0 0.0
    %856 = vmatprep.subr.mxu0 0.0
    %857 = vmatpush1.msra.mxu0 0.0
    %858 = vmatprep.subr.mxu0 0.0
    %859 = vmatpush1.msra.mxu0 0.0
    %860 = vmatprep.subr.mxu0 0.0
    %861 = vmatpush1.msra.mxu0 0.0
    %862 = vmatprep.subr.mxu0 0.0
    %863 = vmatpush1.msra.mxu0 0.0
    %864 = vmatprep.subr.mxu0 0.0
    %865 = vmatpush1.msra.mxu0 %v60
    %866 = vmatprep.subr.mxu0 0.0
    %867 = vmatpush1.msra.mxu0 %v59
    %868 = vmatprep.subr.mxu0 0.0
    %869 = vmatpush1.msra.mxu0 %v58
    %870 = vmatprep.subr.mxu0 0.0
    %871 = vmatpush1.msra.mxu0 %v57
    %872 = vmatprep.subr.mxu0 0.0
    %873 = vmatpush2.msra.mxu0 0.0
    %874 = vmatprep.subr.mxu0 0.0
    %875 = vmatpush2.msra.mxu0 0.0
    %876 = vmatprep.subr.mxu0 0.0
    %877 = vmatpush2.msra.mxu0 0.0
    %878 = vmatprep.subr.mxu0 0.0
    %879 = vmatpush2.msra.mxu0 0.0
    %880 = vmatprep.subr.mxu0 0.0
    %881 = vmatpush2.msra.mxu0 0.0
    %882 = vmatprep.subr.mxu0 0.0
    %883 = vmatpush2.msra.mxu0 0.0
    %884 = vmatprep.subr.mxu0 0.0
    %885 = vmatpush2.msra.mxu0 0.0
    %886 = vmatprep.subr.mxu0 0.0
    %887 = vmatpush2.msra.mxu0 0.0
    %888 = vmatprep.subr.mxu0 0.0
    %889 = vmatpush2.msra.mxu0 0.0
    %890 = vmatprep.subr.mxu0 0.0
    %891 = vmatpush2.msra.mxu0 0.0
    %892 = vmatprep.subr.mxu0 0.0
    %893 = vmatpush2.msra.mxu0 0.0
    %894 = vmatprep.subr.mxu0 0.0
    %895 = vmatpush2.msra.mxu0 0.0
    %896 = vmatprep.subr.mxu0 0.0
    %897 = vmatpush2.msra.mxu0 0.0
    %898 = vmatprep.subr.mxu0 0.0
    %899 = vmatpush2.msra.mxu0 0.0
    %900 = vmatprep.subr.mxu0 0.0
    %901 = vmatpush2.msra.mxu0 0.0
    %902 = vmatprep.subr.mxu0 0.0
    %903 = vmatpush2.msra.mxu0 0.0
    %904 = vmatprep.mubr.f32.mxu0 0.0
    %905 = vmatmul.mubr.f32.gmra.mxu0 %v684
    %v906 = vpop.f32.mrf.mxu0
    %v907 = vadd.f32 %v388, %v906
    %v908 = vpop.f32.mrf.mxu0
    %909 = vdwg.mxu0
    %910 = vmatprep.subr.mxu0 0.0
    %911 = vmatpush1.msra.mxu0 0.0
    %912 = vmatprep.subr.mxu0 0.0
    %913 = vmatpush1.msra.mxu0 0.0
    %914 = vmatprep.subr.mxu0 0.0
    %915 = vmatpush1.msra.mxu0 0.0
    %916 = vmatprep.subr.mxu0 0.0
    %917 = vmatpush1.msra.mxu0 0.0
    %918 = vmatprep.subr.mxu0 0.0
    %919 = vmatpush1.msra.mxu0 0.0
    %920 = vmatprep.subr.mxu0 0.0
    %921 = vmatpush1.msra.mxu0 0.0
    %922 = vmatprep.subr.mxu0 0.0
    %923 = vmatpush1.msra.mxu0 0.0
    %924 = vmatprep.subr.mxu0 0.0
    %925 = vmatpush1.msra.mxu0 0.0
    %926 = vmatprep.subr.mxu0 0.0
    %927 = vmatpush1.msra.mxu0 0.0
    %928 = vmatprep.subr.mxu0 0.0
    %929 = vmatpush1.msra.mxu0 0.0
    %930 = vmatprep.subr.mxu0 0.0
    %931 = vmatpush1.msra.mxu0 0.0
    %932 = vmatprep.subr.mxu0 0.0
    %933 = vmatpush1.msra.mxu0 0.0
    %934 = vmatprep.subr.mxu0 0.0
    %935 = vmatpush1.msra.mxu0 %v219
    %936 = vmatprep.subr.mxu0 0.0
    %937 = vmatpush1.msra.mxu0 %v218
    %938 = vmatprep.subr.mxu0 0.0
    %939 = vmatpush1.msra.mxu0 %v217
    %940 = vmatprep.subr.mxu0 0.0
    %941 = vmatpush1.msra.mxu0 %v216
    %942 = vmatprep.subr.mxu0 0.0
    %943 = vmatpush2.msra.mxu0 0.0
    %944 = vmatprep.subr.mxu0 0.0
    %945 = vmatpush2.msra.mxu0 0.0
    %946 = vmatprep.subr.mxu0 0.0
    %947 = vmatpush2.msra.mxu0 0.0
    %948 = vmatprep.subr.mxu0 0.0
    %949 = vmatpush2.msra.mxu0 0.0
    %950 = vmatprep.subr.mxu0 0.0
    %951 = vmatpush2.msra.mxu0 0.0
    %952 = vmatprep.subr.mxu0 0.0
    %953 = vmatpush2.msra.mxu0 0.0
    %954 = vmatprep.subr.mxu0 0.0
    %955 = vmatpush2.msra.mxu0 0.0
    %956 = vmatprep.subr.mxu0 0.0
    %957 = vmatpush2.msra.mxu0 0.0
    %958 = vmatprep.subr.mxu0 0.0
    %959 = vmatpush2.msra.mxu0 0.0
    %960 = vmatprep.subr.mxu0 0.0
    %961 = vmatpush2.msra.mxu0 0.0
    %962 = vmatprep.subr.mxu0 0.0
    %963 = vmatpush2.msra.mxu0 0.0
    %964 = vmatprep.subr.mxu0 0.0
    %965 = vmatpush2.msra.mxu0 0.0
    %966 = vmatprep.subr.mxu0 0.0
    %967 = vmatpush2.msra.mxu0 0.0
    %968 = vmatprep.subr.mxu0 0.0
    %969 = vmatpush2.msra.mxu0 0.0
    %970 = vmatprep.subr.mxu0 0.0
    %971 = vmatpush2.msra.mxu0 0.0
    %972 = vmatprep.subr.mxu0 0.0
    %973 = vmatpush2.msra.mxu0 0.0
    %974 = vmatprep.mubr.f32.mxu0 0.0
    %975 = vmatmul.mubr.f32.gmra.mxu0 %v541
    %v976 = vpop.f32.mrf.mxu0
    %v977 = vadd.f32 %v462, %v976
    %v978 = vpop.f32.mrf.mxu0
    %979 = vdwg.mxu0
    %v980 = vmul.f32 %v762, %v977
    %v981 = vadd.f32 %v907, %v980
    %v982 = vtanh.pop %v981
    %v983 = vsub.f32 1.0, %v839
    %v984 = vmul.f32 %v983, %v982
    %v985 = vmul.f32 %v839, %v539
    %v986 = vadd.f32 %v984, %v985
    %v988 = vsel %vm66, %v986, 0
    %990 = vmatprep.subr.mxu0 0.0
    %991 = vmatpush1.msra.mxu0 0.0
    %992 = vmatprep.subr.mxu0 0.0
    %993 = vmatpush1.msra.mxu0 0.0
    %994 = vmatprep.subr.mxu0 0.0
    %995 = vmatpush1.msra.mxu0 0.0
    %996 = vmatprep.subr.mxu0 0.0
    %997 = vmatpush1.msra.mxu0 0.0
    %998 = vmatprep.subr.mxu0 0.0
    %999 = vmatpush1.msra.mxu0 0.0
    %1000 = vmatprep.subr.mxu0 0.0
    %1001 = vmatpush1.msra.mxu0 0.0
    %1002 = vmatprep.subr.mxu0 0.0
    %1003 = vmatpush1.msra.mxu0 0.0
    %1004 = vmatprep.subr.mxu0 0.0
    %1005 = vmatpush1.msra.mxu0 0.0
    %1006 = vmatprep.subr.mxu0 0.0
    %1007 = vmatpush1.msra.mxu0 0.0
    %1008 = vmatprep.subr.mxu0 0.0
    %1009 = vmatpush1.msra.mxu0 0.0
    %1010 = vmatprep.subr.mxu0 0.0
    %1011 = vmatpush1.msra.mxu0 0.0
    %1012 = vmatprep.subr.mxu0 0.0
    %1013 = vmatpush1.msra.mxu0 0.0
    %1014 = vmatprep.subr.mxu0 0.0
    %1015 = vmatpush1.msra.mxu0 %v65
    %1016 = vmatprep.subr.mxu0 0.0
    %1017 = vmatpush1.msra.mxu0 %v64
    %1018 = vmatprep.subr.mxu0 0.0
    %1019 = vmatpush1.msra.mxu0 %v63
    %1020 = vmatprep.subr.mxu0 0.0
    %1021 = vmatpush1.msra.mxu0 %v62
    %1022 = vmatprep.subr.mxu0 0.0
    %1023 = vmatpush2.msra.mxu0 0.0
    %1024 = vmatprep.subr.mxu0 0.0
    %1025 = vmatpush2.msra.mxu0 0.0
    %1026 = vmatprep.subr.mxu0 0.0
    %1027 = vmatpush2.msra.mxu0 0.0
    %1028 = vmatprep.subr.mxu0 0.0
    %1029 = vmatpush2.msra.mxu0 0.0
    %1030 = vmatprep.subr.mxu0 0.0
    %1031 = vmatpush2.msra.mxu0 0.0
    %1032 = vmatprep.subr.mxu0 0.0
    %1033 = vmatpush2.msra.mxu0 0.0
    %1034 = vmatprep.subr.mxu0 0.0
    %1035 = vmatpush2.msra.mxu0 0.0
    %1036 = vmatprep.subr.mxu0 0.0
    %1037 = vmatpush2.msra.mxu0 0.0
    %1038 = vmatprep.subr.mxu0 0.0
    %1039 = vmatpush2.msra.mxu0 0.0
    %1040 = vmatprep.subr.mxu0 0.0
    %1041 = vmatpush2.msra.mxu0 0.0
    %1042 = vmatprep.subr.mxu0 0.0
    %1043 = vmatpush2.msra.mxu0 0.0
    %1044 = vmatprep.subr.mxu0 0.0
    %1045 = vmatpush2.msra.mxu0 0.0
    %1046 = vmatprep.subr.mxu0 0.0
    %1047 = vmatpush2.msra.mxu0 0.0
    %1048 = vmatprep.subr.mxu0 0.0
    %1049 = vmatpush2.msra.mxu0 0.0
    %1050 = vmatprep.subr.mxu0 0.0
    %1051 = vmatpush2.msra.mxu0 0.0
    %1052 = vmatprep.subr.mxu0 0.0
    %1053 = vmatpush2.msra.mxu0 0.0
    %1054 = vmatprep.mubr.f32.mxu0 0.0
    %1055 = vmatmul.mubr.f32.gmra.mxu0 %v988
    %v1056 = vpop.f32.mrf.mxu0
    %v1057 = vadd.f32 0.0, %v1056
    %v1058 = vpop.f32.mrf.mxu0
    %1059 = vdwg.mxu0
    %1060 = vmatprep.subr.mxu0 0.0
    %1061 = vmatpush1.msra.mxu0 0.0
    %1062 = vmatprep.subr.mxu0 0.0
    %1063 = vmatpush1.msra.mxu0 0.0
    %1064 = vmatprep.subr.mxu0 0.0
    %1065 = vmatpush1.msra.mxu0 0.0
    %1066 = vmatprep.subr.mxu0 0.0
    %1067 = vmatpush1.msra.mxu0 0.0
    %1068 = vmatprep.subr.mxu0 0.0
    %1069 = vmatpush1.msra.mxu0 0.0
    %1070 = vmatprep.subr.mxu0 0.0
    %1071 = vmatpush1.msra.mxu0 0.0
    %1072 = vmatprep.subr.mxu0 0.0
    %1073 = vmatpush1.msra.mxu0 0.0
    %1074 = vmatprep.subr.mxu0 0.0
    %1075 = vmatpush1.msra.mxu0 0.0
    %1076 = vmatprep.subr.mxu0 0.0
    %1077 = vmatpush1.msra.mxu0 0.0
    %1078 = vmatprep.subr.mxu0 0.0
    %1079 = vmatpush1.msra.mxu0 0.0
    %1080 = vmatprep.subr.mxu0 0.0
    %1081 = vmatpush1.msra.mxu0 0.0
    %1082 = vmatprep.subr.mxu0 0.0
    %1083 = vmatpush1.msra.mxu0 0.0
    %1084 = vmatprep.subr.mxu0 0.0
    %1085 = vmatpush1.msra.mxu0 %v144
    %1086 = vmatprep.subr.mxu0 0.0
    %1087 = vmatpush1.msra.mxu0 %v143
    %1088 = vmatprep.subr.mxu0 0.0
    %1089 = vmatpush1.msra.mxu0 %v142
    %1090 = vmatprep.subr.mxu0 0.0
    %1091 = vmatpush1.msra.mxu0 %v141
    %1092 = vmatprep.subr.mxu0 0.0
    %1093 = vmatpush2.msra.mxu0 0.0
    %1094 = vmatprep.subr.mxu0 0.0
    %1095 = vmatpush2.msra.mxu0 0.0
    %1096 = vmatprep.subr.mxu0 0.0
    %1097 = vmatpush2.msra.mxu0 0.0
    %1098 = vmatprep.subr.mxu0 0.0
    %1099 = vmatpush2.msra.mxu0 0.0
    %1100 = vmatprep.subr.mxu0 0.0
    %1101 = vmatpush2.msra.mxu0 0.0
    %1102 = vmatprep.subr.mxu0 0.0
    %1103 = vmatpush2.msra.mxu0 0.0
    %1104 = vmatprep.subr.mxu0 0.0
    %1105 = vmatpush2.msra.mxu0 0.0
    %1106 = vmatprep.subr.mxu0 0.0
    %1107 = vmatpush2.msra.mxu0 0.0
    %1108 = vmatprep.subr.mxu0 0.0
    %1109 = vmatpush2.msra.mxu0 0.0
    %1110 = vmatprep.subr.mxu0 0.0
    %1111 = vmatpush2.msra.mxu0 0.0
    %1112 = vmatprep.subr.mxu0 0.0
    %1113 = vmatpush2.msra.mxu0 0.0
    %1114 = vmatprep.subr.mxu0 0.0
    %1115 = vmatpush2.msra.mxu0 0.0
    %1116 = vmatprep.subr.mxu0 0.0
    %1117 = vmatpush2.msra.mxu0 0.0
    %1118 = vmatprep.subr.mxu0 0.0
    %1119 = vmatpush2.msra.mxu0 0.0
    %1120 = vmatprep.subr.mxu0 0.0
    %1121 = vmatpush2.msra.mxu0 0.0
    %1122 = vmatprep.subr.mxu0 0.0
    %1123 = vmatpush2.msra.mxu0 0.0
    %1124 = vmatprep.mubr.f32.mxu0 0.0
    %1125 = vmatmul.mubr.f32.gmra.mxu0 %v988
    %v1126 = vpop.f32.mrf.mxu0
    %v1127 = vadd.f32 0.0, %v1126
    %v1128 = vpop.f32.mrf.mxu0
    %1129 = vdwg.mxu0
    %v1131 = vsel %vm66, %v43, 0
    %1133 = vmatprep.subr.mxu0 0.0
    %1134 = vmatpush1.msra.mxu0 0.0
    %1135 = vmatprep.subr.mxu0 0.0
    %1136 = vmatpush1.msra.mxu0 0.0
    %1137 = vmatprep.subr.mxu0 0.0
    %1138 = vmatpush1.msra.mxu0 0.0
    %1139 = vmatprep.subr.mxu0 0.0
    %1140 = vmatpush1.msra.mxu0 0.0
    %1141 = vmatprep.subr.mxu0 0.0
    %1142 = vmatpush1.msra.mxu0 0.0
    %1143 = vmatprep.subr.mxu0 0.0
    %1144 = vmatpush1.msra.mxu0 0.0
    %1145 = vmatprep.subr.mxu0 0.0
    %1146 = vmatpush1.msra.mxu0 0.0
    %1147 = vmatprep.subr.mxu0 0.0
    %1148 = vmatpush1.msra.mxu0 0.0
    %1149 = vmatprep.subr.mxu0 0.0
    %1150 = vmatpush1.msra.mxu0 0.0
    %1151 = vmatprep.subr.mxu0 0.0
    %1152 = vmatpush1.msra.mxu0 0.0
    %1153 = vmatprep.subr.mxu0 0.0
    %1154 = vmatpush1.msra.mxu0 0.0
    %1155 = vmatprep.subr.mxu0 0.0
    %1156 = vmatpush1.msra.mxu0 0.0
    %1157 = vmatprep.subr.mxu0 0.0
    %1158 = vmatpush1.msra.mxu0 %v50
    %1159 = vmatprep.subr.mxu0 0.0
    %1160 = vmatpush1.msra.mxu0 %v49
    %1161 = vmatprep.subr.mxu0 0.0
    %1162 = vmatpush1.msra.mxu0 %v48
    %1163 = vmatprep.subr.mxu0 0.0
    %1164 = vmatpush1.msra.mxu0 %v47
    %1165 = vmatprep.subr.mxu0 0.0
    %1166 = vmatpush2.msra.mxu0 0.0
    %1167 = vmatprep.subr.mxu0 0.0
    %1168 = vmatpush2.msra.mxu0 0.0
    %1169 = vmatprep.subr.mxu0 0.0
    %1170 = vmatpush2.msra.mxu0 0.0
    %1171 = vmatprep.subr.mxu0 0.0
    %1172 = vmatpush2.msra.mxu0 0.0
    %1173 = vmatprep.subr.mxu0 0.0
    %1174 = vmatpush2.msra.mxu0 0.0
    %1175 = vmatprep.subr.mxu0 0.0
    %1176 = vmatpush2.msra.mxu0 0.0
    %1177 = vmatprep.subr.mxu0 0.0
    %1178 = vmatpush2.msra.mxu0 0.0
    %1179 = vmatprep.subr.mxu0 0.0
    %1180 = vmatpush2.msra.mxu0 0.0
    %1181 = vmatprep.subr.mxu0 0.0
    %1182 = vmatpush2.msra.mxu0 0.0
    %1183 = vmatprep.subr.mxu0 0.0
    %1184 = vmatpush2.msra.mxu0 0.0
    %1185 = vmatprep.subr.mxu0 0.0
    %1186 = vmatpush2.msra.mxu0 0.0
    %1187 = vmatprep.subr.mxu0 0.0
    %1188 = vmatpush2.msra.mxu0 0.0
    %1189 = vmatprep.subr.mxu0 0.0
    %1190 = vmatpush2.msra.mxu0 0.0
    %1191 = vmatprep.subr.mxu0 0.0
    %1192 = vmatpush2.msra.mxu0 0.0
    %1193 = vmatprep.subr.mxu0 0.0
    %1194 = vmatpush2.msra.mxu0 0.0
    %1195 = vmatprep.subr.mxu0 0.0
    %1196 = vmatpush2.msra.mxu0 0.0
    %1197 = vmatprep.mubr.f32.mxu0 0.0
    %1198 = vmatmul.mubr.f32.gmra.mxu0 %v1131
    %v1199 = vpop.f32.mrf.mxu0
    %v1200 = vadd.f32 %v1057, %v1199
    %v1201 = vpop.f32.mrf.mxu0
    %1202 = vdwg.mxu0
    %v1203 = vadd.f32 %v1200, %v296
    %v1204 = vxor.u32 %v1203, 2147483648
    %v1205 = vmul.f32 %v1204, 1.442695
    %v1206 = vpow.pop %v1205
    %v1207 = vadd.f32 %v1206, 1.0
    %v1208 = vrcp.pop %v1207
    %v1209 = vmul.f32 1.0, %v1208
    %1210 = vmatprep.subr.mxu0 0.0
    %1211 = vmatpush1.msra.mxu0 0.0
    %1212 = vmatprep.subr.mxu0 0.0
    %1213 = vmatpush1.msra.mxu0 0.0
    %1214 = vmatprep.subr.mxu0 0.0
    %1215 = vmatpush1.msra.mxu0 0.0
    %1216 = vmatprep.subr.mxu0 0.0
    %1217 = vmatpush1.msra.mxu0 0.0
    %1218 = vmatprep.subr.mxu0 0.0
    %1219 = vmatpush1.msra.mxu0 0.0
    %1220 = vmatprep.subr.mxu0 0.0
    %1221 = vmatpush1.msra.mxu0 0.0
    %1222 = vmatprep.subr.mxu0 0.0
    %1223 = vmatpush1.msra.mxu0 0.0
    %1224 = vmatprep.subr.mxu0 0.0
    %1225 = vmatpush1.msra.mxu0 0.0
    %1226 = vmatprep.subr.mxu0 0.0
    %1227 = vmatpush1.msra.mxu0 0.0
    %1228 = vmatprep.subr.mxu0 0.0
    %1229 = vmatpush1.msra.mxu0 0.0
    %1230 = vmatprep.subr.mxu0 0.0
    %1231 = vmatpush1.msra.mxu0 0.0
    %1232 = vmatprep.subr.mxu0 0.0
    %1233 = vmatpush1.msra.mxu0 0.0
    %1234 = vmatprep.subr.mxu0 0.0
    %1235 = vmatpush1.msra.mxu0 %v55
    %1236 = vmatprep.subr.mxu0 0.0
    %1237 = vmatpush1.msra.mxu0 %v54
    %1238 = vmatprep.subr.mxu0 0.0
    %1239 = vmatpush1.msra.mxu0 %v53
    %1240 = vmatprep.subr.mxu0 0.0
    %1241 = vmatpush1.msra.mxu0 %v52
    %1242 = vmatprep.subr.mxu0 0.0
    %1243 = vmatpush2.msra.mxu0 0.0
    %1244 = vmatprep.subr.mxu0 0.0
    %1245 = vmatpush2.msra.mxu0 0.0
    %1246 = vmatprep.subr.mxu0 0.0
    %1247 = vmatpush2.msra.mxu0 0.0
    %1248 = vmatprep.subr.mxu0 0.0
    %1249 = vmatpush2.msra.mxu0 0.0
    %1250 = vmatprep.subr.mxu0 0.0
    %1251 = vmatpush2.msra.mxu0 0.0
    %1252 = vmatprep.subr.mxu0 0.0
    %1253 = vmatpush2.msra.mxu0 0.0
    %1254 = vmatprep.subr.mxu0 0.0
    %1255 = vmatpush2.msra.mxu0 0.0
    %1256 = vmatprep.subr.mxu0 0.0
    %1257 = vmatpush2.msra.mxu0 0.0
    %1258 = vmatprep.subr.mxu0 0.0
    %1259 = vmatpush2.msra.mxu0 0.0
    %1260 = vmatprep.subr.mxu0 0.0
    %1261 = vmatpush2.msra.mxu0 0.0
    %1262 = vmatprep.subr.mxu0 0.0
    %1263 = vmatpush2.msra.mxu0 0.0
    %1264 = vmatprep.subr.mxu0 0.0
    %1265 = vmatpush2.msra.mxu0 0.0
    %1266 = vmatprep.subr.mxu0 0.0
    %1267 = vmatpush2.msra.mxu0 0.0
    %1268 = vmatprep.subr.mxu0 0.0
    %1269 = vmatpush2.msra.mxu0 0.0
    %1270 = vmatprep.subr.mxu0 0.0
    %1271 = vmatpush2.msra.mxu0 0.0
    %1272 = vmatprep.subr.mxu0 0.0
    %1273 = vmatpush2.msra.mxu0 0.0
    %1274 = vmatprep.mubr.f32.mxu0 0.0
    %1275 = vmatmul.mubr.f32.gmra.mxu0 %v1131
    %v1276 = vpop.f32.mrf.mxu0
    %v1277 = vadd.f32 %v1127, %v1276
    %v1278 = vpop.f32.mrf.mxu0
    %1279 = vdwg.mxu0
    %v1280 = vadd.f32 %v1277, %v377
    %v1281 = vxor.u32 %v1280, 2147483648
    %v1282 = vmul.f32 %v1281, 1.442695
    %v1283 = vpow.pop %v1282
    %v1284 = vadd.f32 %v1283, 1.0
    %v1285 = vrcp.pop %v1284
    %v1286 = vmul.f32 1.0, %v1285
    %1287 = vmatprep.subr.mxu0 0.0
    %1288 = vmatpush1.msra.mxu0 0.0
    %1289 = vmatprep.subr.mxu0 0.0
    %1290 = vmatpush1.msra.mxu0 0.0
    %1291 = vmatprep.subr.mxu0 0.0
    %1292 = vmatpush1.msra.mxu0 0.0
    %1293 = vmatprep.subr.mxu0 0.0
    %1294 = vmatpush1.msra.mxu0 0.0
    %1295 = vmatprep.subr.mxu0 0.0
    %1296 = vmatpush1.msra.mxu0 0.0
    %1297 = vmatprep.subr.mxu0 0.0
    %1298 = vmatpush1.msra.mxu0 0.0
    %1299 = vmatprep.subr.mxu0 0.0
    %1300 = vmatpush1.msra.mxu0 0.0
    %1301 = vmatprep.subr.mxu0 0.0
    %1302 = vmatpush1.msra.mxu0 0.0
    %1303 = vmatprep.subr.mxu0 0.0
    %1304 = vmatpush1.msra.mxu0 0.0
    %1305 = vmatprep.subr.mxu0 0.0
    %1306 = vmatpush1.msra.mxu0 0.0
    %1307 = vmatprep.subr.mxu0 0.0
    %1308 = vmatpush1.msra.mxu0 0.0
    %1309 = vmatprep.subr.mxu0 0.0
    %1310 = vmatpush1.msra.mxu0 0.0
    %1311 = vmatprep.subr.mxu0 0.0
    %1312 = vmatpush1.msra.mxu0 %v60
    %1313 = vmatprep.subr.mxu0 0.0
    %1314 = vmatpush1.msra.mxu0 %v59
    %1315 = vmatprep.subr.mxu0 0.0
    %1316 = vmatpush1.msra.mxu0 %v58
    %1317 = vmatprep.subr.mxu0 0.0
    %1318 = vmatpush1.msra.mxu0 %v57
    %1319 = vmatprep.subr.mxu0 0.0
    %1320 = vmatpush2.msra.mxu0 0.0
    %1321 = vmatprep.subr.mxu0 0.0
    %1322 = vmatpush2.msra.mxu0 0.0
    %1323 = vmatprep.subr.mxu0 0.0
    %1324 = vmatpush2.msra.mxu0 0.0
    %1325 = vmatprep.subr.mxu0 0.0
    %1326 = vmatpush2.msra.mxu0 0.0
    %1327 = vmatprep.subr.mxu0 0.0
    %1328 = vmatpush2.msra.mxu0 0.0
    %1329 = vmatprep.subr.mxu0 0.0
    %1330 = vmatpush2.msra.mxu0 0.0
    %1331 = vmatprep.subr.mxu0 0.0
    %1332 = vmatpush2.msra.mxu0 0.0
    %1333 = vmatprep.subr.mxu0 0.0
    %1334 = vmatpush2.msra.mxu0 0.0
    %1335 = vmatprep.subr.mxu0 0.0
    %1336 = vmatpush2.msra.mxu0 0.0
    %1337 = vmatprep.subr.mxu0 0.0
    %1338 = vmatpush2.msra.mxu0 0.0
    %1339 = vmatprep.subr.mxu0 0.0
    %1340 = vmatpush2.msra.mxu0 0.0
    %1341 = vmatprep.subr.mxu0 0.0
    %1342 = vmatpush2.msra.mxu0 0.0
    %1343 = vmatprep.subr.mxu0 0.0
    %1344 = vmatpush2.msra.mxu0 0.0
    %1345 = vmatprep.subr.mxu0 0.0
    %1346 = vmatpush2.msra.mxu0 0.0
    %1347 = vmatprep.subr.mxu0 0.0
    %1348 = vmatpush2.msra.mxu0 0.0
    %1349 = vmatprep.subr.mxu0 0.0
    %1350 = vmatpush2.msra.mxu0 0.0
    %1351 = vmatprep.mubr.f32.mxu0 0.0
    %1352 = vmatmul.mubr.f32.gmra.mxu0 %v1131
    %v1353 = vpop.f32.mrf.mxu0
    %v1354 = vadd.f32 %v388, %v1353
    %v1355 = vpop.f32.mrf.mxu0
    %1356 = vdwg.mxu0
    %1357 = vmatprep.subr.mxu0 0.0
    %1358 = vmatpush1.msra.mxu0 0.0
    %1359 = vmatprep.subr.mxu0 0.0
    %1360 = vmatpush1.msra.mxu0 0.0
    %1361 = vmatprep.subr.mxu0 0.0
    %1362 = vmatpush1.msra.mxu0 0.0
    %1363 = vmatprep.subr.mxu0 0.0
    %1364 = vmatpush1.msra.mxu0 0.0
    %1365 = vmatprep.subr.mxu0 0.0
    %1366 = vmatpush1.msra.mxu0 0.0
    %1367 = vmatprep.subr.mxu0 0.0
    %1368 = vmatpush1.msra.mxu0 0.0
    %1369 = vmatprep.subr.mxu0 0.0
    %1370 = vmatpush1.msra.mxu0 0.0
    %1371 = vmatprep.subr.mxu0 0.0
    %1372 = vmatpush1.msra.mxu0 0.0
    %1373 = vmatprep.subr.mxu0 0.0
    %1374 = vmatpush1.msra.mxu0 0.0
    %1375 = vmatprep.subr.mxu0 0.0
    %1376 = vmatpush1.msra.mxu0 0.0
    %1377 = vmatprep.subr.mxu0 0.0
    %1378 = vmatpush1.msra.mxu0 0.0
    %1379 = vmatprep.subr.mxu0 0.0
    %1380 = vmatpush1.msra.mxu0 0.0
    %1381 = vmatprep.subr.mxu0 0.0
    %1382 = vmatpush1.msra.mxu0 %v219
    %1383 = vmatprep.subr.mxu0 0.0
    %1384 = vmatpush1.msra.mxu0 %v218
    %1385 = vmatprep.subr.mxu0 0.0
    %1386 = vmatpush1.msra.mxu0 %v217
    %1387 = vmatprep.subr.mxu0 0.0
    %1388 = vmatpush1.msra.mxu0 %v216
    %1389 = vmatprep.subr.mxu0 0.0
    %1390 = vmatpush2.msra.mxu0 0.0
    %1391 = vmatprep.subr.mxu0 0.0
    %1392 = vmatpush2.msra.mxu0 0.0
    %1393 = vmatprep.subr.mxu0 0.0
    %1394 = vmatpush2.msra.mxu0 0.0
    %1395 = vmatprep.subr.mxu0 0.0
    %1396 = vmatpush2.msra.mxu0 0.0
    %1397 = vmatprep.subr.mxu0 0.0
    %1398 = vmatpush2.msra.mxu0 0.0
    %1399 = vmatprep.subr.mxu0 0.0
    %1400 = vmatpush2.msra.mxu0 0.0
    %1401 = vmatprep.subr.mxu0 0.0
    %1402 = vmatpush2.msra.mxu0 0.0
    %1403 = vmatprep.subr.mxu0 0.0
    %1404 = vmatpush2.msra.mxu0 0.0
    %1405 = vmatprep.subr.mxu0 0.0
    %1406 = vmatpush2.msra.mxu0 0.0
    %1407 = vmatprep.subr.mxu0 0.0
    %1408 = vmatpush2.msra.mxu0 0.0
    %1409 = vmatprep.subr.mxu0 0.0
    %1410 = vmatpush2.msra.mxu0 0.0
    %1411 = vmatprep.subr.mxu0 0.0
    %1412 = vmatpush2.msra.mxu0 0.0
    %1413 = vmatprep.subr.mxu0 0.0
    %1414 = vmatpush2.msra.mxu0 0.0
    %1415 = vmatprep.subr.mxu0 0.0
    %1416 = vmatpush2.msra.mxu0 0.0
    %1417 = vmatprep.subr.mxu0 0.0
    %1418 = vmatpush2.msra.mxu0 0.0
    %1419 = vmatprep.subr.mxu0 0.0
    %1420 = vmatpush2.msra.mxu0 0.0
    %1421 = vmatprep.mubr.f32.mxu0 0.0
    %1422 = vmatmul.mubr.f32.gmra.mxu0 %v988
    %v1423 = vpop.f32.mrf.mxu0
    %v1424 = vadd.f32 %v462, %v1423
    %v1425 = vpop.f32.mrf.mxu0
    %1426 = vdwg.mxu0
    %v1427 = vmul.f32 %v1209, %v1424
    %v1428 = vadd.f32 %v1354, %v1427
    %v1429 = vtanh.pop %v1428
    %v1430 = vsub.f32 1.0, %v1286
    %v1431 = vmul.f32 %v1430, %v1429
    %v1432 = vmul.f32 %v1286, %v986
    %v1433 = vadd.f32 %v1431, %v1432
    %v1435 = vsel %vm66, %v1433, 0
    %1437 = vmatprep.subr.mxu0 0.0
    %1438 = vmatpush1.msra.mxu0 0.0
    %1439 = vmatprep.subr.mxu0 0.0
    %1440 = vmatpush1.msra.mxu0 0.0
    %1441 = vmatprep.subr.mxu0 0.0
    %1442 = vmatpush1.msra.mxu0 0.0
    %1443 = vmatprep.subr.mxu0 0.0
    %1444 = vmatpush1.msra.mxu0 0.0
    %1445 = vmatprep.subr.mxu0 0.0
    %1446 = vmatpush1.msra.mxu0 0.0
    %1447 = vmatprep.subr.mxu0 0.0
    %1448 = vmatpush1.msra.mxu0 0.0
    %1449 = vmatprep.subr.mxu0 0.0
    %1450 = vmatpush1.msra.mxu0 0.0
    %1451 = vmatprep.subr.mxu0 0.0
    %1452 = vmatpush1.msra.mxu0 0.0
    %1453 = vmatprep.subr.mxu0 0.0
    %1454 = vmatpush1.msra.mxu0 0.0
    %1455 = vmatprep.subr.mxu0 0.0
    %1456 = vmatpush1.msra.mxu0 0.0
    %1457 = vmatprep.subr.mxu0 0.0
    %1458 = vmatpush1.msra.mxu0 0.0
    %1459 = vmatprep.subr.mxu0 0.0
    %1460 = vmatpush1.msra.mxu0 0.0
    %1461 = vmatprep.subr.mxu0 0.0
    %1462 = vmatpush1.msra.mxu0 %v65
    %1463 = vmatprep.subr.mxu0 0.0
    %1464 = vmatpush1.msra.mxu0 %v64
    %1465 = vmatprep.subr.mxu0 0.0
    %1466 = vmatpush1.msra.mxu0 %v63
    %1467 = vmatprep.subr.mxu0 0.0
    %1468 = vmatpush1.msra.mxu0 %v62
    %1469 = vmatprep.subr.mxu0 0.0
    %1470 = vmatpush2.msra.mxu0 0.0
    %1471 = vmatprep.subr.mxu0 0.0
    %1472 = vmatpush2.msra.mxu0 0.0
    %1473 = vmatprep.subr.mxu0 0.0
    %1474 = vmatpush2.msra.mxu0 0.0
    %1475 = vmatprep.subr.mxu0 0.0
    %1476 = vmatpush2.msra.mxu0 0.0
    %1477 = vmatprep.subr.mxu0 0.0
    %1478 = vmatpush2.msra.mxu0 0.0
    %1479 = vmatprep.subr.mxu0 0.0
    %1480 = vmatpush2.msra.mxu0 0.0
    %1481 = vmatprep.subr.mxu0 0.0
    %1482 = vmatpush2.msra.mxu0 0.0
    %1483 = vmatprep.subr.mxu0 0.0
    %1484 = vmatpush2.msra.mxu0 0.0
    %1485 = vmatprep.subr.mxu0 0.0
    %1486 = vmatpush2.msra.mxu0 0.0
    %1487 = vmatprep.subr.mxu0 0.0
    %1488 = vmatpush2.msra.mxu0 0.0
    %1489 = vmatprep.subr.mxu0 0.0
    %1490 = vmatpush2.msra.mxu0 0.0
    %1491 = vmatprep.subr.mxu0 0.0
    %1492 = vmatpush2.msra.mxu0 0.0
    %1493 = vmatprep.subr.mxu0 0.0
    %1494 = vmatpush2.msra.mxu0 0.0
    %1495 = vmatprep.subr.mxu0 0.0
    %1496 = vmatpush2.msra.mxu0 0.0
    %1497 = vmatprep.subr.mxu0 0.0
    %1498 = vmatpush2.msra.mxu0 0.0
    %1499 = vmatprep.subr.mxu0 0.0
    %1500 = vmatpush2.msra.mxu0 0.0
    %1501 = vmatprep.mubr.f32.mxu0 0.0
    %1502 = vmatmul.mubr.f32.gmra.mxu0 %v1435
    %v1503 = vpop.f32.mrf.mxu0
    %v1504 = vadd.f32 0.0, %v1503
    %v1505 = vpop.f32.mrf.mxu0
    %1506 = vdwg.mxu0
    %1507 = vmatprep.subr.mxu0 0.0
    %1508 = vmatpush1.msra.mxu0 0.0
    %1509 = vmatprep.subr.mxu0 0.0
    %1510 = vmatpush1.msra.mxu0 0.0
    %1511 = vmatprep.subr.mxu0 0.0
    %1512 = vmatpush1.msra.mxu0 0.0
    %1513 = vmatprep.subr.mxu0 0.0
    %1514 = vmatpush1.msra.mxu0 0.0
    %1515 = vmatprep.subr.mxu0 0.0
    %1516 = vmatpush1.msra.mxu0 0.0
    %1517 = vmatprep.subr.mxu0 0.0
    %1518 = vmatpush1.msra.mxu0 0.0
    %1519 = vmatprep.subr.mxu0 0.0
    %1520 = vmatpush1.msra.mxu0 0.0
    %1521 = vmatprep.subr.mxu0 0.0
    %1522 = vmatpush1.msra.mxu0 0.0
    %1523 = vmatprep.subr.mxu0 0.0
    %1524 = vmatpush1.msra.mxu0 0.0
    %1525 = vmatprep.subr.mxu0 0.0
    %1526 = vmatpush1.msra.mxu0 0.0
    %1527 = vmatprep.subr.mxu0 0.0
    %1528 = vmatpush1.msra.mxu0 0.0
    %1529 = vmatprep.subr.mxu0 0.0
    %1530 = vmatpush1.msra.mxu0 0.0
    %1531 = vmatprep.subr.mxu0 0.0
    %1532 = vmatpush1.msra.mxu0 %v144
    %1533 = vmatprep.subr.mxu0 0.0
    %1534 = vmatpush1.msra.mxu0 %v143
    %1535 = vmatprep.subr.mxu0 0.0
    %1536 = vmatpush1.msra.mxu0 %v142
    %1537 = vmatprep.subr.mxu0 0.0
    %1538 = vmatpush1.msra.mxu0 %v141
    %1539 = vmatprep.subr.mxu0 0.0
    %1540 = vmatpush2.msra.mxu0 0.0
    %1541 = vmatprep.subr.mxu0 0.0
    %1542 = vmatpush2.msra.mxu0 0.0
    %1543 = vmatprep.subr.mxu0 0.0
    %1544 = vmatpush2.msra.mxu0 0.0
    %1545 = vmatprep.subr.mxu0 0.0
    %1546 = vmatpush2.msra.mxu0 0.0
    %1547 = vmatprep.subr.mxu0 0.0
    %1548 = vmatpush2.msra.mxu0 0.0
    %1549 = vmatprep.subr.mxu0 0.0
    %1550 = vmatpush2.msra.mxu0 0.0
    %1551 = vmatprep.subr.mxu0 0.0
    %1552 = vmatpush2.msra.mxu0 0.0
    %1553 = vmatprep.subr.mxu0 0.0
    %1554 = vmatpush2.msra.mxu0 0.0
    %1555 = vmatprep.subr.mxu0 0.0
    %1556 = vmatpush2.msra.mxu0 0.0
    %1557 = vmatprep.subr.mxu0 0.0
    %1558 = vmatpush2.msra.mxu0 0.0
    %1559 = vmatprep.subr.mxu0 0.0
    %1560 = vmatpush2.msra.mxu0 0.0
    %1561 = vmatprep.subr.mxu0 0.0
    %1562 = vmatpush2.msra.mxu0 0.0
    %1563 = vmatprep.subr.mxu0 0.0
    %1564 = vmatpush2.msra.mxu0 0.0
    %1565 = vmatprep.subr.mxu0 0.0
    %1566 = vmatpush2.msra.mxu0 0.0
    %1567 = vmatprep.subr.mxu0 0.0
    %1568 = vmatpush2.msra.mxu0 0.0
    %1569 = vmatprep.subr.mxu0 0.0
    %1570 = vmatpush2.msra.mxu0 0.0
    %1571 = vmatprep.mubr.f32.mxu0 0.0
    %1572 = vmatmul.mubr.f32.gmra.mxu0 %v1435
    %v1573 = vpop.f32.mrf.mxu0
    %v1574 = vadd.f32 0.0, %v1573
    %v1575 = vpop.f32.mrf.mxu0
    %1576 = vdwg.mxu0
    %v1578 = vsel %vm66, %v45, 0
    %1580 = vmatprep.subr.mxu0 0.0
    %1581 = vmatpush1.msra.mxu0 0.0
    %1582 = vmatprep.subr.mxu0 0.0
    %1583 = vmatpush1.msra.mxu0 0.0
    %1584 = vmatprep.subr.mxu0 0.0
    %1585 = vmatpush1.msra.mxu0 0.0
    %1586 = vmatprep.subr.mxu0 0.0
    %1587 = vmatpush1.msra.mxu0 0.0
    %1588 = vmatprep.subr.mxu0 0.0
    %1589 = vmatpush1.msra.mxu0 0.0
    %1590 = vmatprep.subr.mxu0 0.0
    %1591 = vmatpush1.msra.mxu0 0.0
    %1592 = vmatprep.subr.mxu0 0.0
    %1593 = vmatpush1.msra.mxu0 0.0
    %1594 = vmatprep.subr.mxu0 0.0
    %1595 = vmatpush1.msra.mxu0 0.0
    %1596 = vmatprep.subr.mxu0 0.0
    %1597 = vmatpush1.msra.mxu0 0.0
    %1598 = vmatprep.subr.mxu0 0.0
    %1599 = vmatpush1.msra.mxu0 0.0
    %1600 = vmatprep.subr.mxu0 0.0
    %1601 = vmatpush1.msra.mxu0 0.0
    %1602 = vmatprep.subr.mxu0 0.0
    %1603 = vmatpush1.msra.mxu0 0.0
    %1604 = vmatprep.subr.mxu0 0.0
    %1605 = vmatpush1.msra.mxu0 %v50
    %1606 = vmatprep.subr.mxu0 0.0
    %1607 = vmatpush1.msra.mxu0 %v49
    %1608 = vmatprep.subr.mxu0 0.0
    %1609 = vmatpush1.msra.mxu0 %v48
    %1610 = vmatprep.subr.mxu0 0.0
    %1611 = vmatpush1.msra.mxu0 %v47
    %1612 = vmatprep.subr.mxu0 0.0
    %1613 = vmatpush2.msra.mxu0 0.0
    %1614 = vmatprep.subr.mxu0 0.0
    %1615 = vmatpush2.msra.mxu0 0.0
    %1616 = vmatprep.subr.mxu0 0.0
    %1617 = vmatpush2.msra.mxu0 0.0
    %1618 = vmatprep.subr.mxu0 0.0
    %1619 = vmatpush2.msra.mxu0 0.0
    %1620 = vmatprep.subr.mxu0 0.0
    %1621 = vmatpush2.msra.mxu0 0.0
    %1622 = vmatprep.subr.mxu0 0.0
    %1623 = vmatpush2.msra.mxu0 0.0
    %1624 = vmatprep.subr.mxu0 0.0
    %1625 = vmatpush2.msra.mxu0 0.0
    %1626 = vmatprep.subr.mxu0 0.0
    %1627 = vmatpush2.msra.mxu0 0.0
    %1628 = vmatprep.subr.mxu0 0.0
    %1629 = vmatpush2.msra.mxu0 0.0
    %1630 = vmatprep.subr.mxu0 0.0
    %1631 = vmatpush2.msra.mxu0 0.0
    %1632 = vmatprep.subr.mxu0 0.0
    %1633 = vmatpush2.msra.mxu0 0.0
    %1634 = vmatprep.subr.mxu0 0.0
    %1635 = vmatpush2.msra.mxu0 0.0
    %1636 = vmatprep.subr.mxu0 0.0
    %1637 = vmatpush2.msra.mxu0 0.0
    %1638 = vmatprep.subr.mxu0 0.0
    %1639 = vmatpush2.msra.mxu0 0.0
    %1640 = vmatprep.subr.mxu0 0.0
    %1641 = vmatpush2.msra.mxu0 0.0
    %1642 = vmatprep.subr.mxu0 0.0
    %1643 = vmatpush2.msra.mxu0 0.0
    %1644 = vmatprep.mubr.f32.mxu0 0.0
    %1645 = vmatmul.mubr.f32.gmra.mxu0 %v1578
    %v1646 = vpop.f32.mrf.mxu0
    %v1647 = vadd.f32 %v1504, %v1646
    %v1648 = vpop.f32.mrf.mxu0
    %1649 = vdwg.mxu0
    %v1650 = vadd.f32 %v1647, %v296
    %v1651 = vxor.u32 %v1650, 2147483648
    %v1652 = vmul.f32 %v1651, 1.442695
    %v1653 = vpow.pop %v1652
    %v1654 = vadd.f32 %v1653, 1.0
    %v1655 = vrcp.pop %v1654
    %v1656 = vmul.f32 1.0, %v1655
    %1657 = vmatprep.subr.mxu0 0.0
    %1658 = vmatpush1.msra.mxu0 0.0
    %1659 = vmatprep.subr.mxu0 0.0
    %1660 = vmatpush1.msra.mxu0 0.0
    %1661 = vmatprep.subr.mxu0 0.0
    %1662 = vmatpush1.msra.mxu0 0.0
    %1663 = vmatprep.subr.mxu0 0.0
    %1664 = vmatpush1.msra.mxu0 0.0
    %1665 = vmatprep.subr.mxu0 0.0
    %1666 = vmatpush1.msra.mxu0 0.0
    %1667 = vmatprep.subr.mxu0 0.0
    %1668 = vmatpush1.msra.mxu0 0.0
    %1669 = vmatprep.subr.mxu0 0.0
    %1670 = vmatpush1.msra.mxu0 0.0
    %1671 = vmatprep.subr.mxu0 0.0
    %1672 = vmatpush1.msra.mxu0 0.0
    %1673 = vmatprep.subr.mxu0 0.0
    %1674 = vmatpush1.msra.mxu0 0.0
    %1675 = vmatprep.subr.mxu0 0.0
    %1676 = vmatpush1.msra.mxu0 0.0
    %1677 = vmatprep.subr.mxu0 0.0
    %1678 = vmatpush1.msra.mxu0 0.0
    %1679 = vmatprep.subr.mxu0 0.0
    %1680 = vmatpush1.msra.mxu0 0.0
    %1681 = vmatprep.subr.mxu0 0.0
    %1682 = vmatpush1.msra.mxu0 %v55
    %1683 = vmatprep.subr.mxu0 0.0
    %1684 = vmatpush1.msra.mxu0 %v54
    %1685 = vmatprep.subr.mxu0 0.0
    %1686 = vmatpush1.msra.mxu0 %v53
    %1687 = vmatprep.subr.mxu0 0.0
    %1688 = vmatpush1.msra.mxu0 %v52
    %1689 = vmatprep.subr.mxu0 0.0
    %1690 = vmatpush2.msra.mxu0 0.0
    %1691 = vmatprep.subr.mxu0 0.0
    %1692 = vmatpush2.msra.mxu0 0.0
    %1693 = vmatprep.subr.mxu0 0.0
    %1694 = vmatpush2.msra.mxu0 0.0
    %1695 = vmatprep.subr.mxu0 0.0
    %1696 = vmatpush2.msra.mxu0 0.0
    %1697 = vmatprep.subr.mxu0 0.0
    %1698 = vmatpush2.msra.mxu0 0.0
    %1699 = vmatprep.subr.mxu0 0.0
    %1700 = vmatpush2.msra.mxu0 0.0
    %1701 = vmatprep.subr.mxu0 0.0
    %1702 = vmatpush2.msra.mxu0 0.0
    %1703 = vmatprep.subr.mxu0 0.0
    %1704 = vmatpush2.msra.mxu0 0.0
    %1705 = vmatprep.subr.mxu0 0.0
    %1706 = vmatpush2.msra.mxu0 0.0
    %1707 = vmatprep.subr.mxu0 0.0
    %1708 = vmatpush2.msra.mxu0 0.0
    %1709 = vmatprep.subr.mxu0 0.0
    %1710 = vmatpush2.msra.mxu0 0.0
    %1711 = vmatprep.subr.mxu0 0.0
    %1712 = vmatpush2.msra.mxu0 0.0
    %1713 = vmatprep.subr.mxu0 0.0
    %1714 = vmatpush2.msra.mxu0 0.0
    %1715 = vmatprep.subr.mxu0 0.0
    %1716 = vmatpush2.msra.mxu0 0.0
    %1717 = vmatprep.subr.mxu0 0.0
    %1718 = vmatpush2.msra.mxu0 0.0
    %1719 = vmatprep.subr.mxu0 0.0
    %1720 = vmatpush2.msra.mxu0 0.0
    %1721 = vmatprep.mubr.f32.mxu0 0.0
    %1722 = vmatmul.mubr.f32.gmra.mxu0 %v1578
    %v1723 = vpop.f32.mrf.mxu0
    %v1724 = vadd.f32 %v1574, %v1723
    %v1725 = vpop.f32.mrf.mxu0
    %1726 = vdwg.mxu0
    %v1727 = vadd.f32 %v1724, %v377
    %v1728 = vxor.u32 %v1727, 2147483648
    %v1729 = vmul.f32 %v1728, 1.442695
    %v1730 = vpow.pop %v1729
    %v1731 = vadd.f32 %v1730, 1.0
    %v1732 = vrcp.pop %v1731
    %v1733 = vmul.f32 1.0, %v1732
    %1734 = vmatprep.subr.mxu0 0.0
    %1735 = vmatpush1.msra.mxu0 0.0
    %1736 = vmatprep.subr.mxu0 0.0
    %1737 = vmatpush1.msra.mxu0 0.0
    %1738 = vmatprep.subr.mxu0 0.0
    %1739 = vmatpush1.msra.mxu0 0.0
    %1740 = vmatprep.subr.mxu0 0.0
    %1741 = vmatpush1.msra.mxu0 0.0
    %1742 = vmatprep.subr.mxu0 0.0
    %1743 = vmatpush1.msra.mxu0 0.0
    %1744 = vmatprep.subr.mxu0 0.0
    %1745 = vmatpush1.msra.mxu0 0.0
    %1746 = vmatprep.subr.mxu0 0.0
    %1747 = vmatpush1.msra.mxu0 0.0
    %1748 = vmatprep.subr.mxu0 0.0
    %1749 = vmatpush1.msra.mxu0 0.0
    %1750 = vmatprep.subr.mxu0 0.0
    %1751 = vmatpush1.msra.mxu0 0.0
    %1752 = vmatprep.subr.mxu0 0.0
    %1753 = vmatpush1.msra.mxu0 0.0
    %1754 = vmatprep.subr.mxu0 0.0
    %1755 = vmatpush1.msra.mxu0 0.0
    %1756 = vmatprep.subr.mxu0 0.0
    %1757 = vmatpush1.msra.mxu0 0.0
    %1758 = vmatprep.subr.mxu0 0.0
    %1759 = vmatpush1.msra.mxu0 %v60
    %1760 = vmatprep.subr.mxu0 0.0
    %1761 = vmatpush1.msra.mxu0 %v59
    %1762 = vmatprep.subr.mxu0 0.0
    %1763 = vmatpush1.msra.mxu0 %v58
    %1764 = vmatprep.subr.mxu0 0.0
    %1765 = vmatpush1.msra.mxu0 %v57
    %1766 = vmatprep.subr.mxu0 0.0
    %1767 = vmatpush2.msra.mxu0 0.0
    %1768 = vmatprep.subr.mxu0 0.0
    %1769 = vmatpush2.msra.mxu0 0.0
    %1770 = vmatprep.subr.mxu0 0.0
    %1771 = vmatpush2.msra.mxu0 0.0
    %1772 = vmatprep.subr.mxu0 0.0
    %1773 = vmatpush2.msra.mxu0 0.0
    %1774 = vmatprep.subr.mxu0 0.0
    %1775 = vmatpush2.msra.mxu0 0.0
    %1776 = vmatprep.subr.mxu0 0.0
    %1777 = vmatpush2.msra.mxu0 0.0
    %1778 = vmatprep.subr.mxu0 0.0
    %1779 = vmatpush2.msra.mxu0 0.0
    %1780 = vmatprep.subr.mxu0 0.0
    %1781 = vmatpush2.msra.mxu0 0.0
    %1782 = vmatprep.subr.mxu0 0.0
    %1783 = vmatpush2.msra.mxu0 0.0
    %1784 = vmatprep.subr.mxu0 0.0
    %1785 = vmatpush2.msra.mxu0 0.0
    %1786 = vmatprep.subr.mxu0 0.0
    %1787 = vmatpush2.msra.mxu0 0.0
    %1788 = vmatprep.subr.mxu0 0.0
    %1789 = vmatpush2.msra.mxu0 0.0
    %1790 = vmatprep.subr.mxu0 0.0
    %1791 = vmatpush2.msra.mxu0 0.0
    %1792 = vmatprep.subr.mxu0 0.0
    %1793 = vmatpush2.msra.mxu0 0.0
    %1794 = vmatprep.subr.mxu0 0.0
    %1795 = vmatpush2.msra.mxu0 0.0
    %1796 = vmatprep.subr.mxu0 0.0
    %1797 = vmatpush2.msra.mxu0 0.0
    %1798 = vmatprep.mubr.f32.mxu0 0.0
    %1799 = vmatmul.mubr.f32.gmra.mxu0 %v1578
    %v1800 = vpop.f32.mrf.mxu0
    %v1801 = vadd.f32 %v388, %v1800
    %v1802 = vpop.f32.mrf.mxu0
    %1803 = vdwg.mxu0
    %1804 = vmatprep.subr.mxu0 0.0
    %1805 = vmatpush1.msra.mxu0 0.0
    %1806 = vmatprep.subr.mxu0 0.0
    %1807 = vmatpush1.msra.mxu0 0.0
    %1808 = vmatprep.subr.mxu0 0.0
    %1809 = vmatpush1.msra.mxu0 0.0
    %1810 = vmatprep.subr.mxu0 0.0
    %1811 = vmatpush1.msra.mxu0 0.0
    %1812 = vmatprep.subr.mxu0 0.0
    %1813 = vmatpush1.msra.mxu0 0.0
    %1814 = vmatprep.subr.mxu0 0.0
    %1815 = vmatpush1.msra.mxu0 0.0
    %1816 = vmatprep.subr.mxu0 0.0
    %1817 = vmatpush1.msra.mxu0 0.0
    %1818 = vmatprep.subr.mxu0 0.0
    %1819 = vmatpush1.msra.mxu0 0.0
    %1820 = vmatprep.subr.mxu0 0.0
    %1821 = vmatpush1.msra.mxu0 0.0
    %1822 = vmatprep.subr.mxu0 0.0
    %1823 = vmatpush1.msra.mxu0 0.0
    %1824 = vmatprep.subr.mxu0 0.0
    %1825 = vmatpush1.msra.mxu0 0.0
    %1826 = vmatprep.subr.mxu0 0.0
    %1827 = vmatpush1.msra.mxu0 0.0
    %1828 = vmatprep.subr.mxu0 0.0
    %1829 = vmatpush1.msra.mxu0 %v219
    %1830 = vmatprep.subr.mxu0 0.0
    %1831 = vmatpush1.msra.mxu0 %v218
    %1832 = vmatprep.subr.mxu0 0.0
    %1833 = vmatpush1.msra.mxu0 %v217
    %1834 = vmatprep.subr.mxu0 0.0
    %1835 = vmatpush1.msra.mxu0 %v216
    %1836 = vmatprep.subr.mxu0 0.0
    %1837 = vmatpush2.msra.mxu0 0.0
    %1838 = vmatprep.subr.mxu0 0.0
    %1839 = vmatpush2.msra.mxu0 0.0
    %1840 = vmatprep.subr.mxu0 0.0
    %1841 = vmatpush2.msra.mxu0 0.0
    %1842 = vmatprep.subr.mxu0 0.0
    %1843 = vmatpush2.msra.mxu0 0.0
    %1844 = vmatprep.subr.mxu0 0.0
    %1845 = vmatpush2.msra.mxu0 0.0
    %1846 = vmatprep.subr.mxu0 0.0
    %1847 = vmatpush2.msra.mxu0 0.0
    %1848 = vmatprep.subr.mxu0 0.0
    %1849 = vmatpush2.msra.mxu0 0.0
    %1850 = vmatprep.subr.mxu0 0.0
    %1851 = vmatpush2.msra.mxu0 0.0
    %1852 = vmatprep.subr.mxu0 0.0
    %1853 = vmatpush2.msra.mxu0 0.0
    %1854 = vmatprep.subr.mxu0 0.0
    %1855 = vmatpush2.msra.mxu0 0.0
    %1856 = vmatprep.subr.mxu0 0.0
    %1857 = vmatpush2.msra.mxu0 0.0
    %1858 = vmatprep.subr.mxu0 0.0
    %1859 = vmatpush2.msra.mxu0 0.0
    %1860 = vmatprep.subr.mxu0 0.0
    %1861 = vmatpush2.msra.mxu0 0.0
    %1862 = vmatprep.subr.mxu0 0.0
    %1863 = vmatpush2.msra.mxu0 0.0
    %1864 = vmatprep.subr.mxu0 0.0
    %1865 = vmatpush2.msra.mxu0 0.0
    %1866 = vmatprep.subr.mxu0 0.0
    %1867 = vmatpush2.msra.mxu0 0.0
    %1868 = vmatprep.mubr.f32.mxu0 0.0
    %1869 = vmatmul.mubr.f32.gmra.mxu0 %v1435
    %v1870 = vpop.f32.mrf.mxu0
    %v1871 = vadd.f32 %v462, %v1870
    %v1872 = vpop.f32.mrf.mxu0
    %1873 = vdwg.mxu0
    %v1874 = vmul.f32 %v1656, %v1871
    %v1875 = vadd.f32 %v1801, %v1874
    %v1876 = vtanh.pop %v1875
    %v1877 = vsub.f32 1.0, %v1733
    %v1878 = vmul.f32 %v1877, %v1876
    %v1879 = vmul.f32 %v1733, %v1433
    %v1880 = vadd.f32 %v1878, %v1879
    %vm1881 = vcmask 254976
    %1882 = vst.msk [vmem:[#allocation4] sm:$0x3] %vm1881, %v1880
    %v1883 = vld [vmem:[%s7] sm:$0xf]
    %v1884 = vld [vmem:[%s5] sm:$0xff]
    %v1885 = vld [vmem:[%s5 + $0x8] sm:$0xff]
    %v1886 = vld [vmem:[%s5 + $0x10] sm:$0xff]
    %v1887 = vld [vmem:[%s5 + $0x18] sm:$0xff]
    %s1888 = scalar_lea.vmem %s5, 32
    %v1889 = vld [vmem:[%s1888] sm:$0xff]
    %v1890 = vld [vmem:[%s1888 + $0x8] sm:$0xff]
    %v1891 = vld [vmem:[%s1888 + $0x10] sm:$0xff]
    %v1892 = vld [vmem:[%s1888 + $0x18] sm:$0xff]
    %s1893 = scalar_lea.vmem %s5, 64
    %v1894 = vld [vmem:[%s1893] sm:$0xff]
    %v1895 = vld [vmem:[%s1893 + $0x8] sm:$0xff]
    %v1896 = vld [vmem:[%s1893 + $0x10] sm:$0xff]
    %v1897 = vld [vmem:[%s1893 + $0x18] sm:$0xff]
    %s1898 = scalar_lea.vmem %s1, 2
    %v1899 = vld [vmem:[%s1898] sm:$0x3]
    %v1900 = vld [vmem:[%s6] sm:$0xff]
    %v1901 = vld [vmem:[%s6 + $0x8] sm:$0xff]
    %v1902 = vld [vmem:[%s6 + $0x10] sm:$0xff]
    %v1903 = vld [vmem:[%s6 + $0x18] sm:$0xff]
    %v1905 = vsel %vm66, %v1899, 0
    %1907 = vmatprep.subr.mxu0 0.0
    %1908 = vmatpush1.msra.mxu0 0.0
    %1909 = vmatprep.subr.mxu0 0.0
    %1910 = vmatpush1.msra.mxu0 0.0
    %1911 = vmatprep.subr.mxu0 0.0
    %1912 = vmatpush1.msra.mxu0 0.0
    %1913 = vmatprep.subr.mxu0 0.0
    %1914 = vmatpush1.msra.mxu0 0.0
    %1915 = vmatprep.subr.mxu0 0.0
    %1916 = vmatpush1.msra.mxu0 0.0
    %1917 = vmatprep.subr.mxu0 0.0
    %1918 = vmatpush1.msra.mxu0 0.0
    %1919 = vmatprep.subr.mxu0 0.0
    %1920 = vmatpush1.msra.mxu0 0.0
    %1921 = vmatprep.subr.mxu0 0.0
    %1922 = vmatpush1.msra.mxu0 0.0
    %1923 = vmatprep.subr.mxu0 0.0
    %1924 = vmatpush1.msra.mxu0 0.0
    %1925 = vmatprep.subr.mxu0 0.0
    %1926 = vmatpush1.msra.mxu0 0.0
    %1927 = vmatprep.subr.mxu0 0.0
    %1928 = vmatpush1.msra.mxu0 0.0
    %1929 = vmatprep.subr.mxu0 0.0
    %1930 = vmatpush1.msra.mxu0 0.0
    %1931 = vmatprep.subr.mxu0 0.0
    %1932 = vmatpush1.msra.mxu0 %v1903
    %1933 = vmatprep.subr.mxu0 0.0
    %1934 = vmatpush1.msra.mxu0 %v1902
    %1935 = vmatprep.subr.mxu0 0.0
    %1936 = vmatpush1.msra.mxu0 %v1901
    %1937 = vmatprep.subr.mxu0 0.0
    %1938 = vmatpush1.msra.mxu0 %v1900
    %1939 = vmatprep.subr.mxu0 0.0
    %1940 = vmatpush2.msra.mxu0 0.0
    %1941 = vmatprep.subr.mxu0 0.0
    %1942 = vmatpush2.msra.mxu0 0.0
    %1943 = vmatprep.subr.mxu0 0.0
    %1944 = vmatpush2.msra.mxu0 0.0
    %1945 = vmatprep.subr.mxu0 0.0
    %1946 = vmatpush2.msra.mxu0 0.0
    %1947 = vmatprep.subr.mxu0 0.0
    %1948 = vmatpush2.msra.mxu0 0.0
    %1949 = vmatprep.subr.mxu0 0.0
    %1950 = vmatpush2.msra.mxu0 0.0
    %1951 = vmatprep.subr.mxu0 0.0
    %1952 = vmatpush2.msra.mxu0 0.0
    %1953 = vmatprep.subr.mxu0 0.0
    %1954 = vmatpush2.msra.mxu0 0.0
    %1955 = vmatprep.subr.mxu0 0.0
    %1956 = vmatpush2.msra.mxu0 0.0
    %1957 = vmatprep.subr.mxu0 0.0
    %1958 = vmatpush2.msra.mxu0 0.0
    %1959 = vmatprep.subr.mxu0 0.0
    %1960 = vmatpush2.msra.mxu0 0.0
    %1961 = vmatprep.subr.mxu0 0.0
    %1962 = vmatpush2.msra.mxu0 0.0
    %1963 = vmatprep.subr.mxu0 0.0
    %1964 = vmatpush2.msra.mxu0 0.0
    %1965 = vmatprep.subr.mxu0 0.0
    %1966 = vmatpush2.msra.mxu0 0.0
    %1967 = vmatprep.subr.mxu0 0.0
    %1968 = vmatpush2.msra.mxu0 0.0
    %1969 = vmatprep.subr.mxu0 0.0
    %1970 = vmatpush2.msra.mxu0 0.0
    %1971 = vmatprep.mubr.f32.mxu0 0.0
    %1972 = vmatmul.mubr.f32.gmra.mxu0 %v1905
    %v1973 = vpop.f32.mrf.mxu0
    %v1974 = vadd.f32 0.0, %v1973
    %v1975 = vpop.f32.mrf.mxu0
    %1976 = vdwg.mxu0
    %s1977 = scalar_lea.vmem %s6, 32
    %v1978 = vld [vmem:[%s1977] sm:$0xff]
    %v1979 = vld [vmem:[%s1977 + $0x8] sm:$0xff]
    %v1980 = vld [vmem:[%s1977 + $0x10] sm:$0xff]
    %v1981 = vld [vmem:[%s1977 + $0x18] sm:$0xff]
    %1982 = vmatprep.subr.mxu0 0.0
    %1983 = vmatpush1.msra.mxu0 0.0
    %1984 = vmatprep.subr.mxu0 0.0
    %1985 = vmatpush1.msra.mxu0 0.0
    %1986 = vmatprep.subr.mxu0 0.0
    %1987 = vmatpush1.msra.mxu0 0.0
    %1988 = vmatprep.subr.mxu0 0.0
    %1989 = vmatpush1.msra.mxu0 0.0
    %1990 = vmatprep.subr.mxu0 0.0
    %1991 = vmatpush1.msra.mxu0 0.0
    %1992 = vmatprep.subr.mxu0 0.0
    %1993 = vmatpush1.msra.mxu0 0.0
    %1994 = vmatprep.subr.mxu0 0.0
    %1995 = vmatpush1.msra.mxu0 0.0
    %1996 = vmatprep.subr.mxu0 0.0
    %1997 = vmatpush1.msra.mxu0 0.0
    %1998 = vmatprep.subr.mxu0 0.0
    %1999 = vmatpush1.msra.mxu0 0.0
    %2000 = vmatprep.subr.mxu0 0.0
    %2001 = vmatpush1.msra.mxu0 0.0
    %2002 = vmatprep.subr.mxu0 0.0
    %2003 = vmatpush1.msra.mxu0 0.0
    %2004 = vmatprep.subr.mxu0 0.0
    %2005 = vmatpush1.msra.mxu0 0.0
    %2006 = vmatprep.subr.mxu0 0.0
    %2007 = vmatpush1.msra.mxu0 %v1981
    %2008 = vmatprep.subr.mxu0 0.0
    %2009 = vmatpush1.msra.mxu0 %v1980
    %2010 = vmatprep.subr.mxu0 0.0
    %2011 = vmatpush1.msra.mxu0 %v1979
    %2012 = vmatprep.subr.mxu0 0.0
    %2013 = vmatpush1.msra.mxu0 %v1978
    %2014 = vmatprep.subr.mxu0 0.0
    %2015 = vmatpush2.msra.mxu0 0.0
    %2016 = vmatprep.subr.mxu0 0.0
    %2017 = vmatpush2.msra.mxu0 0.0
    %2018 = vmatprep.subr.mxu0 0.0
    %2019 = vmatpush2.msra.mxu0 0.0
    %2020 = vmatprep.subr.mxu0 0.0
    %2021 = vmatpush2.msra.mxu0 0.0
    %2022 = vmatprep.subr.mxu0 0.0
    %2023 = vmatpush2.msra.mxu0 0.0
    %2024 = vmatprep.subr.mxu0 0.0
    %2025 = vmatpush2.msra.mxu0 0.0
    %2026 = vmatprep.subr.mxu0 0.0
    %2027 = vmatpush2.msra.mxu0 0.0
    %2028 = vmatprep.subr.mxu0 0.0
    %2029 = vmatpush2.msra.mxu0 0.0
    %2030 = vmatprep.subr.mxu0 0.0
    %2031 = vmatpush2.msra.mxu0 0.0
    %2032 = vmatprep.subr.mxu0 0.0
    %2033 = vmatpush2.msra.mxu0 0.0
    %2034 = vmatprep.subr.mxu0 0.0
    %2035 = vmatpush2.msra.mxu0 0.0
    %2036 = vmatprep.subr.mxu0 0.0
    %2037 = vmatpush2.msra.mxu0 0.0
    %2038 = vmatprep.subr.mxu0 0.0
    %2039 = vmatpush2.msra.mxu0 0.0
    %2040 = vmatprep.subr.mxu0 0.0
    %2041 = vmatpush2.msra.mxu0 0.0
    %2042 = vmatprep.subr.mxu0 0.0
    %2043 = vmatpush2.msra.mxu0 0.0
    %2044 = vmatprep.subr.mxu0 0.0
    %2045 = vmatpush2.msra.mxu0 0.0
    %2046 = vmatprep.mubr.f32.mxu0 0.0
    %2047 = vmatmul.mubr.f32.gmra.mxu0 %v1905
    %v2048 = vpop.f32.mrf.mxu0
    %v2049 = vadd.f32 0.0, %v2048
    %v2050 = vpop.f32.mrf.mxu0
    %2051 = vdwg.mxu0
    %s2052 = scalar_lea.vmem %s6, 64
    %v2053 = vld [vmem:[%s2052] sm:$0xff]
    %v2054 = vld [vmem:[%s2052 + $0x8] sm:$0xff]
    %v2055 = vld [vmem:[%s2052 + $0x10] sm:$0xff]
    %v2056 = vld [vmem:[%s2052 + $0x18] sm:$0xff]
    %2057 = vmatprep.subr.mxu0 0.0
    %2058 = vmatpush1.msra.mxu0 0.0
    %2059 = vmatprep.subr.mxu0 0.0
    %2060 = vmatpush1.msra.mxu0 0.0
    %2061 = vmatprep.subr.mxu0 0.0
    %2062 = vmatpush1.msra.mxu0 0.0
    %2063 = vmatprep.subr.mxu0 0.0
    %2064 = vmatpush1.msra.mxu0 0.0
    %2065 = vmatprep.subr.mxu0 0.0
    %2066 = vmatpush1.msra.mxu0 0.0
    %2067 = vmatprep.subr.mxu0 0.0
    %2068 = vmatpush1.msra.mxu0 0.0
    %2069 = vmatprep.subr.mxu0 0.0
    %2070 = vmatpush1.msra.mxu0 0.0
    %2071 = vmatprep.subr.mxu0 0.0
    %2072 = vmatpush1.msra.mxu0 0.0
    %2073 = vmatprep.subr.mxu0 0.0
    %2074 = vmatpush1.msra.mxu0 0.0
    %2075 = vmatprep.subr.mxu0 0.0
    %2076 = vmatpush1.msra.mxu0 0.0
    %2077 = vmatprep.subr.mxu0 0.0
    %2078 = vmatpush1.msra.mxu0 0.0
    %2079 = vmatprep.subr.mxu0 0.0
    %2080 = vmatpush1.msra.mxu0 0.0
    %2081 = vmatprep.subr.mxu0 0.0
    %2082 = vmatpush1.msra.mxu0 %v1887
    %2083 = vmatprep.subr.mxu0 0.0
    %2084 = vmatpush1.msra.mxu0 %v1886
    %2085 = vmatprep.subr.mxu0 0.0
    %2086 = vmatpush1.msra.mxu0 %v1885
    %2087 = vmatprep.subr.mxu0 0.0
    %2088 = vmatpush1.msra.mxu0 %v1884
    %2089 = vmatprep.subr.mxu0 0.0
    %2090 = vmatpush2.msra.mxu0 0.0
    %2091 = vmatprep.subr.mxu0 0.0
    %2092 = vmatpush2.msra.mxu0 0.0
    %2093 = vmatprep.subr.mxu0 0.0
    %2094 = vmatpush2.msra.mxu0 0.0
    %2095 = vmatprep.subr.mxu0 0.0
    %2096 = vmatpush2.msra.mxu0 0.0
    %2097 = vmatprep.subr.mxu0 0.0
    %2098 = vmatpush2.msra.mxu0 0.0
    %2099 = vmatprep.subr.mxu0 0.0
    %2100 = vmatpush2.msra.mxu0 0.0
    %2101 = vmatprep.subr.mxu0 0.0
    %2102 = vmatpush2.msra.mxu0 0.0
    %2103 = vmatprep.subr.mxu0 0.0
    %2104 = vmatpush2.msra.mxu0 0.0
    %2105 = vmatprep.subr.mxu0 0.0
    %2106 = vmatpush2.msra.mxu0 0.0
    %2107 = vmatprep.subr.mxu0 0.0
    %2108 = vmatpush2.msra.mxu0 0.0
    %2109 = vmatprep.subr.mxu0 0.0
    %2110 = vmatpush2.msra.mxu0 0.0
    %2111 = vmatprep.subr.mxu0 0.0
    %2112 = vmatpush2.msra.mxu0 0.0
    %2113 = vmatprep.subr.mxu0 0.0
    %2114 = vmatpush2.msra.mxu0 0.0
    %2115 = vmatprep.subr.mxu0 0.0
    %2116 = vmatpush2.msra.mxu0 0.0
    %2117 = vmatprep.subr.mxu0 0.0
    %2118 = vmatpush2.msra.mxu0 0.0
    %2119 = vmatprep.subr.mxu0 0.0
    %2120 = vmatpush2.msra.mxu0 0.0
    %2121 = vmatprep.mubr.f32.mxu0 0.0
    %2122 = vmatmul.mubr.f32.gmra.mxu0 %v541
    %v2123 = vpop.f32.mrf.mxu0
    %v2124 = vadd.f32 %v1974, %v2123
    %v2125 = vpop.f32.mrf.mxu0
    %2126 = vdwg.mxu0
    %v2127 = vlaneseq
    %v2128 = vshrl.u32 %v2127, 7
    %v2129 = vsub.s32 0, %v2128
    %v2130 = vrot.slane %v1883, %v2129
    %v2131 = vadd.f32 %v2124, %v2130
    %v2132 = vxor.u32 %v2131, 2147483648
    %v2133 = vmul.f32 %v2132, 1.442695
    %v2134 = vpow.pop %v2133
    %v2135 = vadd.f32 %v2134, 1.0
    %v2136 = vrcp.pop %v2135
    %v2137 = vmul.f32 1.0, %v2136
    %2138 = vmatprep.subr.mxu0 0.0
    %2139 = vmatpush1.msra.mxu0 0.0
    %2140 = vmatprep.subr.mxu0 0.0
    %2141 = vmatpush1.msra.mxu0 0.0
    %2142 = vmatprep.subr.mxu0 0.0
    %2143 = vmatpush1.msra.mxu0 0.0
    %2144 = vmatprep.subr.mxu0 0.0
    %2145 = vmatpush1.msra.mxu0 0.0
    %2146 = vmatprep.subr.mxu0 0.0
    %2147 = vmatpush1.msra.mxu0 0.0
    %2148 = vmatprep.subr.mxu0 0.0
    %2149 = vmatpush1.msra.mxu0 0.0
    %2150 = vmatprep.subr.mxu0 0.0
    %2151 = vmatpush1.msra.mxu0 0.0
    %2152 = vmatprep.subr.mxu0 0.0
    %2153 = vmatpush1.msra.mxu0 0.0
    %2154 = vmatprep.subr.mxu0 0.0
    %2155 = vmatpush1.msra.mxu0 0.0
    %2156 = vmatprep.subr.mxu0 0.0
    %2157 = vmatpush1.msra.mxu0 0.0
    %2158 = vmatprep.subr.mxu0 0.0
    %2159 = vmatpush1.msra.mxu0 0.0
    %2160 = vmatprep.subr.mxu0 0.0
    %2161 = vmatpush1.msra.mxu0 0.0
    %2162 = vmatprep.subr.mxu0 0.0
    %2163 = vmatpush1.msra.mxu0 %v1892
    %2164 = vmatprep.subr.mxu0 0.0
    %2165 = vmatpush1.msra.mxu0 %v1891
    %2166 = vmatprep.subr.mxu0 0.0
    %2167 = vmatpush1.msra.mxu0 %v1890
    %2168 = vmatprep.subr.mxu0 0.0
    %2169 = vmatpush1.msra.mxu0 %v1889
    %2170 = vmatprep.subr.mxu0 0.0
    %2171 = vmatpush2.msra.mxu0 0.0
    %2172 = vmatprep.subr.mxu0 0.0
    %2173 = vmatpush2.msra.mxu0 0.0
    %2174 = vmatprep.subr.mxu0 0.0
    %2175 = vmatpush2.msra.mxu0 0.0
    %2176 = vmatprep.subr.mxu0 0.0
    %2177 = vmatpush2.msra.mxu0 0.0
    %2178 = vmatprep.subr.mxu0 0.0
    %2179 = vmatpush2.msra.mxu0 0.0
    %2180 = vmatprep.subr.mxu0 0.0
    %2181 = vmatpush2.msra.mxu0 0.0
    %2182 = vmatprep.subr.mxu0 0.0
    %2183 = vmatpush2.msra.mxu0 0.0
    %2184 = vmatprep.subr.mxu0 0.0
    %2185 = vmatpush2.msra.mxu0 0.0
    %2186 = vmatprep.subr.mxu0 0.0
    %2187 = vmatpush2.msra.mxu0 0.0
    %2188 = vmatprep.subr.mxu0 0.0
    %2189 = vmatpush2.msra.mxu0 0.0
    %2190 = vmatprep.subr.mxu0 0.0
    %2191 = vmatpush2.msra.mxu0 0.0
    %2192 = vmatprep.subr.mxu0 0.0
    %2193 = vmatpush2.msra.mxu0 0.0
    %2194 = vmatprep.subr.mxu0 0.0
    %2195 = vmatpush2.msra.mxu0 0.0
    %2196 = vmatprep.subr.mxu0 0.0
    %2197 = vmatpush2.msra.mxu0 0.0
    %2198 = vmatprep.subr.mxu0 0.0
    %2199 = vmatpush2.msra.mxu0 0.0
    %2200 = vmatprep.subr.mxu0 0.0
    %2201 = vmatpush2.msra.mxu0 0.0
    %2202 = vmatprep.mubr.f32.mxu0 0.0
    %2203 = vmatmul.mubr.f32.gmra.mxu0 %v541
    %v2204 = vpop.f32.mrf.mxu0
    %v2205 = vadd.f32 %v2049, %v2204
    %v2206 = vpop.f32.mrf.mxu0
    %2207 = vdwg.mxu0
    %v2208 = vlaneseq
    %v2209 = vshrl.u32 %v2208, 7
    %v2210 = vsub.s32 1, %v2209
    %v2211 = vrot.slane %v1883, %v2210
    %v2212 = vadd.f32 %v2205, %v2211
    %v2213 = vxor.u32 %v2212, 2147483648
    %v2214 = vmul.f32 %v2213, 1.442695
    %v2215 = vpow.pop %v2214
    %v2216 = vadd.f32 %v2215, 1.0
    %v2217 = vrcp.pop %v2216
    %v2218 = vmul.f32 1.0, %v2217
    %v2219 = vlaneseq
    %v2220 = vshrl.u32 %v2219, 7
    %v2221 = vsub.s32 2, %v2220
    %v2222 = vrot.slane %v1883, %v2221
    %2223 = vmatprep.subr.mxu0 0.0
    %2224 = vmatpush1.msra.mxu0 0.0
    %2225 = vmatprep.subr.mxu0 0.0
    %2226 = vmatpush1.msra.mxu0 0.0
    %2227 = vmatprep.subr.mxu0 0.0
    %2228 = vmatpush1.msra.mxu0 0.0
    %2229 = vmatprep.subr.mxu0 0.0
    %2230 = vmatpush1.msra.mxu0 0.0
    %2231 = vmatprep.subr.mxu0 0.0
    %2232 = vmatpush1.msra.mxu0 0.0
    %2233 = vmatprep.subr.mxu0 0.0
    %2234 = vmatpush1.msra.mxu0 0.0
    %2235 = vmatprep.subr.mxu0 0.0
    %2236 = vmatpush1.msra.mxu0 0.0
    %2237 = vmatprep.subr.mxu0 0.0
    %2238 = vmatpush1.msra.mxu0 0.0
    %2239 = vmatprep.subr.mxu0 0.0
    %2240 = vmatpush1.msra.mxu0 0.0
    %2241 = vmatprep.subr.mxu0 0.0
    %2242 = vmatpush1.msra.mxu0 0.0
    %2243 = vmatprep.subr.mxu0 0.0
    %2244 = vmatpush1.msra.mxu0 0.0
    %2245 = vmatprep.subr.mxu0 0.0
    %2246 = vmatpush1.msra.mxu0 0.0
    %2247 = vmatprep.subr.mxu0 0.0
    %2248 = vmatpush1.msra.mxu0 %v1897
    %2249 = vmatprep.subr.mxu0 0.0
    %2250 = vmatpush1.msra.mxu0 %v1896
    %2251 = vmatprep.subr.mxu0 0.0
    %2252 = vmatpush1.msra.mxu0 %v1895
    %2253 = vmatprep.subr.mxu0 0.0
    %2254 = vmatpush1.msra.mxu0 %v1894
    %2255 = vmatprep.subr.mxu0 0.0
    %2256 = vmatpush2.msra.mxu0 0.0
    %2257 = vmatprep.subr.mxu0 0.0
    %2258 = vmatpush2.msra.mxu0 0.0
    %2259 = vmatprep.subr.mxu0 0.0
    %2260 = vmatpush2.msra.mxu0 0.0
    %2261 = vmatprep.subr.mxu0 0.0
    %2262 = vmatpush2.msra.mxu0 0.0
    %2263 = vmatprep.subr.mxu0 0.0
    %2264 = vmatpush2.msra.mxu0 0.0
    %2265 = vmatprep.subr.mxu0 0.0
    %2266 = vmatpush2.msra.mxu0 0.0
    %2267 = vmatprep.subr.mxu0 0.0
    %2268 = vmatpush2.msra.mxu0 0.0
    %2269 = vmatprep.subr.mxu0 0.0
    %2270 = vmatpush2.msra.mxu0 0.0
    %2271 = vmatprep.subr.mxu0 0.0
    %2272 = vmatpush2.msra.mxu0 0.0
    %2273 = vmatprep.subr.mxu0 0.0
    %2274 = vmatpush2.msra.mxu0 0.0
    %2275 = vmatprep.subr.mxu0 0.0
    %2276 = vmatpush2.msra.mxu0 0.0
    %2277 = vmatprep.subr.mxu0 0.0
    %2278 = vmatpush2.msra.mxu0 0.0
    %2279 = vmatprep.subr.mxu0 0.0
    %2280 = vmatpush2.msra.mxu0 0.0
    %2281 = vmatprep.subr.mxu0 0.0
    %2282 = vmatpush2.msra.mxu0 0.0
    %2283 = vmatprep.subr.mxu0 0.0
    %2284 = vmatpush2.msra.mxu0 0.0
    %2285 = vmatprep.subr.mxu0 0.0
    %2286 = vmatpush2.msra.mxu0 0.0
    %2287 = vmatprep.mubr.f32.mxu0 0.0
    %2288 = vmatmul.mubr.f32.gmra.mxu0 %v541
    %v2289 = vpop.f32.mrf.mxu0
    %v2290 = vadd.f32 %v2222, %v2289
    %v2291 = vpop.f32.mrf.mxu0
    %2292 = vdwg.mxu0
    %v2293 = vlaneseq
    %v2294 = vshrl.u32 %v2293, 7
    %v2295 = vsub.s32 3, %v2294
    %v2296 = vrot.slane %v1883, %v2295
    %2297 = vmatprep.subr.mxu0 0.0
    %2298 = vmatpush1.msra.mxu0 0.0
    %2299 = vmatprep.subr.mxu0 0.0
    %2300 = vmatpush1.msra.mxu0 0.0
    %2301 = vmatprep.subr.mxu0 0.0
    %2302 = vmatpush1.msra.mxu0 0.0
    %2303 = vmatprep.subr.mxu0 0.0
    %2304 = vmatpush1.msra.mxu0 0.0
    %2305 = vmatprep.subr.mxu0 0.0
    %2306 = vmatpush1.msra.mxu0 0.0
    %2307 = vmatprep.subr.mxu0 0.0
    %2308 = vmatpush1.msra.mxu0 0.0
    %2309 = vmatprep.subr.mxu0 0.0
    %2310 = vmatpush1.msra.mxu0 0.0
    %2311 = vmatprep.subr.mxu0 0.0
    %2312 = vmatpush1.msra.mxu0 0.0
    %2313 = vmatprep.subr.mxu0 0.0
    %2314 = vmatpush1.msra.mxu0 0.0
    %2315 = vmatprep.subr.mxu0 0.0
    %2316 = vmatpush1.msra.mxu0 0.0
    %2317 = vmatprep.subr.mxu0 0.0
    %2318 = vmatpush1.msra.mxu0 0.0
    %2319 = vmatprep.subr.mxu0 0.0
    %2320 = vmatpush1.msra.mxu0 0.0
    %2321 = vmatprep.subr.mxu0 0.0
    %2322 = vmatpush1.msra.mxu0 %v2056
    %2323 = vmatprep.subr.mxu0 0.0
    %2324 = vmatpush1.msra.mxu0 %v2055
    %2325 = vmatprep.subr.mxu0 0.0
    %2326 = vmatpush1.msra.mxu0 %v2054
    %2327 = vmatprep.subr.mxu0 0.0
    %2328 = vmatpush1.msra.mxu0 %v2053
    %2329 = vmatprep.subr.mxu0 0.0
    %2330 = vmatpush2.msra.mxu0 0.0
    %2331 = vmatprep.subr.mxu0 0.0
    %2332 = vmatpush2.msra.mxu0 0.0
    %2333 = vmatprep.subr.mxu0 0.0
    %2334 = vmatpush2.msra.mxu0 0.0
    %2335 = vmatprep.subr.mxu0 0.0
    %2336 = vmatpush2.msra.mxu0 0.0
    %2337 = vmatprep.subr.mxu0 0.0
    %2338 = vmatpush2.msra.mxu0 0.0
    %2339 = vmatprep.subr.mxu0 0.0
    %2340 = vmatpush2.msra.mxu0 0.0
    %2341 = vmatprep.subr.mxu0 0.0
    %2342 = vmatpush2.msra.mxu0 0.0
    %2343 = vmatprep.subr.mxu0 0.0
    %2344 = vmatpush2.msra.mxu0 0.0
    %2345 = vmatprep.subr.mxu0 0.0
    %2346 = vmatpush2.msra.mxu0 0.0
    %2347 = vmatprep.subr.mxu0 0.0
    %2348 = vmatpush2.msra.mxu0 0.0
    %2349 = vmatprep.subr.mxu0 0.0
    %2350 = vmatpush2.msra.mxu0 0.0
    %2351 = vmatprep.subr.mxu0 0.0
    %2352 = vmatpush2.msra.mxu0 0.0
    %2353 = vmatprep.subr.mxu0 0.0
    %2354 = vmatpush2.msra.mxu0 0.0
    %2355 = vmatprep.subr.mxu0 0.0
    %2356 = vmatpush2.msra.mxu0 0.0
    %2357 = vmatprep.subr.mxu0 0.0
    %2358 = vmatpush2.msra.mxu0 0.0
    %2359 = vmatprep.subr.mxu0 0.0
    %2360 = vmatpush2.msra.mxu0 0.0
    %2361 = vmatprep.mubr.f32.mxu0 0.0
    %2362 = vmatmul.mubr.f32.gmra.mxu0 %v1905
    %v2363 = vpop.f32.mrf.mxu0
    %v2364 = vadd.f32 %v2296, %v2363
    %v2365 = vpop.f32.mrf.mxu0
    %2366 = vdwg.mxu0
    %v2367 = vmul.f32 %v2137, %v2364
    %v2368 = vadd.f32 %v2290, %v2367
    %v2369 = vtanh.pop %v2368
    %v2370 = vsub.f32 1.0, %v2218
    %v2371 = vmul.f32 %v2370, %v2369
    %v2372 = vmul.f32 %v2218, %v1899
    %v2373 = vadd.f32 %v2371, %v2372
    %v2375 = vsel %vm66, %v2373, 0
    %2377 = vmatprep.subr.mxu0 0.0
    %2378 = vmatpush1.msra.mxu0 0.0
    %2379 = vmatprep.subr.mxu0 0.0
    %2380 = vmatpush1.msra.mxu0 0.0
    %2381 = vmatprep.subr.mxu0 0.0
    %2382 = vmatpush1.msra.mxu0 0.0
    %2383 = vmatprep.subr.mxu0 0.0
    %2384 = vmatpush1.msra.mxu0 0.0
    %2385 = vmatprep.subr.mxu0 0.0
    %2386 = vmatpush1.msra.mxu0 0.0
    %2387 = vmatprep.subr.mxu0 0.0
    %2388 = vmatpush1.msra.mxu0 0.0
    %2389 = vmatprep.subr.mxu0 0.0
    %2390 = vmatpush1.msra.mxu0 0.0
    %2391 = vmatprep.subr.mxu0 0.0
    %2392 = vmatpush1.msra.mxu0 0.0
    %2393 = vmatprep.subr.mxu0 0.0
    %2394 = vmatpush1.msra.mxu0 0.0
    %2395 = vmatprep.subr.mxu0 0.0
    %2396 = vmatpush1.msra.mxu0 0.0
    %2397 = vmatprep.subr.mxu0 0.0
    %2398 = vmatpush1.msra.mxu0 0.0
    %2399 = vmatprep.subr.mxu0 0.0
    %2400 = vmatpush1.msra.mxu0 0.0
    %2401 = vmatprep.subr.mxu0 0.0
    %2402 = vmatpush1.msra.mxu0 %v1903
    %2403 = vmatprep.subr.mxu0 0.0
    %2404 = vmatpush1.msra.mxu0 %v1902
    %2405 = vmatprep.subr.mxu0 0.0
    %2406 = vmatpush1.msra.mxu0 %v1901
    %2407 = vmatprep.subr.mxu0 0.0
    %2408 = vmatpush1.msra.mxu0 %v1900
    %2409 = vmatprep.subr.mxu0 0.0
    %2410 = vmatpush2.msra.mxu0 0.0
    %2411 = vmatprep.subr.mxu0 0.0
    %2412 = vmatpush2.msra.mxu0 0.0
    %2413 = vmatprep.subr.mxu0 0.0
    %2414 = vmatpush2.msra.mxu0 0.0
    %2415 = vmatprep.subr.mxu0 0.0
    %2416 = vmatpush2.msra.mxu0 0.0
    %2417 = vmatprep.subr.mxu0 0.0
    %2418 = vmatpush2.msra.mxu0 0.0
    %2419 = vmatprep.subr.mxu0 0.0
    %2420 = vmatpush2.msra.mxu0 0.0
    %2421 = vmatprep.subr.mxu0 0.0
    %2422 = vmatpush2.msra.mxu0 0.0
    %2423 = vmatprep.subr.mxu0 0.0
    %2424 = vmatpush2.msra.mxu0 0.0
    %2425 = vmatprep.subr.mxu0 0.0
    %2426 = vmatpush2.msra.mxu0 0.0
    %2427 = vmatprep.subr.mxu0 0.0
    %2428 = vmatpush2.msra.mxu0 0.0
    %2429 = vmatprep.subr.mxu0 0.0
    %2430 = vmatpush2.msra.mxu0 0.0
    %2431 = vmatprep.subr.mxu0 0.0
    %2432 = vmatpush2.msra.mxu0 0.0
    %2433 = vmatprep.subr.mxu0 0.0
    %2434 = vmatpush2.msra.mxu0 0.0
    %2435 = vmatprep.subr.mxu0 0.0
    %2436 = vmatpush2.msra.mxu0 0.0
    %2437 = vmatprep.subr.mxu0 0.0
    %2438 = vmatpush2.msra.mxu0 0.0
    %2439 = vmatprep.subr.mxu0 0.0
    %2440 = vmatpush2.msra.mxu0 0.0
    %2441 = vmatprep.mubr.f32.mxu0 0.0
    %2442 = vmatmul.mubr.f32.gmra.mxu0 %v2375
    %v2443 = vpop.f32.mrf.mxu0
    %v2444 = vadd.f32 0.0, %v2443
    %v2445 = vpop.f32.mrf.mxu0
    %2446 = vdwg.mxu0
    %2447 = vmatprep.subr.mxu0 0.0
    %2448 = vmatpush1.msra.mxu0 0.0
    %2449 = vmatprep.subr.mxu0 0.0
    %2450 = vmatpush1.msra.mxu0 0.0
    %2451 = vmatprep.subr.mxu0 0.0
    %2452 = vmatpush1.msra.mxu0 0.0
    %2453 = vmatprep.subr.mxu0 0.0
    %2454 = vmatpush1.msra.mxu0 0.0
    %2455 = vmatprep.subr.mxu0 0.0
    %2456 = vmatpush1.msra.mxu0 0.0
    %2457 = vmatprep.subr.mxu0 0.0
    %2458 = vmatpush1.msra.mxu0 0.0
    %2459 = vmatprep.subr.mxu0 0.0
    %2460 = vmatpush1.msra.mxu0 0.0
    %2461 = vmatprep.subr.mxu0 0.0
    %2462 = vmatpush1.msra.mxu0 0.0
    %2463 = vmatprep.subr.mxu0 0.0
    %2464 = vmatpush1.msra.mxu0 0.0
    %2465 = vmatprep.subr.mxu0 0.0
    %2466 = vmatpush1.msra.mxu0 0.0
    %2467 = vmatprep.subr.mxu0 0.0
    %2468 = vmatpush1.msra.mxu0 0.0
    %2469 = vmatprep.subr.mxu0 0.0
    %2470 = vmatpush1.msra.mxu0 0.0
    %2471 = vmatprep.subr.mxu0 0.0
    %2472 = vmatpush1.msra.mxu0 %v1981
    %2473 = vmatprep.subr.mxu0 0.0
    %2474 = vmatpush1.msra.mxu0 %v1980
    %2475 = vmatprep.subr.mxu0 0.0
    %2476 = vmatpush1.msra.mxu0 %v1979
    %2477 = vmatprep.subr.mxu0 0.0
    %2478 = vmatpush1.msra.mxu0 %v1978
    %2479 = vmatprep.subr.mxu0 0.0
    %2480 = vmatpush2.msra.mxu0 0.0
    %2481 = vmatprep.subr.mxu0 0.0
    %2482 = vmatpush2.msra.mxu0 0.0
    %2483 = vmatprep.subr.mxu0 0.0
    %2484 = vmatpush2.msra.mxu0 0.0
    %2485 = vmatprep.subr.mxu0 0.0
    %2486 = vmatpush2.msra.mxu0 0.0
    %2487 = vmatprep.subr.mxu0 0.0
    %2488 = vmatpush2.msra.mxu0 0.0
    %2489 = vmatprep.subr.mxu0 0.0
    %2490 = vmatpush2.msra.mxu0 0.0
    %2491 = vmatprep.subr.mxu0 0.0
    %2492 = vmatpush2.msra.mxu0 0.0
    %2493 = vmatprep.subr.mxu0 0.0
    %2494 = vmatpush2.msra.mxu0 0.0
    %2495 = vmatprep.subr.mxu0 0.0
    %2496 = vmatpush2.msra.mxu0 0.0
    %2497 = vmatprep.subr.mxu0 0.0
    %2498 = vmatpush2.msra.mxu0 0.0
    %2499 = vmatprep.subr.mxu0 0.0
    %2500 = vmatpush2.msra.mxu0 0.0
    %2501 = vmatprep.subr.mxu0 0.0
    %2502 = vmatpush2.msra.mxu0 0.0
    %2503 = vmatprep.subr.mxu0 0.0
    %2504 = vmatpush2.msra.mxu0 0.0
    %2505 = vmatprep.subr.mxu0 0.0
    %2506 = vmatpush2.msra.mxu0 0.0
    %2507 = vmatprep.subr.mxu0 0.0
    %2508 = vmatpush2.msra.mxu0 0.0
    %2509 = vmatprep.subr.mxu0 0.0
    %2510 = vmatpush2.msra.mxu0 0.0
    %2511 = vmatprep.mubr.f32.mxu0 0.0
    %2512 = vmatmul.mubr.f32.gmra.mxu0 %v2375
    %v2513 = vpop.f32.mrf.mxu0
    %v2514 = vadd.f32 0.0, %v2513
    %v2515 = vpop.f32.mrf.mxu0
    %2516 = vdwg.mxu0
    %2517 = vmatprep.subr.mxu0 0.0
    %2518 = vmatpush1.msra.mxu0 0.0
    %2519 = vmatprep.subr.mxu0 0.0
    %2520 = vmatpush1.msra.mxu0 0.0
    %2521 = vmatprep.subr.mxu0 0.0
    %2522 = vmatpush1.msra.mxu0 0.0
    %2523 = vmatprep.subr.mxu0 0.0
    %2524 = vmatpush1.msra.mxu0 0.0
    %2525 = vmatprep.subr.mxu0 0.0
    %2526 = vmatpush1.msra.mxu0 0.0
    %2527 = vmatprep.subr.mxu0 0.0
    %2528 = vmatpush1.msra.mxu0 0.0
    %2529 = vmatprep.subr.mxu0 0.0
    %2530 = vmatpush1.msra.mxu0 0.0
    %2531 = vmatprep.subr.mxu0 0.0
    %2532 = vmatpush1.msra.mxu0 0.0
    %2533 = vmatprep.subr.mxu0 0.0
    %2534 = vmatpush1.msra.mxu0 0.0
    %2535 = vmatprep.subr.mxu0 0.0
    %2536 = vmatpush1.msra.mxu0 0.0
    %2537 = vmatprep.subr.mxu0 0.0
    %2538 = vmatpush1.msra.mxu0 0.0
    %2539 = vmatprep.subr.mxu0 0.0
    %2540 = vmatpush1.msra.mxu0 0.0
    %2541 = vmatprep.subr.mxu0 0.0
    %2542 = vmatpush1.msra.mxu0 %v1887
    %2543 = vmatprep.subr.mxu0 0.0
    %2544 = vmatpush1.msra.mxu0 %v1886
    %2545 = vmatprep.subr.mxu0 0.0
    %2546 = vmatpush1.msra.mxu0 %v1885
    %2547 = vmatprep.subr.mxu0 0.0
    %2548 = vmatpush1.msra.mxu0 %v1884
    %2549 = vmatprep.subr.mxu0 0.0
    %2550 = vmatpush2.msra.mxu0 0.0
    %2551 = vmatprep.subr.mxu0 0.0
    %2552 = vmatpush2.msra.mxu0 0.0
    %2553 = vmatprep.subr.mxu0 0.0
    %2554 = vmatpush2.msra.mxu0 0.0
    %2555 = vmatprep.subr.mxu0 0.0
    %2556 = vmatpush2.msra.mxu0 0.0
    %2557 = vmatprep.subr.mxu0 0.0
    %2558 = vmatpush2.msra.mxu0 0.0
    %2559 = vmatprep.subr.mxu0 0.0
    %2560 = vmatpush2.msra.mxu0 0.0
    %2561 = vmatprep.subr.mxu0 0.0
    %2562 = vmatpush2.msra.mxu0 0.0
    %2563 = vmatprep.subr.mxu0 0.0
    %2564 = vmatpush2.msra.mxu0 0.0
    %2565 = vmatprep.subr.mxu0 0.0
    %2566 = vmatpush2.msra.mxu0 0.0
    %2567 = vmatprep.subr.mxu0 0.0
    %2568 = vmatpush2.msra.mxu0 0.0
    %2569 = vmatprep.subr.mxu0 0.0
    %2570 = vmatpush2.msra.mxu0 0.0
    %2571 = vmatprep.subr.mxu0 0.0
    %2572 = vmatpush2.msra.mxu0 0.0
    %2573 = vmatprep.subr.mxu0 0.0
    %2574 = vmatpush2.msra.mxu0 0.0
    %2575 = vmatprep.subr.mxu0 0.0
    %2576 = vmatpush2.msra.mxu0 0.0
    %2577 = vmatprep.subr.mxu0 0.0
    %2578 = vmatpush2.msra.mxu0 0.0
    %2579 = vmatprep.subr.mxu0 0.0
    %2580 = vmatpush2.msra.mxu0 0.0
    %2581 = vmatprep.mubr.f32.mxu0 0.0
    %2582 = vmatmul.mubr.f32.gmra.mxu0 %v988
    %v2583 = vpop.f32.mrf.mxu0
    %v2584 = vadd.f32 %v2444, %v2583
    %v2585 = vpop.f32.mrf.mxu0
    %2586 = vdwg.mxu0
    %v2587 = vadd.f32 %v2584, %v2130
    %v2588 = vxor.u32 %v2587, 2147483648
    %v2589 = vmul.f32 %v2588, 1.442695
    %v2590 = vpow.pop %v2589
    %v2591 = vadd.f32 %v2590, 1.0
    %v2592 = vrcp.pop %v2591
    %v2593 = vmul.f32 1.0, %v2592
    %2594 = vmatprep.subr.mxu0 0.0
    %2595 = vmatpush1.msra.mxu0 0.0
    %2596 = vmatprep.subr.mxu0 0.0
    %2597 = vmatpush1.msra.mxu0 0.0
    %2598 = vmatprep.subr.mxu0 0.0
    %2599 = vmatpush1.msra.mxu0 0.0
    %2600 = vmatprep.subr.mxu0 0.0
    %2601 = vmatpush1.msra.mxu0 0.0
    %2602 = vmatprep.subr.mxu0 0.0
    %2603 = vmatpush1.msra.mxu0 0.0
    %2604 = vmatprep.subr.mxu0 0.0
    %2605 = vmatpush1.msra.mxu0 0.0
    %2606 = vmatprep.subr.mxu0 0.0
    %2607 = vmatpush1.msra.mxu0 0.0
    %2608 = vmatprep.subr.mxu0 0.0
    %2609 = vmatpush1.msra.mxu0 0.0
    %2610 = vmatprep.subr.mxu0 0.0
    %2611 = vmatpush1.msra.mxu0 0.0
    %2612 = vmatprep.subr.mxu0 0.0
    %2613 = vmatpush1.msra.mxu0 0.0
    %2614 = vmatprep.subr.mxu0 0.0
    %2615 = vmatpush1.msra.mxu0 0.0
    %2616 = vmatprep.subr.mxu0 0.0
    %2617 = vmatpush1.msra.mxu0 0.0
    %2618 = vmatprep.subr.mxu0 0.0
    %2619 = vmatpush1.msra.mxu0 %v1892
    %2620 = vmatprep.subr.mxu0 0.0
    %2621 = vmatpush1.msra.mxu0 %v1891
    %2622 = vmatprep.subr.mxu0 0.0
    %2623 = vmatpush1.msra.mxu0 %v1890
    %2624 = vmatprep.subr.mxu0 0.0
    %2625 = vmatpush1.msra.mxu0 %v1889
    %2626 = vmatprep.subr.mxu0 0.0
    %2627 = vmatpush2.msra.mxu0 0.0
    %2628 = vmatprep.subr.mxu0 0.0
    %2629 = vmatpush2.msra.mxu0 0.0
    %2630 = vmatprep.subr.mxu0 0.0
    %2631 = vmatpush2.msra.mxu0 0.0
    %2632 = vmatprep.subr.mxu0 0.0
    %2633 = vmatpush2.msra.mxu0 0.0
    %2634 = vmatprep.subr.mxu0 0.0
    %2635 = vmatpush2.msra.mxu0 0.0
    %2636 = vmatprep.subr.mxu0 0.0
    %2637 = vmatpush2.msra.mxu0 0.0
    %2638 = vmatprep.subr.mxu0 0.0
    %2639 = vmatpush2.msra.mxu0 0.0
    %2640 = vmatprep.subr.mxu0 0.0
    %2641 = vmatpush2.msra.mxu0 0.0
    %2642 = vmatprep.subr.mxu0 0.0
    %2643 = vmatpush2.msra.mxu0 0.0
    %2644 = vmatprep.subr.mxu0 0.0
    %2645 = vmatpush2.msra.mxu0 0.0
    %2646 = vmatprep.subr.mxu0 0.0
    %2647 = vmatpush2.msra.mxu0 0.0
    %2648 = vmatprep.subr.mxu0 0.0
    %2649 = vmatpush2.msra.mxu0 0.0
    %2650 = vmatprep.subr.mxu0 0.0
    %2651 = vmatpush2.msra.mxu0 0.0
    %2652 = vmatprep.subr.mxu0 0.0
    %2653 = vmatpush2.msra.mxu0 0.0
    %2654 = vmatprep.subr.mxu0 0.0
    %2655 = vmatpush2.msra.mxu0 0.0
    %2656 = vmatprep.subr.mxu0 0.0
    %2657 = vmatpush2.msra.mxu0 0.0
    %2658 = vmatprep.mubr.f32.mxu0 0.0
    %2659 = vmatmul.mubr.f32.gmra.mxu0 %v988
    %v2660 = vpop.f32.mrf.mxu0
    %v2661 = vadd.f32 %v2514, %v2660
    %v2662 = vpop.f32.mrf.mxu0
    %2663 = vdwg.mxu0
    %v2664 = vadd.f32 %v2661, %v2211
    %v2665 = vxor.u32 %v2664, 2147483648
    %v2666 = vmul.f32 %v2665, 1.442695
    %v2667 = vpow.pop %v2666
    %v2668 = vadd.f32 %v2667, 1.0
    %v2669 = vrcp.pop %v2668
    %v2670 = vmul.f32 1.0, %v2669
    %2671 = vmatprep.subr.mxu0 0.0
    %2672 = vmatpush1.msra.mxu0 0.0
    %2673 = vmatprep.subr.mxu0 0.0
    %2674 = vmatpush1.msra.mxu0 0.0
    %2675 = vmatprep.subr.mxu0 0.0
    %2676 = vmatpush1.msra.mxu0 0.0
    %2677 = vmatprep.subr.mxu0 0.0
    %2678 = vmatpush1.msra.mxu0 0.0
    %2679 = vmatprep.subr.mxu0 0.0
    %2680 = vmatpush1.msra.mxu0 0.0
    %2681 = vmatprep.subr.mxu0 0.0
    %2682 = vmatpush1.msra.mxu0 0.0
    %2683 = vmatprep.subr.mxu0 0.0
    %2684 = vmatpush1.msra.mxu0 0.0
    %2685 = vmatprep.subr.mxu0 0.0
    %2686 = vmatpush1.msra.mxu0 0.0
    %2687 = vmatprep.subr.mxu0 0.0
    %2688 = vmatpush1.msra.mxu0 0.0
    %2689 = vmatprep.subr.mxu0 0.0
    %2690 = vmatpush1.msra.mxu0 0.0
    %2691 = vmatprep.subr.mxu0 0.0
    %2692 = vmatpush1.msra.mxu0 0.0
    %2693 = vmatprep.subr.mxu0 0.0
    %2694 = vmatpush1.msra.mxu0 0.0
    %2695 = vmatprep.subr.mxu0 0.0
    %2696 = vmatpush1.msra.mxu0 %v1897
    %2697 = vmatprep.subr.mxu0 0.0
    %2698 = vmatpush1.msra.mxu0 %v1896
    %2699 = vmatprep.subr.mxu0 0.0
    %2700 = vmatpush1.msra.mxu0 %v1895
    %2701 = vmatprep.subr.mxu0 0.0
    %2702 = vmatpush1.msra.mxu0 %v1894
    %2703 = vmatprep.subr.mxu0 0.0
    %2704 = vmatpush2.msra.mxu0 0.0
    %2705 = vmatprep.subr.mxu0 0.0
    %2706 = vmatpush2.msra.mxu0 0.0
    %2707 = vmatprep.subr.mxu0 0.0
    %2708 = vmatpush2.msra.mxu0 0.0
    %2709 = vmatprep.subr.mxu0 0.0
    %2710 = vmatpush2.msra.mxu0 0.0
    %2711 = vmatprep.subr.mxu0 0.0
    %2712 = vmatpush2.msra.mxu0 0.0
    %2713 = vmatprep.subr.mxu0 0.0
    %2714 = vmatpush2.msra.mxu0 0.0
    %2715 = vmatprep.subr.mxu0 0.0
    %2716 = vmatpush2.msra.mxu0 0.0
    %2717 = vmatprep.subr.mxu0 0.0
    %2718 = vmatpush2.msra.mxu0 0.0
    %2719 = vmatprep.subr.mxu0 0.0
    %2720 = vmatpush2.msra.mxu0 0.0
    %2721 = vmatprep.subr.mxu0 0.0
    %2722 = vmatpush2.msra.mxu0 0.0
    %2723 = vmatprep.subr.mxu0 0.0
    %2724 = vmatpush2.msra.mxu0 0.0
    %2725 = vmatprep.subr.mxu0 0.0
    %2726 = vmatpush2.msra.mxu0 0.0
    %2727 = vmatprep.subr.mxu0 0.0
    %2728 = vmatpush2.msra.mxu0 0.0
    %2729 = vmatprep.subr.mxu0 0.0
    %2730 = vmatpush2.msra.mxu0 0.0
    %2731 = vmatprep.subr.mxu0 0.0
    %2732 = vmatpush2.msra.mxu0 0.0
    %2733 = vmatprep.subr.mxu0 0.0
    %2734 = vmatpush2.msra.mxu0 0.0
    %2735 = vmatprep.mubr.f32.mxu0 0.0
    %2736 = vmatmul.mubr.f32.gmra.mxu0 %v988
    %v2737 = vpop.f32.mrf.mxu0
    %v2738 = vadd.f32 %v2222, %v2737
    %v2739 = vpop.f32.mrf.mxu0
    %2740 = vdwg.mxu0
    %2741 = vmatprep.subr.mxu0 0.0
    %2742 = vmatpush1.msra.mxu0 0.0
    %2743 = vmatprep.subr.mxu0 0.0
    %2744 = vmatpush1.msra.mxu0 0.0
    %2745 = vmatprep.subr.mxu0 0.0
    %2746 = vmatpush1.msra.mxu0 0.0
    %2747 = vmatprep.subr.mxu0 0.0
    %2748 = vmatpush1.msra.mxu0 0.0
    %2749 = vmatprep.subr.mxu0 0.0
    %2750 = vmatpush1.msra.mxu0 0.0
    %2751 = vmatprep.subr.mxu0 0.0
    %2752 = vmatpush1.msra.mxu0 0.0
    %2753 = vmatprep.subr.mxu0 0.0
    %2754 = vmatpush1.msra.mxu0 0.0
    %2755 = vmatprep.subr.mxu0 0.0
    %2756 = vmatpush1.msra.mxu0 0.0
    %2757 = vmatprep.subr.mxu0 0.0
    %2758 = vmatpush1.msra.mxu0 0.0
    %2759 = vmatprep.subr.mxu0 0.0
    %2760 = vmatpush1.msra.mxu0 0.0
    %2761 = vmatprep.subr.mxu0 0.0
    %2762 = vmatpush1.msra.mxu0 0.0
    %2763 = vmatprep.subr.mxu0 0.0
    %2764 = vmatpush1.msra.mxu0 0.0
    %2765 = vmatprep.subr.mxu0 0.0
    %2766 = vmatpush1.msra.mxu0 %v2056
    %2767 = vmatprep.subr.mxu0 0.0
    %2768 = vmatpush1.msra.mxu0 %v2055
    %2769 = vmatprep.subr.mxu0 0.0
    %2770 = vmatpush1.msra.mxu0 %v2054
    %2771 = vmatprep.subr.mxu0 0.0
    %2772 = vmatpush1.msra.mxu0 %v2053
    %2773 = vmatprep.subr.mxu0 0.0
    %2774 = vmatpush2.msra.mxu0 0.0
    %2775 = vmatprep.subr.mxu0 0.0
    %2776 = vmatpush2.msra.mxu0 0.0
    %2777 = vmatprep.subr.mxu0 0.0
    %2778 = vmatpush2.msra.mxu0 0.0
    %2779 = vmatprep.subr.mxu0 0.0
    %2780 = vmatpush2.msra.mxu0 0.0
    %2781 = vmatprep.subr.mxu0 0.0
    %2782 = vmatpush2.msra.mxu0 0.0
    %2783 = vmatprep.subr.mxu0 0.0
    %2784 = vmatpush2.msra.mxu0 0.0
    %2785 = vmatprep.subr.mxu0 0.0
    %2786 = vmatpush2.msra.mxu0 0.0
    %2787 = vmatprep.subr.mxu0 0.0
    %2788 = vmatpush2.msra.mxu0 0.0
    %2789 = vmatprep.subr.mxu0 0.0
    %2790 = vmatpush2.msra.mxu0 0.0
    %2791 = vmatprep.subr.mxu0 0.0
    %2792 = vmatpush2.msra.mxu0 0.0
    %2793 = vmatprep.subr.mxu0 0.0
    %2794 = vmatpush2.msra.mxu0 0.0
    %2795 = vmatprep.subr.mxu0 0.0
    %2796 = vmatpush2.msra.mxu0 0.0
    %2797 = vmatprep.subr.mxu0 0.0
    %2798 = vmatpush2.msra.mxu0 0.0
    %2799 = vmatprep.subr.mxu0 0.0
    %2800 = vmatpush2.msra.mxu0 0.0
    %2801 = vmatprep.subr.mxu0 0.0
    %2802 = vmatpush2.msra.mxu0 0.0
    %2803 = vmatprep.subr.mxu0 0.0
    %2804 = vmatpush2.msra.mxu0 0.0
    %2805 = vmatprep.mubr.f32.mxu0 0.0
    %2806 = vmatmul.mubr.f32.gmra.mxu0 %v2375
    %v2807 = vpop.f32.mrf.mxu0
    %v2808 = vadd.f32 %v2296, %v2807
    %v2809 = vpop.f32.mrf.mxu0
    %2810 = vdwg.mxu0
    %v2811 = vmul.f32 %v2593, %v2808
    %v2812 = vadd.f32 %v2738, %v2811
    %v2813 = vtanh.pop %v2812
    %v2814 = vsub.f32 1.0, %v2670
    %v2815 = vmul.f32 %v2814, %v2813
    %v2816 = vmul.f32 %v2670, %v2373
    %v2817 = vadd.f32 %v2815, %v2816
    %v2819 = vsel %vm66, %v2817, 0
    %2821 = vmatprep.subr.mxu0 0.0
    %2822 = vmatpush1.msra.mxu0 0.0
    %2823 = vmatprep.subr.mxu0 0.0
    %2824 = vmatpush1.msra.mxu0 0.0
    %2825 = vmatprep.subr.mxu0 0.0
    %2826 = vmatpush1.msra.mxu0 0.0
    %2827 = vmatprep.subr.mxu0 0.0
    %2828 = vmatpush1.msra.mxu0 0.0
    %2829 = vmatprep.subr.mxu0 0.0
    %2830 = vmatpush1.msra.mxu0 0.0
    %2831 = vmatprep.subr.mxu0 0.0
    %2832 = vmatpush1.msra.mxu0 0.0
    %2833 = vmatprep.subr.mxu0 0.0
    %2834 = vmatpush1.msra.mxu0 0.0
    %2835 = vmatprep.subr.mxu0 0.0
    %2836 = vmatpush1.msra.mxu0 0.0
    %2837 = vmatprep.subr.mxu0 0.0
    %2838 = vmatpush1.msra.mxu0 0.0
    %2839 = vmatprep.subr.mxu0 0.0
    %2840 = vmatpush1.msra.mxu0 0.0
    %2841 = vmatprep.subr.mxu0 0.0
    %2842 = vmatpush1.msra.mxu0 0.0
    %2843 = vmatprep.subr.mxu0 0.0
    %2844 = vmatpush1.msra.mxu0 0.0
    %2845 = vmatprep.subr.mxu0 0.0
    %2846 = vmatpush1.msra.mxu0 %v1903
    %2847 = vmatprep.subr.mxu0 0.0
    %2848 = vmatpush1.msra.mxu0 %v1902
    %2849 = vmatprep.subr.mxu0 0.0
    %2850 = vmatpush1.msra.mxu0 %v1901
    %2851 = vmatprep.subr.mxu0 0.0
    %2852 = vmatpush1.msra.mxu0 %v1900
    %2853 = vmatprep.subr.mxu0 0.0
    %2854 = vmatpush2.msra.mxu0 0.0
    %2855 = vmatprep.subr.mxu0 0.0
    %2856 = vmatpush2.msra.mxu0 0.0
    %2857 = vmatprep.subr.mxu0 0.0
    %2858 = vmatpush2.msra.mxu0 0.0
    %2859 = vmatprep.subr.mxu0 0.0
    %2860 = vmatpush2.msra.mxu0 0.0
    %2861 = vmatprep.subr.mxu0 0.0
    %2862 = vmatpush2.msra.mxu0 0.0
    %2863 = vmatprep.subr.mxu0 0.0
    %2864 = vmatpush2.msra.mxu0 0.0
    %2865 = vmatprep.subr.mxu0 0.0
    %2866 = vmatpush2.msra.mxu0 0.0
    %2867 = vmatprep.subr.mxu0 0.0
    %2868 = vmatpush2.msra.mxu0 0.0
    %2869 = vmatprep.subr.mxu0 0.0
    %2870 = vmatpush2.msra.mxu0 0.0
    %2871 = vmatprep.subr.mxu0 0.0
    %2872 = vmatpush2.msra.mxu0 0.0
    %2873 = vmatprep.subr.mxu0 0.0
    %2874 = vmatpush2.msra.mxu0 0.0
    %2875 = vmatprep.subr.mxu0 0.0
    %2876 = vmatpush2.msra.mxu0 0.0
    %2877 = vmatprep.subr.mxu0 0.0
    %2878 = vmatpush2.msra.mxu0 0.0
    %2879 = vmatprep.subr.mxu0 0.0
    %2880 = vmatpush2.msra.mxu0 0.0
    %2881 = vmatprep.subr.mxu0 0.0
    %2882 = vmatpush2.msra.mxu0 0.0
    %2883 = vmatprep.subr.mxu0 0.0
    %2884 = vmatpush2.msra.mxu0 0.0
    %2885 = vmatprep.mubr.f32.mxu0 0.0
    %2886 = vmatmul.mubr.f32.gmra.mxu0 %v2819
    %v2887 = vpop.f32.mrf.mxu0
    %v2888 = vadd.f32 0.0, %v2887
    %v2889 = vpop.f32.mrf.mxu0
    %2890 = vdwg.mxu0
    %2891 = vmatprep.subr.mxu0 0.0
    %2892 = vmatpush1.msra.mxu0 0.0
    %2893 = vmatprep.subr.mxu0 0.0
    %2894 = vmatpush1.msra.mxu0 0.0
    %2895 = vmatprep.subr.mxu0 0.0
    %2896 = vmatpush1.msra.mxu0 0.0
    %2897 = vmatprep.subr.mxu0 0.0
    %2898 = vmatpush1.msra.mxu0 0.0
    %2899 = vmatprep.subr.mxu0 0.0
    %2900 = vmatpush1.msra.mxu0 0.0
    %2901 = vmatprep.subr.mxu0 0.0
    %2902 = vmatpush1.msra.mxu0 0.0
    %2903 = vmatprep.subr.mxu0 0.0
    %2904 = vmatpush1.msra.mxu0 0.0
    %2905 = vmatprep.subr.mxu0 0.0
    %2906 = vmatpush1.msra.mxu0 0.0
    %2907 = vmatprep.subr.mxu0 0.0
    %2908 = vmatpush1.msra.mxu0 0.0
    %2909 = vmatprep.subr.mxu0 0.0
    %2910 = vmatpush1.msra.mxu0 0.0
    %2911 = vmatprep.subr.mxu0 0.0
    %2912 = vmatpush1.msra.mxu0 0.0
    %2913 = vmatprep.subr.mxu0 0.0
    %2914 = vmatpush1.msra.mxu0 0.0
    %2915 = vmatprep.subr.mxu0 0.0
    %2916 = vmatpush1.msra.mxu0 %v1981
    %2917 = vmatprep.subr.mxu0 0.0
    %2918 = vmatpush1.msra.mxu0 %v1980
    %2919 = vmatprep.subr.mxu0 0.0
    %2920 = vmatpush1.msra.mxu0 %v1979
    %2921 = vmatprep.subr.mxu0 0.0
    %2922 = vmatpush1.msra.mxu0 %v1978
    %2923 = vmatprep.subr.mxu0 0.0
    %2924 = vmatpush2.msra.mxu0 0.0
    %2925 = vmatprep.subr.mxu0 0.0
    %2926 = vmatpush2.msra.mxu0 0.0
    %2927 = vmatprep.subr.mxu0 0.0
    %2928 = vmatpush2.msra.mxu0 0.0
    %2929 = vmatprep.subr.mxu0 0.0
    %2930 = vmatpush2.msra.mxu0 0.0
    %2931 = vmatprep.subr.mxu0 0.0
    %2932 = vmatpush2.msra.mxu0 0.0
    %2933 = vmatprep.subr.mxu0 0.0
    %2934 = vmatpush2.msra.mxu0 0.0
    %2935 = vmatprep.subr.mxu0 0.0
    %2936 = vmatpush2.msra.mxu0 0.0
    %2937 = vmatprep.subr.mxu0 0.0
    %2938 = vmatpush2.msra.mxu0 0.0
    %2939 = vmatprep.subr.mxu0 0.0
    %2940 = vmatpush2.msra.mxu0 0.0
    %2941 = vmatprep.subr.mxu0 0.0
    %2942 = vmatpush2.msra.mxu0 0.0
    %2943 = vmatprep.subr.mxu0 0.0
    %2944 = vmatpush2.msra.mxu0 0.0
    %2945 = vmatprep.subr.mxu0 0.0
    %2946 = vmatpush2.msra.mxu0 0.0
    %2947 = vmatprep.subr.mxu0 0.0
    %2948 = vmatpush2.msra.mxu0 0.0
    %2949 = vmatprep.subr.mxu0 0.0
    %2950 = vmatpush2.msra.mxu0 0.0
    %2951 = vmatprep.subr.mxu0 0.0
    %2952 = vmatpush2.msra.mxu0 0.0
    %2953 = vmatprep.subr.mxu0 0.0
    %2954 = vmatpush2.msra.mxu0 0.0
    %2955 = vmatprep.mubr.f32.mxu0 0.0
    %2956 = vmatmul.mubr.f32.gmra.mxu0 %v2819
    %v2957 = vpop.f32.mrf.mxu0
    %v2958 = vadd.f32 0.0, %v2957
    %v2959 = vpop.f32.mrf.mxu0
    %2960 = vdwg.mxu0
    %2961 = vmatprep.subr.mxu0 0.0
    %2962 = vmatpush1.msra.mxu0 0.0
    %2963 = vmatprep.subr.mxu0 0.0
    %2964 = vmatpush1.msra.mxu0 0.0
    %2965 = vmatprep.subr.mxu0 0.0
    %2966 = vmatpush1.msra.mxu0 0.0
    %2967 = vmatprep.subr.mxu0 0.0
    %2968 = vmatpush1.msra.mxu0 0.0
    %2969 = vmatprep.subr.mxu0 0.0
    %2970 = vmatpush1.msra.mxu0 0.0
    %2971 = vmatprep.subr.mxu0 0.0
    %2972 = vmatpush1.msra.mxu0 0.0
    %2973 = vmatprep.subr.mxu0 0.0
    %2974 = vmatpush1.msra.mxu0 0.0
    %2975 = vmatprep.subr.mxu0 0.0
    %2976 = vmatpush1.msra.mxu0 0.0
    %2977 = vmatprep.subr.mxu0 0.0
    %2978 = vmatpush1.msra.mxu0 0.0
    %2979 = vmatprep.subr.mxu0 0.0
    %2980 = vmatpush1.msra.mxu0 0.0
    %2981 = vmatprep.subr.mxu0 0.0
    %2982 = vmatpush1.msra.mxu0 0.0
    %2983 = vmatprep.subr.mxu0 0.0
    %2984 = vmatpush1.msra.mxu0 0.0
    %2985 = vmatprep.subr.mxu0 0.0
    %2986 = vmatpush1.msra.mxu0 %v1887
    %2987 = vmatprep.subr.mxu0 0.0
    %2988 = vmatpush1.msra.mxu0 %v1886
    %2989 = vmatprep.subr.mxu0 0.0
    %2990 = vmatpush1.msra.mxu0 %v1885
    %2991 = vmatprep.subr.mxu0 0.0
    %2992 = vmatpush1.msra.mxu0 %v1884
    %2993 = vmatprep.subr.mxu0 0.0
    %2994 = vmatpush2.msra.mxu0 0.0
    %2995 = vmatprep.subr.mxu0 0.0
    %2996 = vmatpush2.msra.mxu0 0.0
    %2997 = vmatprep.subr.mxu0 0.0
    %2998 = vmatpush2.msra.mxu0 0.0
    %2999 = vmatprep.subr.mxu0 0.0
    %3000 = vmatpush2.msra.mxu0 0.0
    %3001 = vmatprep.subr.mxu0 0.0
    %3002 = vmatpush2.msra.mxu0 0.0
    %3003 = vmatprep.subr.mxu0 0.0
    %3004 = vmatpush2.msra.mxu0 0.0
    %3005 = vmatprep.subr.mxu0 0.0
    %3006 = vmatpush2.msra.mxu0 0.0
    %3007 = vmatprep.subr.mxu0 0.0
    %3008 = vmatpush2.msra.mxu0 0.0
    %3009 = vmatprep.subr.mxu0 0.0
    %3010 = vmatpush2.msra.mxu0 0.0
    %3011 = vmatprep.subr.mxu0 0.0
    %3012 = vmatpush2.msra.mxu0 0.0
    %3013 = vmatprep.subr.mxu0 0.0
    %3014 = vmatpush2.msra.mxu0 0.0
    %3015 = vmatprep.subr.mxu0 0.0
    %3016 = vmatpush2.msra.mxu0 0.0
    %3017 = vmatprep.subr.mxu0 0.0
    %3018 = vmatpush2.msra.mxu0 0.0
    %3019 = vmatprep.subr.mxu0 0.0
    %3020 = vmatpush2.msra.mxu0 0.0
    %3021 = vmatprep.subr.mxu0 0.0
    %3022 = vmatpush2.msra.mxu0 0.0
    %3023 = vmatprep.subr.mxu0 0.0
    %3024 = vmatpush2.msra.mxu0 0.0
    %3025 = vmatprep.mubr.f32.mxu0 0.0
    %3026 = vmatmul.mubr.f32.gmra.mxu0 %v1435
    %v3027 = vpop.f32.mrf.mxu0
    %v3028 = vadd.f32 %v2888, %v3027
    %v3029 = vpop.f32.mrf.mxu0
    %3030 = vdwg.mxu0
    %v3031 = vadd.f32 %v3028, %v2130
    %v3032 = vxor.u32 %v3031, 2147483648
    %v3033 = vmul.f32 %v3032, 1.442695
    %v3034 = vpow.pop %v3033
    %v3035 = vadd.f32 %v3034, 1.0
    %v3036 = vrcp.pop %v3035
    %v3037 = vmul.f32 1.0, %v3036
    %3038 = vmatprep.subr.mxu0 0.0
    %3039 = vmatpush1.msra.mxu0 0.0
    %3040 = vmatprep.subr.mxu0 0.0
    %3041 = vmatpush1.msra.mxu0 0.0
    %3042 = vmatprep.subr.mxu0 0.0
    %3043 = vmatpush1.msra.mxu0 0.0
    %3044 = vmatprep.subr.mxu0 0.0
    %3045 = vmatpush1.msra.mxu0 0.0
    %3046 = vmatprep.subr.mxu0 0.0
    %3047 = vmatpush1.msra.mxu0 0.0
    %3048 = vmatprep.subr.mxu0 0.0
    %3049 = vmatpush1.msra.mxu0 0.0
    %3050 = vmatprep.subr.mxu0 0.0
    %3051 = vmatpush1.msra.mxu0 0.0
    %3052 = vmatprep.subr.mxu0 0.0
    %3053 = vmatpush1.msra.mxu0 0.0
    %3054 = vmatprep.subr.mxu0 0.0
    %3055 = vmatpush1.msra.mxu0 0.0
    %3056 = vmatprep.subr.mxu0 0.0
    %3057 = vmatpush1.msra.mxu0 0.0
    %3058 = vmatprep.subr.mxu0 0.0
    %3059 = vmatpush1.msra.mxu0 0.0
    %3060 = vmatprep.subr.mxu0 0.0
    %3061 = vmatpush1.msra.mxu0 0.0
    %3062 = vmatprep.subr.mxu0 0.0
    %3063 = vmatpush1.msra.mxu0 %v1892
    %3064 = vmatprep.subr.mxu0 0.0
    %3065 = vmatpush1.msra.mxu0 %v1891
    %3066 = vmatprep.subr.mxu0 0.0
    %3067 = vmatpush1.msra.mxu0 %v1890
    %3068 = vmatprep.subr.mxu0 0.0
    %3069 = vmatpush1.msra.mxu0 %v1889
    %3070 = vmatprep.subr.mxu0 0.0
    %3071 = vmatpush2.msra.mxu0 0.0
    %3072 = vmatprep.subr.mxu0 0.0
    %3073 = vmatpush2.msra.mxu0 0.0
    %3074 = vmatprep.subr.mxu0 0.0
    %3075 = vmatpush2.msra.mxu0 0.0
    %3076 = vmatprep.subr.mxu0 0.0
    %3077 = vmatpush2.msra.mxu0 0.0
    %3078 = vmatprep.subr.mxu0 0.0
    %3079 = vmatpush2.msra.mxu0 0.0
    %3080 = vmatprep.subr.mxu0 0.0
    %3081 = vmatpush2.msra.mxu0 0.0
    %3082 = vmatprep.subr.mxu0 0.0
    %3083 = vmatpush2.msra.mxu0 0.0
    %3084 = vmatprep.subr.mxu0 0.0
    %3085 = vmatpush2.msra.mxu0 0.0
    %3086 = vmatprep.subr.mxu0 0.0
    %3087 = vmatpush2.msra.mxu0 0.0
    %3088 = vmatprep.subr.mxu0 0.0
    %3089 = vmatpush2.msra.mxu0 0.0
    %3090 = vmatprep.subr.mxu0 0.0
    %3091 = vmatpush2.msra.mxu0 0.0
    %3092 = vmatprep.subr.mxu0 0.0
    %3093 = vmatpush2.msra.mxu0 0.0
    %3094 = vmatprep.subr.mxu0 0.0
    %3095 = vmatpush2.msra.mxu0 0.0
    %3096 = vmatprep.subr.mxu0 0.0
    %3097 = vmatpush2.msra.mxu0 0.0
    %3098 = vmatprep.subr.mxu0 0.0
    %3099 = vmatpush2.msra.mxu0 0.0
    %3100 = vmatprep.subr.mxu0 0.0
    %3101 = vmatpush2.msra.mxu0 0.0
    %3102 = vmatprep.mubr.f32.mxu0 0.0
    %3103 = vmatmul.mubr.f32.gmra.mxu0 %v1435
    %v3104 = vpop.f32.mrf.mxu0
    %v3105 = vadd.f32 %v2958, %v3104
    %v3106 = vpop.f32.mrf.mxu0
    %3107 = vdwg.mxu0
    %v3108 = vadd.f32 %v3105, %v2211
    %v3109 = vxor.u32 %v3108, 2147483648
    %v3110 = vmul.f32 %v3109, 1.442695
    %v3111 = vpow.pop %v3110
    %v3112 = vadd.f32 %v3111, 1.0
    %v3113 = vrcp.pop %v3112
    %v3114 = vmul.f32 1.0, %v3113
    %3115 = vmatprep.subr.mxu0 0.0
    %3116 = vmatpush1.msra.mxu0 0.0
    %3117 = vmatprep.subr.mxu0 0.0
    %3118 = vmatpush1.msra.mxu0 0.0
    %3119 = vmatprep.subr.mxu0 0.0
    %3120 = vmatpush1.msra.mxu0 0.0
    %3121 = vmatprep.subr.mxu0 0.0
    %3122 = vmatpush1.msra.mxu0 0.0
    %3123 = vmatprep.subr.mxu0 0.0
    %3124 = vmatpush1.msra.mxu0 0.0
    %3125 = vmatprep.subr.mxu0 0.0
    %3126 = vmatpush1.msra.mxu0 0.0
    %3127 = vmatprep.subr.mxu0 0.0
    %3128 = vmatpush1.msra.mxu0 0.0
    %3129 = vmatprep.subr.mxu0 0.0
    %3130 = vmatpush1.msra.mxu0 0.0
    %3131 = vmatprep.subr.mxu0 0.0
    %3132 = vmatpush1.msra.mxu0 0.0
    %3133 = vmatprep.subr.mxu0 0.0
    %3134 = vmatpush1.msra.mxu0 0.0
    %3135 = vmatprep.subr.mxu0 0.0
    %3136 = vmatpush1.msra.mxu0 0.0
    %3137 = vmatprep.subr.mxu0 0.0
    %3138 = vmatpush1.msra.mxu0 0.0
    %3139 = vmatprep.subr.mxu0 0.0
    %3140 = vmatpush1.msra.mxu0 %v1897
    %3141 = vmatprep.subr.mxu0 0.0
    %3142 = vmatpush1.msra.mxu0 %v1896
    %3143 = vmatprep.subr.mxu0 0.0
    %3144 = vmatpush1.msra.mxu0 %v1895
    %3145 = vmatprep.subr.mxu0 0.0
    %3146 = vmatpush1.msra.mxu0 %v1894
    %3147 = vmatprep.subr.mxu0 0.0
    %3148 = vmatpush2.msra.mxu0 0.0
    %3149 = vmatprep.subr.mxu0 0.0
    %3150 = vmatpush2.msra.mxu0 0.0
    %3151 = vmatprep.subr.mxu0 0.0
    %3152 = vmatpush2.msra.mxu0 0.0
    %3153 = vmatprep.subr.mxu0 0.0
    %3154 = vmatpush2.msra.mxu0 0.0
    %3155 = vmatprep.subr.mxu0 0.0
    %3156 = vmatpush2.msra.mxu0 0.0
    %3157 = vmatprep.subr.mxu0 0.0
    %3158 = vmatpush2.msra.mxu0 0.0
    %3159 = vmatprep.subr.mxu0 0.0
    %3160 = vmatpush2.msra.mxu0 0.0
    %3161 = vmatprep.subr.mxu0 0.0
    %3162 = vmatpush2.msra.mxu0 0.0
    %3163 = vmatprep.subr.mxu0 0.0
    %3164 = vmatpush2.msra.mxu0 0.0
    %3165 = vmatprep.subr.mxu0 0.0
    %3166 = vmatpush2.msra.mxu0 0.0
    %3167 = vmatprep.subr.mxu0 0.0
    %3168 = vmatpush2.msra.mxu0 0.0
    %3169 = vmatprep.subr.mxu0 0.0
    %3170 = vmatpush2.msra.mxu0 0.0
    %3171 = vmatprep.subr.mxu0 0.0
    %3172 = vmatpush2.msra.mxu0 0.0
    %3173 = vmatprep.subr.mxu0 0.0
    %3174 = vmatpush2.msra.mxu0 0.0
    %3175 = vmatprep.subr.mxu0 0.0
    %3176 = vmatpush2.msra.mxu0 0.0
    %3177 = vmatprep.subr.mxu0 0.0
    %3178 = vmatpush2.msra.mxu0 0.0
    %3179 = vmatprep.mubr.f32.mxu0 0.0
    %3180 = vmatmul.mubr.f32.gmra.mxu0 %v1435
    %v3181 = vpop.f32.mrf.mxu0
    %v3182 = vadd.f32 %v2222, %v3181
    %v3183 = vpop.f32.mrf.mxu0
    %3184 = vdwg.mxu0
    %3185 = vmatprep.subr.mxu0 0.0
    %3186 = vmatpush1.msra.mxu0 0.0
    %3187 = vmatprep.subr.mxu0 0.0
    %3188 = vmatpush1.msra.mxu0 0.0
    %3189 = vmatprep.subr.mxu0 0.0
    %3190 = vmatpush1.msra.mxu0 0.0
    %3191 = vmatprep.subr.mxu0 0.0
    %3192 = vmatpush1.msra.mxu0 0.0
    %3193 = vmatprep.subr.mxu0 0.0
    %3194 = vmatpush1.msra.mxu0 0.0
    %3195 = vmatprep.subr.mxu0 0.0
    %3196 = vmatpush1.msra.mxu0 0.0
    %3197 = vmatprep.subr.mxu0 0.0
    %3198 = vmatpush1.msra.mxu0 0.0
    %3199 = vmatprep.subr.mxu0 0.0
    %3200 = vmatpush1.msra.mxu0 0.0
    %3201 = vmatprep.subr.mxu0 0.0
    %3202 = vmatpush1.msra.mxu0 0.0
    %3203 = vmatprep.subr.mxu0 0.0
    %3204 = vmatpush1.msra.mxu0 0.0
    %3205 = vmatprep.subr.mxu0 0.0
    %3206 = vmatpush1.msra.mxu0 0.0
    %3207 = vmatprep.subr.mxu0 0.0
    %3208 = vmatpush1.msra.mxu0 0.0
    %3209 = vmatprep.subr.mxu0 0.0
    %3210 = vmatpush1.msra.mxu0 %v2056
    %3211 = vmatprep.subr.mxu0 0.0
    %3212 = vmatpush1.msra.mxu0 %v2055
    %3213 = vmatprep.subr.mxu0 0.0
    %3214 = vmatpush1.msra.mxu0 %v2054
    %3215 = vmatprep.subr.mxu0 0.0
    %3216 = vmatpush1.msra.mxu0 %v2053
    %3217 = vmatprep.subr.mxu0 0.0
    %3218 = vmatpush2.msra.mxu0 0.0
    %3219 = vmatprep.subr.mxu0 0.0
    %3220 = vmatpush2.msra.mxu0 0.0
    %3221 = vmatprep.subr.mxu0 0.0
    %3222 = vmatpush2.msra.mxu0 0.0
    %3223 = vmatprep.subr.mxu0 0.0
    %3224 = vmatpush2.msra.mxu0 0.0
    %3225 = vmatprep.subr.mxu0 0.0
    %3226 = vmatpush2.msra.mxu0 0.0
    %3227 = vmatprep.subr.mxu0 0.0
    %3228 = vmatpush2.msra.mxu0 0.0
    %3229 = vmatprep.subr.mxu0 0.0
    %3230 = vmatpush2.msra.mxu0 0.0
    %3231 = vmatprep.subr.mxu0 0.0
    %3232 = vmatpush2.msra.mxu0 0.0
    %3233 = vmatprep.subr.mxu0 0.0
    %3234 = vmatpush2.msra.mxu0 0.0
    %3235 = vmatprep.subr.mxu0 0.0
    %3236 = vmatpush2.msra.mxu0 0.0
    %3237 = vmatprep.subr.mxu0 0.0
    %3238 = vmatpush2.msra.mxu0 0.0
    %3239 = vmatprep.subr.mxu0 0.0
    %3240 = vmatpush2.msra.mxu0 0.0
    %3241 = vmatprep.subr.mxu0 0.0
    %3242 = vmatpush2.msra.mxu0 0.0
    %3243 = vmatprep.subr.mxu0 0.0
    %3244 = vmatpush2.msra.mxu0 0.0
    %3245 = vmatprep.subr.mxu0 0.0
    %3246 = vmatpush2.msra.mxu0 0.0
    %3247 = vmatprep.subr.mxu0 0.0
    %3248 = vmatpush2.msra.mxu0 0.0
    %3249 = vmatprep.mubr.f32.mxu0 0.0
    %3250 = vmatmul.mubr.f32.gmra.mxu0 %v2819
    %v3251 = vpop.f32.mrf.mxu0
    %v3252 = vadd.f32 %v2296, %v3251
    %v3253 = vpop.f32.mrf.mxu0
    %3254 = vdwg.mxu0
    %v3255 = vmul.f32 %v3037, %v3252
    %v3256 = vadd.f32 %v3182, %v3255
    %v3257 = vtanh.pop %v3256
    %v3258 = vsub.f32 1.0, %v3114
    %v3259 = vmul.f32 %v3258, %v3257
    %v3260 = vmul.f32 %v3114, %v2817
    %v3261 = vadd.f32 %v3259, %v3260
    %v3263 = vsel %vm66, %v3261, 0
    %3265 = vmatprep.subr.mxu0 0.0
    %3266 = vmatpush1.msra.mxu0 0.0
    %3267 = vmatprep.subr.mxu0 0.0
    %3268 = vmatpush1.msra.mxu0 0.0
    %3269 = vmatprep.subr.mxu0 0.0
    %3270 = vmatpush1.msra.mxu0 0.0
    %3271 = vmatprep.subr.mxu0 0.0
    %3272 = vmatpush1.msra.mxu0 0.0
    %3273 = vmatprep.subr.mxu0 0.0
    %3274 = vmatpush1.msra.mxu0 0.0
    %3275 = vmatprep.subr.mxu0 0.0
    %3276 = vmatpush1.msra.mxu0 0.0
    %3277 = vmatprep.subr.mxu0 0.0
    %3278 = vmatpush1.msra.mxu0 0.0
    %3279 = vmatprep.subr.mxu0 0.0
    %3280 = vmatpush1.msra.mxu0 0.0
    %3281 = vmatprep.subr.mxu0 0.0
    %3282 = vmatpush1.msra.mxu0 0.0
    %3283 = vmatprep.subr.mxu0 0.0
    %3284 = vmatpush1.msra.mxu0 0.0
    %3285 = vmatprep.subr.mxu0 0.0
    %3286 = vmatpush1.msra.mxu0 0.0
    %3287 = vmatprep.subr.mxu0 0.0
    %3288 = vmatpush1.msra.mxu0 0.0
    %3289 = vmatprep.subr.mxu0 0.0
    %3290 = vmatpush1.msra.mxu0 %v1903
    %3291 = vmatprep.subr.mxu0 0.0
    %3292 = vmatpush1.msra.mxu0 %v1902
    %3293 = vmatprep.subr.mxu0 0.0
    %3294 = vmatpush1.msra.mxu0 %v1901
    %3295 = vmatprep.subr.mxu0 0.0
    %3296 = vmatpush1.msra.mxu0 %v1900
    %3297 = vmatprep.subr.mxu0 0.0
    %3298 = vmatpush2.msra.mxu0 0.0
    %3299 = vmatprep.subr.mxu0 0.0
    %3300 = vmatpush2.msra.mxu0 0.0
    %3301 = vmatprep.subr.mxu0 0.0
    %3302 = vmatpush2.msra.mxu0 0.0
    %3303 = vmatprep.subr.mxu0 0.0
    %3304 = vmatpush2.msra.mxu0 0.0
    %3305 = vmatprep.subr.mxu0 0.0
    %3306 = vmatpush2.msra.mxu0 0.0
    %3307 = vmatprep.subr.mxu0 0.0
    %3308 = vmatpush2.msra.mxu0 0.0
    %3309 = vmatprep.subr.mxu0 0.0
    %3310 = vmatpush2.msra.mxu0 0.0
    %3311 = vmatprep.subr.mxu0 0.0
    %3312 = vmatpush2.msra.mxu0 0.0
    %3313 = vmatprep.subr.mxu0 0.0
    %3314 = vmatpush2.msra.mxu0 0.0
    %3315 = vmatprep.subr.mxu0 0.0
    %3316 = vmatpush2.msra.mxu0 0.0
    %3317 = vmatprep.subr.mxu0 0.0
    %3318 = vmatpush2.msra.mxu0 0.0
    %3319 = vmatprep.subr.mxu0 0.0
    %3320 = vmatpush2.msra.mxu0 0.0
    %3321 = vmatprep.subr.mxu0 0.0
    %3322 = vmatpush2.msra.mxu0 0.0
    %3323 = vmatprep.subr.mxu0 0.0
    %3324 = vmatpush2.msra.mxu0 0.0
    %3325 = vmatprep.subr.mxu0 0.0
    %3326 = vmatpush2.msra.mxu0 0.0
    %3327 = vmatprep.subr.mxu0 0.0
    %3328 = vmatpush2.msra.mxu0 0.0
    %3329 = vmatprep.mubr.f32.mxu0 0.0
    %3330 = vmatmul.mubr.f32.gmra.mxu0 %v3263
    %v3331 = vpop.f32.mrf.mxu0
    %v3332 = vadd.f32 0.0, %v3331
    %v3333 = vpop.f32.mrf.mxu0
    %3334 = vdwg.mxu0
    %3335 = vmatprep.subr.mxu0 0.0
    %3336 = vmatpush1.msra.mxu0 0.0
    %3337 = vmatprep.subr.mxu0 0.0
    %3338 = vmatpush1.msra.mxu0 0.0
    %3339 = vmatprep.subr.mxu0 0.0
    %3340 = vmatpush1.msra.mxu0 0.0
    %3341 = vmatprep.subr.mxu0 0.0
    %3342 = vmatpush1.msra.mxu0 0.0
    %3343 = vmatprep.subr.mxu0 0.0
    %3344 = vmatpush1.msra.mxu0 0.0
    %3345 = vmatprep.subr.mxu0 0.0
    %3346 = vmatpush1.msra.mxu0 0.0
    %3347 = vmatprep.subr.mxu0 0.0
    %3348 = vmatpush1.msra.mxu0 0.0
    %3349 = vmatprep.subr.mxu0 0.0
    %3350 = vmatpush1.msra.mxu0 0.0
    %3351 = vmatprep.subr.mxu0 0.0
    %3352 = vmatpush1.msra.mxu0 0.0
    %3353 = vmatprep.subr.mxu0 0.0
    %3354 = vmatpush1.msra.mxu0 0.0
    %3355 = vmatprep.subr.mxu0 0.0
    %3356 = vmatpush1.msra.mxu0 0.0
    %3357 = vmatprep.subr.mxu0 0.0
    %3358 = vmatpush1.msra.mxu0 0.0
    %3359 = vmatprep.subr.mxu0 0.0
    %3360 = vmatpush1.msra.mxu0 %v1981
    %3361 = vmatprep.subr.mxu0 0.0
    %3362 = vmatpush1.msra.mxu0 %v1980
    %3363 = vmatprep.subr.mxu0 0.0
    %3364 = vmatpush1.msra.mxu0 %v1979
    %3365 = vmatprep.subr.mxu0 0.0
    %3366 = vmatpush1.msra.mxu0 %v1978
    %3367 = vmatprep.subr.mxu0 0.0
    %3368 = vmatpush2.msra.mxu0 0.0
    %3369 = vmatprep.subr.mxu0 0.0
    %3370 = vmatpush2.msra.mxu0 0.0
    %3371 = vmatprep.subr.mxu0 0.0
    %3372 = vmatpush2.msra.mxu0 0.0
    %3373 = vmatprep.subr.mxu0 0.0
    %3374 = vmatpush2.msra.mxu0 0.0
    %3375 = vmatprep.subr.mxu0 0.0
    %3376 = vmatpush2.msra.mxu0 0.0
    %3377 = vmatprep.subr.mxu0 0.0
    %3378 = vmatpush2.msra.mxu0 0.0
    %3379 = vmatprep.subr.mxu0 0.0
    %3380 = vmatpush2.msra.mxu0 0.0
    %3381 = vmatprep.subr.mxu0 0.0
    %3382 = vmatpush2.msra.mxu0 0.0
    %3383 = vmatprep.subr.mxu0 0.0
    %3384 = vmatpush2.msra.mxu0 0.0
    %3385 = vmatprep.subr.mxu0 0.0
    %3386 = vmatpush2.msra.mxu0 0.0
    %3387 = vmatprep.subr.mxu0 0.0
    %3388 = vmatpush2.msra.mxu0 0.0
    %3389 = vmatprep.subr.mxu0 0.0
    %3390 = vmatpush2.msra.mxu0 0.0
    %3391 = vmatprep.subr.mxu0 0.0
    %3392 = vmatpush2.msra.mxu0 0.0
    %3393 = vmatprep.subr.mxu0 0.0
    %3394 = vmatpush2.msra.mxu0 0.0
    %3395 = vmatprep.subr.mxu0 0.0
    %3396 = vmatpush2.msra.mxu0 0.0
    %3397 = vmatprep.subr.mxu0 0.0
    %3398 = vmatpush2.msra.mxu0 0.0
    %3399 = vmatprep.mubr.f32.mxu0 0.0
    %3400 = vmatmul.mubr.f32.gmra.mxu0 %v3263
    %v3401 = vpop.f32.mrf.mxu0
    %v3402 = vadd.f32 0.0, %v3401
    %v3403 = vpop.f32.mrf.mxu0
    %3404 = vdwg.mxu0
    %v3406 = vsel %vm66, %v1880, 0
    %3408 = vmatprep.subr.mxu0 0.0
    %3409 = vmatpush1.msra.mxu0 0.0
    %3410 = vmatprep.subr.mxu0 0.0
    %3411 = vmatpush1.msra.mxu0 0.0
    %3412 = vmatprep.subr.mxu0 0.0
    %3413 = vmatpush1.msra.mxu0 0.0
    %3414 = vmatprep.subr.mxu0 0.0
    %3415 = vmatpush1.msra.mxu0 0.0
    %3416 = vmatprep.subr.mxu0 0.0
    %3417 = vmatpush1.msra.mxu0 0.0
    %3418 = vmatprep.subr.mxu0 0.0
    %3419 = vmatpush1.msra.mxu0 0.0
    %3420 = vmatprep.subr.mxu0 0.0
    %3421 = vmatpush1.msra.mxu0 0.0
    %3422 = vmatprep.subr.mxu0 0.0
    %3423 = vmatpush1.msra.mxu0 0.0
    %3424 = vmatprep.subr.mxu0 0.0
    %3425 = vmatpush1.msra.mxu0 0.0
    %3426 = vmatprep.subr.mxu0 0.0
    %3427 = vmatpush1.msra.mxu0 0.0
    %3428 = vmatprep.subr.mxu0 0.0
    %3429 = vmatpush1.msra.mxu0 0.0
    %3430 = vmatprep.subr.mxu0 0.0
    %3431 = vmatpush1.msra.mxu0 0.0
    %3432 = vmatprep.subr.mxu0 0.0
    %3433 = vmatpush1.msra.mxu0 %v1887
    %3434 = vmatprep.subr.mxu0 0.0
    %3435 = vmatpush1.msra.mxu0 %v1886
    %3436 = vmatprep.subr.mxu0 0.0
    %3437 = vmatpush1.msra.mxu0 %v1885
    %3438 = vmatprep.subr.mxu0 0.0
    %3439 = vmatpush1.msra.mxu0 %v1884
    %3440 = vmatprep.subr.mxu0 0.0
    %3441 = vmatpush2.msra.mxu0 0.0
    %3442 = vmatprep.subr.mxu0 0.0
    %3443 = vmatpush2.msra.mxu0 0.0
    %3444 = vmatprep.subr.mxu0 0.0
    %3445 = vmatpush2.msra.mxu0 0.0
    %3446 = vmatprep.subr.mxu0 0.0
    %3447 = vmatpush2.msra.mxu0 0.0
    %3448 = vmatprep.subr.mxu0 0.0
    %3449 = vmatpush2.msra.mxu0 0.0
    %3450 = vmatprep.subr.mxu0 0.0
    %3451 = vmatpush2.msra.mxu0 0.0
    %3452 = vmatprep.subr.mxu0 0.0
    %3453 = vmatpush2.msra.mxu0 0.0
    %3454 = vmatprep.subr.mxu0 0.0
    %3455 = vmatpush2.msra.mxu0 0.0
    %3456 = vmatprep.subr.mxu0 0.0
    %3457 = vmatpush2.msra.mxu0 0.0
    %3458 = vmatprep.subr.mxu0 0.0
    %3459 = vmatpush2.msra.mxu0 0.0
    %3460 = vmatprep.subr.mxu0 0.0
    %3461 = vmatpush2.msra.mxu0 0.0
    %3462 = vmatprep.subr.mxu0 0.0
    %3463 = vmatpush2.msra.mxu0 0.0
    %3464 = vmatprep.subr.mxu0 0.0
    %3465 = vmatpush2.msra.mxu0 0.0
    %3466 = vmatprep.subr.mxu0 0.0
    %3467 = vmatpush2.msra.mxu0 0.0
    %3468 = vmatprep.subr.mxu0 0.0
    %3469 = vmatpush2.msra.mxu0 0.0
    %3470 = vmatprep.subr.mxu0 0.0
    %3471 = vmatpush2.msra.mxu0 0.0
    %3472 = vmatprep.mubr.f32.mxu0 0.0
    %3473 = vmatmul.mubr.f32.gmra.mxu0 %v3406
    %v3474 = vpop.f32.mrf.mxu0
    %v3475 = vadd.f32 %v3332, %v3474
    %v3476 = vpop.f32.mrf.mxu0
    %3477 = vdwg.mxu0
    %v3478 = vadd.f32 %v3475, %v2130
    %v3479 = vxor.u32 %v3478, 2147483648
    %v3480 = vmul.f32 %v3479, 1.442695
    %v3481 = vpow.pop %v3480
    %v3482 = vadd.f32 %v3481, 1.0
    %v3483 = vrcp.pop %v3482
    %v3484 = vmul.f32 1.0, %v3483
    %3485 = vmatprep.subr.mxu0 0.0
    %3486 = vmatpush1.msra.mxu0 0.0
    %3487 = vmatprep.subr.mxu0 0.0
    %3488 = vmatpush1.msra.mxu0 0.0
    %3489 = vmatprep.subr.mxu0 0.0
    %3490 = vmatpush1.msra.mxu0 0.0
    %3491 = vmatprep.subr.mxu0 0.0
    %3492 = vmatpush1.msra.mxu0 0.0
    %3493 = vmatprep.subr.mxu0 0.0
    %3494 = vmatpush1.msra.mxu0 0.0
    %3495 = vmatprep.subr.mxu0 0.0
    %3496 = vmatpush1.msra.mxu0 0.0
    %3497 = vmatprep.subr.mxu0 0.0
    %3498 = vmatpush1.msra.mxu0 0.0
    %3499 = vmatprep.subr.mxu0 0.0
    %3500 = vmatpush1.msra.mxu0 0.0
    %3501 = vmatprep.subr.mxu0 0.0
    %3502 = vmatpush1.msra.mxu0 0.0
    %3503 = vmatprep.subr.mxu0 0.0
    %3504 = vmatpush1.msra.mxu0 0.0
    %3505 = vmatprep.subr.mxu0 0.0
    %3506 = vmatpush1.msra.mxu0 0.0
    %3507 = vmatprep.subr.mxu0 0.0
    %3508 = vmatpush1.msra.mxu0 0.0
    %3509 = vmatprep.subr.mxu0 0.0
    %3510 = vmatpush1.msra.mxu0 %v1892
    %3511 = vmatprep.subr.mxu0 0.0
    %3512 = vmatpush1.msra.mxu0 %v1891
    %3513 = vmatprep.subr.mxu0 0.0
    %3514 = vmatpush1.msra.mxu0 %v1890
    %3515 = vmatprep.subr.mxu0 0.0
    %3516 = vmatpush1.msra.mxu0 %v1889
    %3517 = vmatprep.subr.mxu0 0.0
    %3518 = vmatpush2.msra.mxu0 0.0
    %3519 = vmatprep.subr.mxu0 0.0
    %3520 = vmatpush2.msra.mxu0 0.0
    %3521 = vmatprep.subr.mxu0 0.0
    %3522 = vmatpush2.msra.mxu0 0.0
    %3523 = vmatprep.subr.mxu0 0.0
    %3524 = vmatpush2.msra.mxu0 0.0
    %3525 = vmatprep.subr.mxu0 0.0
    %3526 = vmatpush2.msra.mxu0 0.0
    %3527 = vmatprep.subr.mxu0 0.0
    %3528 = vmatpush2.msra.mxu0 0.0
    %3529 = vmatprep.subr.mxu0 0.0
    %3530 = vmatpush2.msra.mxu0 0.0
    %3531 = vmatprep.subr.mxu0 0.0
    %3532 = vmatpush2.msra.mxu0 0.0
    %3533 = vmatprep.subr.mxu0 0.0
    %3534 = vmatpush2.msra.mxu0 0.0
    %3535 = vmatprep.subr.mxu0 0.0
    %3536 = vmatpush2.msra.mxu0 0.0
    %3537 = vmatprep.subr.mxu0 0.0
    %3538 = vmatpush2.msra.mxu0 0.0
    %3539 = vmatprep.subr.mxu0 0.0
    %3540 = vmatpush2.msra.mxu0 0.0
    %3541 = vmatprep.subr.mxu0 0.0
    %3542 = vmatpush2.msra.mxu0 0.0
    %3543 = vmatprep.subr.mxu0 0.0
    %3544 = vmatpush2.msra.mxu0 0.0
    %3545 = vmatprep.subr.mxu0 0.0
    %3546 = vmatpush2.msra.mxu0 0.0
    %3547 = vmatprep.subr.mxu0 0.0
    %3548 = vmatpush2.msra.mxu0 0.0
    %3549 = vmatprep.mubr.f32.mxu0 0.0
    %3550 = vmatmul.mubr.f32.gmra.mxu0 %v3406
    %v3551 = vpop.f32.mrf.mxu0
    %v3552 = vadd.f32 %v3402, %v3551
    %v3553 = vpop.f32.mrf.mxu0
    %3554 = vdwg.mxu0
    %v3555 = vadd.f32 %v3552, %v2211
    %v3556 = vxor.u32 %v3555, 2147483648
    %v3557 = vmul.f32 %v3556, 1.442695
    %v3558 = vpow.pop %v3557
    %v3559 = vadd.f32 %v3558, 1.0
    %v3560 = vrcp.pop %v3559
    %v3561 = vmul.f32 1.0, %v3560
    %3562 = vmatprep.subr.mxu0 0.0
    %3563 = vmatpush1.msra.mxu0 0.0
    %3564 = vmatprep.subr.mxu0 0.0
    %3565 = vmatpush1.msra.mxu0 0.0
    %3566 = vmatprep.subr.mxu0 0.0
    %3567 = vmatpush1.msra.mxu0 0.0
    %3568 = vmatprep.subr.mxu0 0.0
    %3569 = vmatpush1.msra.mxu0 0.0
    %3570 = vmatprep.subr.mxu0 0.0
    %3571 = vmatpush1.msra.mxu0 0.0
    %3572 = vmatprep.subr.mxu0 0.0
    %3573 = vmatpush1.msra.mxu0 0.0
    %3574 = vmatprep.subr.mxu0 0.0
    %3575 = vmatpush1.msra.mxu0 0.0
    %3576 = vmatprep.subr.mxu0 0.0
    %3577 = vmatpush1.msra.mxu0 0.0
    %3578 = vmatprep.subr.mxu0 0.0
    %3579 = vmatpush1.msra.mxu0 0.0
    %3580 = vmatprep.subr.mxu0 0.0
    %3581 = vmatpush1.msra.mxu0 0.0
    %3582 = vmatprep.subr.mxu0 0.0
    %3583 = vmatpush1.msra.mxu0 0.0
    %3584 = vmatprep.subr.mxu0 0.0
    %3585 = vmatpush1.msra.mxu0 0.0
    %3586 = vmatprep.subr.mxu0 0.0
    %3587 = vmatpush1.msra.mxu0 %v1897
    %3588 = vmatprep.subr.mxu0 0.0
    %3589 = vmatpush1.msra.mxu0 %v1896
    %3590 = vmatprep.subr.mxu0 0.0
    %3591 = vmatpush1.msra.mxu0 %v1895
    %3592 = vmatprep.subr.mxu0 0.0
    %3593 = vmatpush1.msra.mxu0 %v1894
    %3594 = vmatprep.subr.mxu0 0.0
    %3595 = vmatpush2.msra.mxu0 0.0
    %3596 = vmatprep.subr.mxu0 0.0
    %3597 = vmatpush2.msra.mxu0 0.0
    %3598 = vmatprep.subr.mxu0 0.0
    %3599 = vmatpush2.msra.mxu0 0.0
    %3600 = vmatprep.subr.mxu0 0.0
    %3601 = vmatpush2.msra.mxu0 0.0
    %3602 = vmatprep.subr.mxu0 0.0
    %3603 = vmatpush2.msra.mxu0 0.0
    %3604 = vmatprep.subr.mxu0 0.0
    %3605 = vmatpush2.msra.mxu0 0.0
    %3606 = vmatprep.subr.mxu0 0.0
    %3607 = vmatpush2.msra.mxu0 0.0
    %3608 = vmatprep.subr.mxu0 0.0
    %3609 = vmatpush2.msra.mxu0 0.0
    %3610 = vmatprep.subr.mxu0 0.0
    %3611 = vmatpush2.msra.mxu0 0.0
    %3612 = vmatprep.subr.mxu0 0.0
    %3613 = vmatpush2.msra.mxu0 0.0
    %3614 = vmatprep.subr.mxu0 0.0
    %3615 = vmatpush2.msra.mxu0 0.0
    %3616 = vmatprep.subr.mxu0 0.0
    %3617 = vmatpush2.msra.mxu0 0.0
    %3618 = vmatprep.subr.mxu0 0.0
    %3619 = vmatpush2.msra.mxu0 0.0
    %3620 = vmatprep.subr.mxu0 0.0
    %3621 = vmatpush2.msra.mxu0 0.0
    %3622 = vmatprep.subr.mxu0 0.0
    %3623 = vmatpush2.msra.mxu0 0.0
    %3624 = vmatprep.subr.mxu0 0.0
    %3625 = vmatpush2.msra.mxu0 0.0
    %3626 = vmatprep.mubr.f32.mxu0 0.0
    %3627 = vmatmul.mubr.f32.gmra.mxu0 %v3406
    %v3628 = vpop.f32.mrf.mxu0
    %v3629 = vadd.f32 %v2222, %v3628
    %v3630 = vpop.f32.mrf.mxu0
    %3631 = vdwg.mxu0
    %3632 = vmatprep.subr.mxu0 0.0
    %3633 = vmatpush1.msra.mxu0 0.0
    %3634 = vmatprep.subr.mxu0 0.0
    %3635 = vmatpush1.msra.mxu0 0.0
    %3636 = vmatprep.subr.mxu0 0.0
    %3637 = vmatpush1.msra.mxu0 0.0
    %3638 = vmatprep.subr.mxu0 0.0
    %3639 = vmatpush1.msra.mxu0 0.0
    %3640 = vmatprep.subr.mxu0 0.0
    %3641 = vmatpush1.msra.mxu0 0.0
    %3642 = vmatprep.subr.mxu0 0.0
    %3643 = vmatpush1.msra.mxu0 0.0
    %3644 = vmatprep.subr.mxu0 0.0
    %3645 = vmatpush1.msra.mxu0 0.0
    %3646 = vmatprep.subr.mxu0 0.0
    %3647 = vmatpush1.msra.mxu0 0.0
    %3648 = vmatprep.subr.mxu0 0.0
    %3649 = vmatpush1.msra.mxu0 0.0
    %3650 = vmatprep.subr.mxu0 0.0
    %3651 = vmatpush1.msra.mxu0 0.0
    %3652 = vmatprep.subr.mxu0 0.0
    %3653 = vmatpush1.msra.mxu0 0.0
    %3654 = vmatprep.subr.mxu0 0.0
    %3655 = vmatpush1.msra.mxu0 0.0
    %3656 = vmatprep.subr.mxu0 0.0
    %3657 = vmatpush1.msra.mxu0 %v2056
    %3658 = vmatprep.subr.mxu0 0.0
    %3659 = vmatpush1.msra.mxu0 %v2055
    %3660 = vmatprep.subr.mxu0 0.0
    %3661 = vmatpush1.msra.mxu0 %v2054
    %3662 = vmatprep.subr.mxu0 0.0
    %3663 = vmatpush1.msra.mxu0 %v2053
    %3664 = vmatprep.subr.mxu0 0.0
    %3665 = vmatpush2.msra.mxu0 0.0
    %3666 = vmatprep.subr.mxu0 0.0
    %3667 = vmatpush2.msra.mxu0 0.0
    %3668 = vmatprep.subr.mxu0 0.0
    %3669 = vmatpush2.msra.mxu0 0.0
    %3670 = vmatprep.subr.mxu0 0.0
    %3671 = vmatpush2.msra.mxu0 0.0
    %3672 = vmatprep.subr.mxu0 0.0
    %3673 = vmatpush2.msra.mxu0 0.0
    %3674 = vmatprep.subr.mxu0 0.0
    %3675 = vmatpush2.msra.mxu0 0.0
    %3676 = vmatprep.subr.mxu0 0.0
    %3677 = vmatpush2.msra.mxu0 0.0
    %3678 = vmatprep.subr.mxu0 0.0
    %3679 = vmatpush2.msra.mxu0 0.0
    %3680 = vmatprep.subr.mxu0 0.0
    %3681 = vmatpush2.msra.mxu0 0.0
    %3682 = vmatprep.subr.mxu0 0.0
    %3683 = vmatpush2.msra.mxu0 0.0
    %3684 = vmatprep.subr.mxu0 0.0
    %3685 = vmatpush2.msra.mxu0 0.0
    %3686 = vmatprep.subr.mxu0 0.0
    %3687 = vmatpush2.msra.mxu0 0.0
    %3688 = vmatprep.subr.mxu0 0.0
    %3689 = vmatpush2.msra.mxu0 0.0
    %3690 = vmatprep.subr.mxu0 0.0
    %3691 = vmatpush2.msra.mxu0 0.0
    %3692 = vmatprep.subr.mxu0 0.0
    %3693 = vmatpush2.msra.mxu0 0.0
    %3694 = vmatprep.subr.mxu0 0.0
    %3695 = vmatpush2.msra.mxu0 0.0
    %3696 = vmatprep.mubr.f32.mxu0 0.0
    %3697 = vmatmul.mubr.f32.gmra.mxu0 %v3263
    %v3698 = vpop.f32.mrf.mxu0
    %v3699 = vadd.f32 %v2296, %v3698
    %v3700 = vpop.f32.mrf.mxu0
    %3701 = vdwg.mxu0
    %v3702 = vmul.f32 %v3484, %v3699
    %v3703 = vadd.f32 %v3629, %v3702
    %v3704 = vtanh.pop %v3703
    %v3705 = vsub.f32 1.0, %v3561
    %v3706 = vmul.f32 %v3705, %v3704
    %v3707 = vmul.f32 %v3561, %v3261
    %v3708 = vadd.f32 %v3706, %v3707
    %s3709 = scalar_lea.vmem [#allocation4], 2
    %3710 = vst.msk [vmem:[%s3709] sm:$0x3] %vm1881, %v3708
    %v3711 = vld [vmem:[%s8] sm:$0xff]
    %v3712 = vld [vmem:[%s8 + $0x8] sm:$0xff]
    %v3713 = vld [vmem:[%s8 + $0x10] sm:$0xff]
    %v3714 = vld [vmem:[%s8 + $0x18] sm:$0xff]
    %v3715 = vld [vmem:[%s9] sm:$0x1]
    %v3717 = vlaneseq
    %v3718 = vshrl.u32 %v3717, 7
    %v3719 = vsub.s32 0, %v3718
    %v3720 = vrot.slane %v3715, %v3719
    %3722 = vmatprep.subr.mxu0 0.0
    %3723 = vmatpush1.msra.mxu0 0.0
    %3724 = vmatprep.subr.mxu0 0.0
    %3725 = vmatpush1.msra.mxu0 0.0
    %3726 = vmatprep.subr.mxu0 0.0
    %3727 = vmatpush1.msra.mxu0 0.0
    %3728 = vmatprep.subr.mxu0 0.0
    %3729 = vmatpush1.msra.mxu0 0.0
    %3730 = vmatprep.subr.mxu0 0.0
    %3731 = vmatpush1.msra.mxu0 0.0
    %3732 = vmatprep.subr.mxu0 0.0
    %3733 = vmatpush1.msra.mxu0 0.0
    %3734 = vmatprep.subr.mxu0 0.0
    %3735 = vmatpush1.msra.mxu0 0.0
    %3736 = vmatprep.subr.mxu0 0.0
    %3737 = vmatpush1.msra.mxu0 0.0
    %3738 = vmatprep.subr.mxu0 0.0
    %3739 = vmatpush1.msra.mxu0 0.0
    %3740 = vmatprep.subr.mxu0 0.0
    %3741 = vmatpush1.msra.mxu0 0.0
    %3742 = vmatprep.subr.mxu0 0.0
    %3743 = vmatpush1.msra.mxu0 0.0
    %3744 = vmatprep.subr.mxu0 0.0
    %3745 = vmatpush1.msra.mxu0 0.0
    %3746 = vmatprep.subr.mxu0 0.0
    %3747 = vmatpush1.msra.mxu0 %v3714
    %3748 = vmatprep.subr.mxu0 0.0
    %3749 = vmatpush1.msra.mxu0 %v3713
    %3750 = vmatprep.subr.mxu0 0.0
    %3751 = vmatpush1.msra.mxu0 %v3712
    %3752 = vmatprep.subr.mxu0 0.0
    %3753 = vmatpush1.msra.mxu0 %v3711
    %3754 = vmatprep.subr.mxu0 0.0
    %3755 = vmatpush2.msra.mxu0 0.0
    %3756 = vmatprep.subr.mxu0 0.0
    %3757 = vmatpush2.msra.mxu0 0.0
    %3758 = vmatprep.subr.mxu0 0.0
    %3759 = vmatpush2.msra.mxu0 0.0
    %3760 = vmatprep.subr.mxu0 0.0
    %3761 = vmatpush2.msra.mxu0 0.0
    %3762 = vmatprep.subr.mxu0 0.0
    %3763 = vmatpush2.msra.mxu0 0.0
    %3764 = vmatprep.subr.mxu0 0.0
    %3765 = vmatpush2.msra.mxu0 0.0
    %3766 = vmatprep.subr.mxu0 0.0
    %3767 = vmatpush2.msra.mxu0 0.0
    %3768 = vmatprep.subr.mxu0 0.0
    %3769 = vmatpush2.msra.mxu0 0.0
    %3770 = vmatprep.subr.mxu0 0.0
    %3771 = vmatpush2.msra.mxu0 0.0
    %3772 = vmatprep.subr.mxu0 0.0
    %3773 = vmatpush2.msra.mxu0 0.0
    %3774 = vmatprep.subr.mxu0 0.0
    %3775 = vmatpush2.msra.mxu0 0.0
    %3776 = vmatprep.subr.mxu0 0.0
    %3777 = vmatpush2.msra.mxu0 0.0
    %3778 = vmatprep.subr.mxu0 0.0
    %3779 = vmatpush2.msra.mxu0 0.0
    %3780 = vmatprep.subr.mxu0 0.0
    %3781 = vmatpush2.msra.mxu0 0.0
    %3782 = vmatprep.subr.mxu0 0.0
    %3783 = vmatpush2.msra.mxu0 0.0
    %3784 = vmatprep.subr.mxu0 0.0
    %3785 = vmatpush2.msra.mxu0 0.0
    %3786 = vmatprep.mubr.f32.mxu0 0.0
    %3787 = vmatmul.mubr.f32.gmra.mxu0 %v2375
    %v3788 = vpop.f32.mrf.mxu0
    %v3789 = vadd.f32 %v3720, %v3788
    %v3790 = vpop.f32.mrf.mxu0
    %3791 = vdwg.mxu0
    %vm3792 = vcmask 517120
    %v3793 = vsel %vm3792, %v3789, -inf
    %3794 = vmax.xlane.f32.xlu0 %v3793
    %v3795 = vpop.xlane.xlu0 %3794
    %v3796 = vsub.f32 %v3789, %v3795
    %v3797 = vmul.f32 %v3796, 1.442695
    %v3798 = vpow.pop %v3797
    %v3799 = vsel %vm3792, %v3798, 0.0
    %3800 = vadd.xlane.f32.xlu0 %v3799
    %v3801 = vpop.xlane.xlu0 %3800
    %v3802 = vlog2.pop %v3801
    %v3803 = vmul.f32 %v3802, 0.6931472
    %v3804 = vsub.f32 %v3796, %v3803
    %3805 = vst.msk [vmem:[#allocation2] sm:$0x3] %vm3792, %v3804
    // Predicated region
    $region42: #{decoder_gru_forward.1} parent=1 // pred_check
      _
    $region43: #{decoder_gru_forward.1} parent=1 // pred_check_branch
      %3807 = sbr.rel (0) target = $region45
    $region44: #{decoder_gru_forward.1} parent=1 // pred_region
      %s3809 = ssub.s32 32, 32
      %3810 = vsyncadd [#allocation3], %s3809
      %s3812 = sshll.u32 [#allocation2], 4
      %s3813 = int_to_ptr.vmem [resolvable:$true] %s3812
      %3815 = dma.vmem_to_hbm [thread:$0]  %s3813, 32, %s10, [#allocation3]
    $region45: #{decoder_gru_forward.1} parent=1 // pred_fallthru
      _
    // Predicated region
    $region46: #{decoder_gru_forward.1} parent=1 // pred_check
      _
    $region47: #{decoder_gru_forward.1} parent=1 // pred_check_branch
      %3817 = sbr.rel (0) target = $region49
    $region48: #{decoder_gru_forward.1} parent=1 // pred_region
      %s3819 = ssub.s32 64, 64
      %3820 = vsyncadd [#allocation5], %s3819
      %s3821 = sshll.u32 [#allocation4], 4
      %s3822 = int_to_ptr.vmem [resolvable:$true] %s3821
      %3827 = dma.vmem_to_hbm [thread:$0]  %s3822, 64, %s11, [#allocation5], 32, 32, 2
    $region49: #{decoder_gru_forward.1} parent=1 // pred_fallthru
      _
    // Predicated region
    $region50: #{decoder_gru_forward.1} parent=1 // pred_check
      _
    $region51: #{decoder_gru_forward.1} parent=1 // pred_check_branch
      %3829 = sbr.rel (0) target = $region53
    $region52: #{decoder_gru_forward.1} parent=1 // pred_region
      %3830 = dma.done [#allocation3], 32
    $region53: #{decoder_gru_forward.1} parent=1 // pred_fallthru
      _
    // Predicated region
    $region54: #{decoder_gru_forward.1} parent=1 // pred_check
      _
    $region55: #{decoder_gru_forward.1} parent=1 // pred_check_branch
      %3832 = sbr.rel (0) target = $region57
    $region56: #{decoder_gru_forward.1} parent=1 // pred_region
      %3833 = dma.done [#allocation5], 64
    $region57: #{decoder_gru_forward.1} parent=1 // pred_fallthru
      _
    %3834 = vsyncpa [#allocation3], 1
    %3835 = vsyncpa [#allocation5], 1

</llo_original>
